<compile_context>
chip_gen: v7x
topology: tpu7x:2x2x1
jax: 0.10.0
libtpu: 0.0.40
codegen_flags: <defaults>
</compile_context>

<pallas_src>
import functools
import numpy as np

import jax
import jax.numpy as jnp
from jax.experimental import pallas as pl
from jax.experimental.pallas import tpu as pltpu


# ----------------------------------------------------------------------------
# Tiling helpers
# ----------------------------------------------------------------------------
def _round_up(n, m):
    return (n + m - 1) // m * m


def _pick_tm(n, stream_row_bytes, fixed_bytes, *, target=1024,
             vmem_budget=24 * 1024 * 1024):
    """Largest 128-multiple token tile <= target such that the double-buffered streaming
    tiles plus the (conservatively double-buffered) constant weight blocks fit a VMEM
    budget that is safe on every generation (v7x: 64 MiB physical, 32 MiB scoped default),
    while keeping >= 2 grid steps when there is enough work (v7x megacore = 2 TCs)."""
    tm = max(128, target)
    while tm > 128 and 2 * tm * stream_row_bytes + 2 * fixed_bytes > vmem_budget:
        tm //= 2
    n128 = _round_up(n, 128)
    tm = min(tm, n128)
    if n128 > 128 and pl.cdiv(n128, tm) < 2:
        tm = max(128, _round_up(pl.cdiv(n128, 2), 128))
    return tm


def _pad_rows(a, n_pad):
    n = a.shape[0]
    if n == n_pad:
        return a
    return jnp.pad(a, ((0, n_pad - n), (0, 0)))


# ----------------------------------------------------------------------------
# Kernel 1: lora_down only        x (N, Cin) @ a.T (Cin, R) -> (N, R)
# ----------------------------------------------------------------------------
def _in_proj_kernel(x_ref, a_ref, o_ref):
    o_ref[...] = jnp.dot(x_ref[...], a_ref[...],
                         preferred_element_type=jnp.float32).astype(o_ref.dtype)


def _in_proj(x2p, at, *, tm, out_dtype):
    n_pad, cin = x2p.shape
    r = at.shape[1]
    return pl.pallas_call(
        _in_proj_kernel,
        out_shape=jax.ShapeDtypeStruct((n_pad, r), out_dtype),
        grid=(n_pad // tm,),
        in_specs=[pl.BlockSpec((tm, cin), lambda i: (i, 0)),
                  pl.BlockSpec((cin, r), lambda i: (0, 0))],
        out_specs=pl.BlockSpec((tm, r), lambda i: (i, 0)),
        compiler_params=pltpu.CompilerParams(dimension_semantics=("parallel",)),
    )(x2p, at)


# ----------------------------------------------------------------------------
# Kernel 2: spectral processing, channel-first (R on sublanes, H*Wf on lanes),
#           whole batch block per grid step (static unrolled per-batch loop)
# ----------------------------------------------------------------------------
def _spectral_kernel(mag_ref, pha_ref, wm_ref, bm_ref, wp1_ref, bp1_ref, wp2_ref, bp2_ref,
                     mag_out_ref, pha_out_ref, *, bblk):
    wm = wm_ref[...]
    bm = bm_ref[...]
    wp1 = wp1_ref[...]
    bp1 = bp1_ref[...]
    wp2 = wp2_ref[...]
    bp2 = bp2_ref[...]
    for b in range(bblk):                                       # static unroll, bblk <= 8
        mag = mag_ref[b]                                        # (R, S), spatial lane-dense
        pha = pha_ref[b]

        # 1x1 conv over channels == (R, R) @ (R, S) matmul.
        mag_out = jnp.dot(wm, mag, preferred_element_type=jnp.float32) + bm
        mag_res = mag_out - mag

        # adaptive_avg_pool2d((1,1)) == mean over the lane (spatial) axis; softmax over channels.
        pool = jnp.mean(mag_res, axis=1, keepdims=True)         # (R, 1)
        pool = pool - jnp.max(pool, axis=0, keepdims=True)
        e = jnp.exp(pool)
        pool = e / jnp.sum(e, axis=0, keepdims=True)

        # phase branch: scale, conv -> ReLU -> conv, residual add.
        pha1 = pha * pool
        h = jnp.dot(wp1, pha1, preferred_element_type=jnp.float32) + bp1
        h = jnp.maximum(h, 0.0)
        pha1 = jnp.dot(wp2, h, preferred_element_type=jnp.float32) + bp2

        mag_out_ref[b] = mag_out
        pha_out_ref[b] = pha1 + pha


def _spectral(mag_cf, pha_cf, wm, bm, wp1, bp1, wp2, bp2, *, bblk_max=8):
    b, r, s = mag_cf.shape
    bblk = min(b, bblk_max)
    b_pad = _round_up(b, bblk)
    if b_pad != b:
        pad = ((0, b_pad - b), (0, 0), (0, 0))
        mag_cf = jnp.pad(mag_cf, pad)
        pha_cf = jnp.pad(pha_cf, pad)
    spec = pl.BlockSpec((bblk, r, s), lambda i: (i, 0, 0))
    wspec = pl.BlockSpec((r, r), lambda i: (0, 0))
    bspec = pl.BlockSpec((r, 1), lambda i: (0, 0))
    mag_out, pha_out = pl.pallas_call(
        functools.partial(_spectral_kernel, bblk=bblk),
        out_shape=(jax.ShapeDtypeStruct((b_pad, r, s), jnp.float32),
                   jax.ShapeDtypeStruct((b_pad, r, s), jnp.float32)),
        grid=(b_pad // bblk,),
        in_specs=[spec, spec, wspec, bspec, wspec, bspec, wspec, bspec],
        out_specs=(spec, spec),
        compiler_params=pltpu.CompilerParams(dimension_semantics=("parallel",)),
    )(mag_cf, pha_cf, wm, bm, wp1, bp1, wp2, bp2)
    return mag_out[:b], pha_out[:b]


# ----------------------------------------------------------------------------
# Kernel 3: fused base Linear + lora_up + residual
#           out = x @ w0.T + y_fft @ (scaling * bup.T) + b0
# ----------------------------------------------------------------------------
def _out_proj_kernel(x_ref, y_ref, w0t_ref, wupt_ref, b_ref, o_ref):
    acc = jnp.dot(x_ref[...], w0t_ref[...], preferred_element_type=jnp.float32)
    acc = acc + jnp.dot(y_ref[...], wupt_ref[...], preferred_element_type=jnp.float32)
    o_ref[...] = (acc + b_ref[...]).astype(o_ref.dtype)


def _out_proj(x2p, y2p, w0t, wupt, b0, *, tm):
    n_pad, cin = x2p.shape
    r = y2p.shape[1]
    cout_pad = w0t.shape[1]
    return pl.pallas_call(
        _out_proj_kernel,
        out_shape=jax.ShapeDtypeStruct((n_pad, cout_pad), jnp.float32),
        grid=(n_pad // tm,),
        in_specs=[pl.BlockSpec((tm, cin), lambda i: (i, 0)),
                  pl.BlockSpec((tm, r), lambda i: (i, 0)),
                  pl.BlockSpec((cin, cout_pad), lambda i: (0, 0)),
                  pl.BlockSpec((r, cout_pad), lambda i: (0, 0)),
                  pl.BlockSpec((1, cout_pad), lambda i: (0, 0))],
        out_specs=pl.BlockSpec((tm, cout_pad), lambda i: (i, 0)),
        compiler_params=pltpu.CompilerParams(dimension_semantics=("parallel",)),
    )(x2p, y2p, w0t, wupt, b0)


# ----------------------------------------------------------------------------
# Full forward (glue + kernels).  lora_dropout has p=0 -> identity.
# ----------------------------------------------------------------------------
def lora_fft_forward(x, p, *, mxu_dtype=jnp.float32):
    # mxu_dtype=jnp.bfloat16 halves activation/weight/lora_down HBM traffic and feeds the
    # MXU at native bf16 rate on v6e/v7x (accumulation stays f32); keep f32 on v5e / for
    # strict parity with the PyTorch Linear.
    B, H, W, Cin = x.shape
    Cout = p["w0"].shape[0]
    R = p["a"].shape[0]
    Wf = W // 2 + 1
    N = B * H * W
    S = H * Wf

    cout_pad = _round_up(Cout, 128)            # lane-dense (unmasked) output stores
    act_bytes = jnp.dtype(mxu_dtype).itemsize

    # One shared token tile / padded length for both row-tiled kernels (pad x2 exactly once).
    stream_row_bytes = (Cin + R) * act_bytes + R * act_bytes + cout_pad * 4
    fixed_bytes = (Cin + R + 1) * cout_pad * act_bytes
    tm = _pick_tm(N, stream_row_bytes, fixed_bytes)
    n_pad = _round_up(N, tm)

    x2p = _pad_rows(x.reshape(N, Cin).astype(mxu_dtype), n_pad)              # (n_pad, Cin)

    # lora_down (one small matmul, no base-output slab written/re-read).
    at = p["a"].T.astype(mxu_dtype)                                          # (Cin, R)
    down_p = _in_proj(x2p, at, tm=tm, out_dtype=mxu_dtype)                   # (n_pad, R)
    down = (down_p[:N].astype(jnp.float32)
            .reshape(B, H, W, R).transpose(0, 3, 1, 2))                      # (B, R, H, W)

    # TODO(synk): rfft2/irfft2 have no Pallas TPU lowering; angle/sin/cos kept in XLA on the
    # small rank-R tensors until Mosaic trig lowering is confirmed on all generations.
    fre = jnp.fft.rfft2(down, norm="backward")                               # (B, R, H, Wf)
    mag = jnp.abs(fre).reshape(B, R, S)
    pha = jnp.angle(fre).reshape(B, R, S)

    mag_out, pha_out = _spectral(
        mag, pha,
        p["wm"], p["bm"][:, None],
        p["wp1"], p["bp1"][:, None],
        p["wp2"], p["bp2"][:, None])

    mag_out = mag_out.reshape(B, R, H, Wf)
    pha_out = pha_out.reshape(B, R, H, Wf)
    real = mag_out * jnp.cos(pha_out)
    imag = mag_out * jnp.sin(pha_out)
    y = jnp.fft.irfft2(real + 1j * imag, s=(H, W), norm="backward")          # (B, R, H, W)

    y2p = _pad_rows(y.transpose(0, 2, 3, 1).reshape(N, R).astype(mxu_dtype), n_pad)

    # Fused final projection: scaling folded into lora_up weights (no constant baked into
    # the kernel), lane width zero-padded to a 128 multiple and sliced off afterwards.
    w0t = p["w0"].T
    wupt = p["bup"].T * p["scaling"]
    b0 = p["b0"]
    if cout_pad != Cout:
        w0t = jnp.pad(w0t, ((0, 0), (0, cout_pad - Cout)))
        wupt = jnp.pad(wupt, ((0, 0), (0, cout_pad - Cout)))
        b0 = jnp.pad(b0, (0, cout_pad - Cout))
    out_p = _out_proj(x2p, y2p,
                      w0t.astype(mxu_dtype), wupt.astype(mxu_dtype),
                      b0.astype(jnp.float32)[None, :], tm=tm)                # (n_pad, cout_pad)
    return out_p[:N, :Cout].reshape(B, H, W, Cout)


# ----------------------------------------------------------------------------
# Pure-JAX reference (mirrors the PyTorch forward) for a sanity check.
# ----------------------------------------------------------------------------
def reference_forward(x, p):
    B, H, W, _ = x.shape
    hp = jax.lax.Precision.HIGHEST
    out = jnp.einsum("bhwc,oc->bhwo", x, p["w0"], precision=hp) + p["b0"]
    down = jnp.einsum("bhwc,rc->bhwr", x, p["a"], precision=hp)
    d = jnp.transpose(down, (0, 3, 1, 2))
    fre = jnp.fft.rfft2(d, norm="backward")
    mag = jnp.abs(fre)
    pha = jnp.angle(fre)
    mag_out = jnp.einsum("brhw,sr->bshw", mag, p["wm"], precision=hp) + p["bm"][None, :, None, None]
    mag_res = mag_out - mag
    pool = jnp.mean(mag_res, axis=(2, 3), keepdims=True)
    pool = jax.nn.softmax(pool, axis=1)
    pha1 = pha * pool
    h = jnp.einsum("brhw,sr->bshw", pha1, p["wp1"], precision=hp) + p["bp1"][None, :, None, None]
    h = jnp.maximum(h, 0.0)
    pha1 = jnp.einsum("brhw,sr->bshw", h, p["wp2"], precision=hp) + p["bp2"][None, :, None, None]
    pha_out = pha1 + pha
    real = mag_out * jnp.cos(pha_out)
    imag = mag_out * jnp.sin(pha_out)
    y = jnp.fft.irfft2(real + 1j * imag, s=(H, W), norm="backward")
    fft_feat = jnp.transpose(y, (0, 2, 3, 1))
    lora_out = jnp.einsum("bhwr,or->bhwo", fft_feat, p["bup"], precision=hp) * p["scaling"]
    return out + lora_out


if __name__ == "__main__":
    B, H, W = 2, 16, 16
    Cin, Cout, R = 32, 32, 8
    alpha = 4                                  # scaling = alpha / rank = 0.5

    key = jax.random.PRNGKey(0)
    ks = jax.random.split(key, 12)

    def rnd(k, shape, scale):
        return jax.random.normal(k, shape, dtype=jnp.float32) * scale

    params = dict(
        w0=rnd(ks[0], (Cout, Cin), 1.0 / np.sqrt(Cin)),   # original_layer.weight
        b0=rnd(ks[1], (Cout,), 0.02),                     # original_layer.bias
        a=rnd(ks[2], (R, Cin), 1.0 / np.sqrt(Cin)),       # lora_down.weight (kaiming-ish)
        # torch inits lora_up.weight to zeros; use small nonzero values so the FFT path is exercised
        bup=rnd(ks[3], (Cout, R), 0.05),                  # lora_up.weight
        wm=rnd(ks[4], (R, R), 1.0 / np.sqrt(R)),          # mag 1x1 conv weight (squeezed)
        bm=rnd(ks[5], (R,), 0.02),
        wp1=rnd(ks[6], (R, R), 1.0 / np.sqrt(R)),         # pha conv1 (squeezed)
        bp1=rnd(ks[7], (R,), 0.02),
        wp2=rnd(ks[8], (R, R), 1.0 / np.sqrt(R)),         # pha conv2 (squeezed)
        bp2=rnd(ks[9], (R,), 0.02),
        scaling=float(alpha) / R,
    )

    x = jax.random.normal(ks[10], (B, H, W, Cin), dtype=jnp.float32)

    fwd = jax.jit(lambda xx, pp: lora_fft_forward(xx, pp))   # f32 default; bf16 for v6e/v7x
    y = fwd(x, params)
    y = jax.block_until_ready(y)

    y_ref = reference_forward(x, params)
    np.testing.assert_allclose(np.asarray(y), np.asarray(y_ref), rtol=2e-2, atol=2e-2)

    print("KERNEL_OK")
</pallas_src>

<mosaic_0001>
module attributes {stable_mosaic.version = 11 : i64} {
  func.func @_in_proj_kernel(%arg0: i32, %arg1: memref<256x32xf32, #tpu.memory_space<vmem>>, %arg2: memref<32x8xf32, #tpu.memory_space<vmem>>, %arg3: memref<256x8xf32, #tpu.memory_space<vmem>>) attributes {dimension_semantics = [#tpu.dimension_semantics<parallel>], iteration_bounds = array<i64: 2>, scalar_prefetch = 0 : i64, scratch_operands = 0 : i64, tpu.core_type = #tpu.core_type<tc>, window_params = [{transform_indices = @transform_0, window_bounds = array<i64: 256, 32>}, {pipeline_mode = #tpu.pipeline_mode<synchronous>, transform_indices = @transform_1, window_bounds = array<i64: 32, 8>}, {transform_indices = @transform_2, window_bounds = array<i64: 256, 8>}]} {
    %c0 = arith.constant 0 : index
    %c0_0 = arith.constant 0 : index
    %0 = vector.load %arg1[%c0, %c0_0] : memref<256x32xf32, #tpu.memory_space<vmem>>, vector<256x32xf32>
    %c0_1 = arith.constant 0 : index
    %c0_2 = arith.constant 0 : index
    %1 = vector.load %arg2[%c0_1, %c0_2] : memref<32x8xf32, #tpu.memory_space<vmem>>, vector<32x8xf32>
    %cst = arith.constant dense<0.000000e+00> : vector<256x8xf32>
    %2 = tpu.matmul %0, %1, %cst {dimension_numbers = #tpu.dot_dimension_numbers<[1], [0], [0], [1], [0, 0, 1, 1], [], []>} : vector<256x32xf32>, vector<32x8xf32>, vector<256x8xf32> -> vector<256x8xf32>
    %c0_3 = arith.constant 0 : index
    %c0_4 = arith.constant 0 : index
    %3 = vector.load %arg3[%c0_3, %c0_4] : memref<256x8xf32, #tpu.memory_space<vmem>>, vector<256x8xf32>
    tpu.vector_store %arg3[%c0_3, %c0_4], %2 {strides = array<i32>} : memref<256x8xf32, #tpu.memory_space<vmem>>, vector<256x8xf32>,
    return
  }
  func.func @transform_0(%arg0: i32) -> (i32, i32) {
    %c0_i32 = arith.constant 0 : i32
    %c0_i32_0 = arith.constant 0 : i32
    return %arg0, %c0_i32 : i32, i32
  }
  func.func @transform_1(%arg0: i32) -> (i32, i32) {
    %c0_i32 = arith.constant 0 : i32
    %c0_i32_0 = arith.constant 0 : i32
    %c0_i32_1 = arith.constant 0 : i32
    return %c0_i32, %c0_i32_0 : i32, i32
  }
  func.func @transform_2(%arg0: i32) -> (i32, i32) {
    %c0_i32 = arith.constant 0 : i32
    %c0_i32_0 = arith.constant 0 : i32
    return %arg0, %c0_i32 : i32, i32
  }
}

module attributes {stable_mosaic.version = 11 : i64} {
  func.func @_spectral_kernel(%arg0: i32, %arg1: memref<2x8x144xf32, #tpu.memory_space<vmem>>, %arg2: memref<2x8x144xf32, #tpu.memory_space<vmem>>, %arg3: memref<8x8xf32, #tpu.memory_space<vmem>>, %arg4: memref<8x1xf32, #tpu.memory_space<vmem>>, %arg5: memref<8x8xf32, #tpu.memory_space<vmem>>, %arg6: memref<8x1xf32, #tpu.memory_space<vmem>>, %arg7: memref<8x8xf32, #tpu.memory_space<vmem>>, %arg8: memref<8x1xf32, #tpu.memory_space<vmem>>, %arg9: memref<2x8x144xf32, #tpu.memory_space<vmem>>, %arg10: memref<2x8x144xf32, #tpu.memory_space<vmem>>) attributes {dimension_semantics = [#tpu.dimension_semantics<parallel>], iteration_bounds = array<i64: 1>, scalar_prefetch = 0 : i64, scratch_operands = 0 : i64, tpu.core_type = #tpu.core_type<tc>, window_params = [{transform_indices = @transform_0, window_bounds = array<i64: 2, 8, 144>}, {transform_indices = @transform_1, window_bounds = array<i64: 2, 8, 144>}, {pipeline_mode = #tpu.pipeline_mode<synchronous>, transform_indices = @transform_2, window_bounds = array<i64: 8, 8>}, {pipeline_mode = #tpu.pipeline_mode<synchronous>, transform_indices = @transform_3, window_bounds = array<i64: 8, 1>}, {pipeline_mode = #tpu.pipeline_mode<synchronous>, transform_indices = @transform_4, window_bounds = array<i64: 8, 8>}, {pipeline_mode = #tpu.pipeline_mode<synchronous>, transform_indices = @transform_5, window_bounds = array<i64: 8, 1>}, {pipeline_mode = #tpu.pipeline_mode<synchronous>, transform_indices = @transform_6, window_bounds = array<i64: 8, 8>}, {pipeline_mode = #tpu.pipeline_mode<synchronous>, transform_indices = @transform_7, window_bounds = array<i64: 8, 1>}, {transform_indices = @transform_8, window_bounds = array<i64: 2, 8, 144>}, {transform_indices = @transform_9, window_bounds = array<i64: 2, 8, 144>}]} {
    %c0 = arith.constant 0 : index
    %c0_0 = arith.constant 0 : index
    %0 = vector.load %arg3[%c0, %c0_0] : memref<8x8xf32, #tpu.memory_space<vmem>>, vector<8x8xf32>
    %c0_1 = arith.constant 0 : index
    %c0_2 = arith.constant 0 : index
    %1 = vector.load %arg4[%c0_1, %c0_2] : memref<8x1xf32, #tpu.memory_space<vmem>>, vector<8x1xf32>
    %c0_3 = arith.constant 0 : index
    %c0_4 = arith.constant 0 : index
    %2 = vector.load %arg5[%c0_3, %c0_4] : memref<8x8xf32, #tpu.memory_space<vmem>>, vector<8x8xf32>
    %c0_5 = arith.constant 0 : index
    %c0_6 = arith.constant 0 : index
    %3 = vector.load %arg6[%c0_5, %c0_6] : memref<8x1xf32, #tpu.memory_space<vmem>>, vector<8x1xf32>
    %c0_7 = arith.constant 0 : index
    %c0_8 = arith.constant 0 : index
    %4 = vector.load %arg7[%c0_7, %c0_8] : memref<8x8xf32, #tpu.memory_space<vmem>>, vector<8x8xf32>
    %c0_9 = arith.constant 0 : index
    %c0_10 = arith.constant 0 : index
    %5 = vector.load %arg8[%c0_9, %c0_10] : memref<8x1xf32, #tpu.memory_space<vmem>>, vector<8x1xf32>
    %c0_11 = arith.constant 0 : index
    %c0_12 = arith.constant 0 : index
    %c0_13 = arith.constant 0 : index
    %6 = vector.load %arg1[%c0_11, %c0_12, %c0_13] : memref<2x8x144xf32, #tpu.memory_space<vmem>>, vector<1x8x144xf32>
    %7 = vector.shape_cast %6 : vector<1x8x144xf32> to vector<8x144xf32>
    %c0_14 = arith.constant 0 : index
    %c0_15 = arith.constant 0 : index
    %c0_16 = arith.constant 0 : index
    %8 = vector.load %arg2[%c0_14, %c0_15, %c0_16] : memref<2x8x144xf32, #tpu.memory_space<vmem>>, vector<1x8x144xf32>
    %9 = vector.shape_cast %8 : vector<1x8x144xf32> to vector<8x144xf32>
    %cst = arith.constant dense<0.000000e+00> : vector<8x144xf32>
    %10 = tpu.matmul %0, %7, %cst {dimension_numbers = #tpu.dot_dimension_numbers<[1], [0], [0], [1], [0, 0, 1, 1], [], []>} : vector<8x8xf32>, vector<8x144xf32>, vector<8x144xf32> -> vector<8x144xf32>
    %11 = vector.broadcast %1 : vector<8x1xf32> to vector<8x144xf32>
    %12 = arith.addf %10, %11 : vector<8x144xf32>
    %13 = arith.subf %12, %7 : vector<8x144xf32>
    %cst_17 = arith.constant dense<0.000000e+00> : vector<8xf32>
    %14 = vector.multi_reduction <add>, %13, %cst_17 [1] : vector<8x144xf32> to vector<8xf32>
    %15 = vector.shape_cast %14 : vector<8xf32> to vector<8x1xf32>
    %cst_18 = arith.constant 1.440000e+02 : f32
    %16 = vector.broadcast %cst_18 : f32 to vector<8x1xf32>
    %17 = arith.divf %15, %16 : vector<8x1xf32>
    %cst_19 = arith.constant dense<0xFF800000> : vector<1xf32>
    %18 = vector.multi_reduction <maximumf>, %17, %cst_19 [0] : vector<8x1xf32> to vector<1xf32>
    %19 = vector.shape_cast %18 : vector<1xf32> to vector<1x1xf32>
    %20 = vector.broadcast %19 : vector<1x1xf32> to vector<8x1xf32>
    %21 = arith.subf %17, %20 : vector<8x1xf32>
    %22 = math.exp %21 : vector<8x1xf32>
    %cst_20 = arith.constant dense<0.000000e+00> : vector<1xf32>
    %23 = vector.multi_reduction <add>, %22, %cst_20 [0] : vector<8x1xf32> to vector<1xf32>
    %24 = vector.shape_cast %23 : vector<1xf32> to vector<1x1xf32>
    %25 = vector.broadcast %24 : vector<1x1xf32> to vector<8x1xf32>
    %26 = arith.divf %22, %25 : vector<8x1xf32>
    %27 = vector.broadcast %26 : vector<8x1xf32> to vector<8x144xf32>
    %28 = arith.mulf %9, %27 : vector<8x144xf32>
    %cst_21 = arith.constant dense<0.000000e+00> : vector<8x144xf32>
    %29 = tpu.matmul %2, %28, %cst_21 {dimension_numbers = #tpu.dot_dimension_numbers<[1], [0], [0], [1], [0, 0, 1, 1], [], []>} : vector<8x8xf32>, vector<8x144xf32>, vector<8x144xf32> -> vector<8x144xf32>
    %30 = vector.broadcast %3 : vector<8x1xf32> to vector<8x144xf32>
    %31 = arith.addf %29, %30 : vector<8x144xf32>
    %cst_22 = arith.constant 0.000000e+00 : f32
    %32 = vector.broadcast %cst_22 : f32 to vector<8x144xf32>
    %33 = arith.maximumf %31, %32 : vector<8x144xf32>
    %cst_23 = arith.constant dense<0.000000e+00> : vector<8x144xf32>
    %34 = tpu.matmul %4, %33, %cst_23 {dimension_numbers = #tpu.dot_dimension_numbers<[1], [0], [0], [1], [0, 0, 1, 1], [], []>} : vector<8x8xf32>, vector<8x144xf32>, vector<8x144xf32> -> vector<8x144xf32>
    %35 = vector.broadcast %5 : vector<8x1xf32> to vector<8x144xf32>
    %36 = arith.addf %34, %35 : vector<8x144xf32>
    %c0_24 = arith.constant 0 : index
    %c0_25 = arith.constant 0 : index
    %c0_26 = arith.constant 0 : index
    %37 = vector.load %arg9[%c0_24, %c0_25, %c0_26] : memref<2x8x144xf32, #tpu.memory_space<vmem>>, vector<1x8x144xf32>
    %38 = vector.shape_cast %37 : vector<1x8x144xf32> to vector<8x144xf32>
    %39 = vector.shape_cast %12 : vector<8x144xf32> to vector<1x8x144xf32>
    tpu.vector_store %arg9[%c0_24, %c0_25, %c0_26], %39 {strides = array<i32>} : memref<2x8x144xf32, #tpu.memory_space<vmem>>, vector<1x8x144xf32>,
    %40 = arith.addf %36, %9 : vector<8x144xf32>
    %c0_27 = arith.constant 0 : index
    %c0_28 = arith.constant 0 : index
    %c0_29 = arith.constant 0 : index
    %41 = vector.load %arg10[%c0_27, %c0_28, %c0_29] : memref<2x8x144xf32, #tpu.memory_space<vmem>>, vector<1x8x144xf32>
    %42 = vector.shape_cast %41 : vector<1x8x144xf32> to vector<8x144xf32>
    %43 = vector.shape_cast %40 : vector<8x144xf32> to vector<1x8x144xf32>
    tpu.vector_store %arg10[%c0_27, %c0_28, %c0_29], %43 {strides = array<i32>} : memref<2x8x144xf32, #tpu.memory_space<vmem>>, vector<1x8x144xf32>,
    %c1 = arith.constant 1 : index
    %c0_30 = arith.constant 0 : index
    %c0_31 = arith.constant 0 : index
    %44 = vector.load %arg1[%c1, %c0_30, %c0_31] : memref<2x8x144xf32, #tpu.memory_space<vmem>>, vector<1x8x144xf32>
    %45 = vector.shape_cast %44 : vector<1x8x144xf32> to vector<8x144xf32>
    %c1_32 = arith.constant 1 : index
    %c0_33 = arith.constant 0 : index
    %c0_34 = arith.constant 0 : index
    %46 = vector.load %arg2[%c1_32, %c0_33, %c0_34] : memref<2x8x144xf32, #tpu.memory_space<vmem>>, vector<1x8x144xf32>
    %47 = vector.shape_cast %46 : vector<1x8x144xf32> to vector<8x144xf32>
    %cst_35 = arith.constant dense<0.000000e+00> : vector<8x144xf32>
    %48 = tpu.matmul %0, %45, %cst_35 {dimension_numbers = #tpu.dot_dimension_numbers<[1], [0], [0], [1], [0, 0, 1, 1], [], []>} : vector<8x8xf32>, vector<8x144xf32>, vector<8x144xf32> -> vector<8x144xf32>
    %49 = vector.broadcast %1 : vector<8x1xf32> to vector<8x144xf32>
    %50 = arith.addf %48, %49 : vector<8x144xf32>
    %51 = arith.subf %50, %45 : vector<8x144xf32>
    %cst_36 = arith.constant dense<0.000000e+00> : vector<8xf32>
    %52 = vector.multi_reduction <add>, %51, %cst_36 [1] : vector<8x144xf32> to vector<8xf32>
    %53 = vector.shape_cast %52 : vector<8xf32> to vector<8x1xf32>
    %cst_37 = arith.constant 1.440000e+02 : f32
    %54 = vector.broadcast %cst_37 : f32 to vector<8x1xf32>
    %55 = arith.divf %53, %54 : vector<8x1xf32>
    %cst_38 = arith.constant dense<0xFF800000> : vector<1xf32>
    %56 = vector.multi_reduction <maximumf>, %55, %cst_38 [0] : vector<8x1xf32> to vector<1xf32>
    %57 = vector.shape_cast %56 : vector<1xf32> to vector<1x1xf32>
    %58 = vector.broadcast %57 : vector<1x1xf32> to vector<8x1xf32>
    %59 = arith.subf %55, %58 : vector<8x1xf32>
    %60 = math.exp %59 : vector<8x1xf32>
    %cst_39 = arith.constant dense<0.000000e+00> : vector<1xf32>
    %61 = vector.multi_reduction <add>, %60, %cst_39 [0] : vector<8x1xf32> to vector<1xf32>
    %62 = vector.shape_cast %61 : vector<1xf32> to vector<1x1xf32>
    %63 = vector.broadcast %62 : vector<1x1xf32> to vector<8x1xf32>
    %64 = arith.divf %60, %63 : vector<8x1xf32>
    %65 = vector.broadcast %64 : vector<8x1xf32> to vector<8x144xf32>
    %66 = arith.mulf %47, %65 : vector<8x144xf32>
    %cst_40 = arith.constant dense<0.000000e+00> : vector<8x144xf32>
    %67 = tpu.matmul %2, %66, %cst_40 {dimension_numbers = #tpu.dot_dimension_numbers<[1], [0], [0], [1], [0, 0, 1, 1], [], []>} : vector<8x8xf32>, vector<8x144xf32>, vector<8x144xf32> -> vector<8x144xf32>
    %68 = vector.broadcast %3 : vector<8x1xf32> to vector<8x144xf32>
    %69 = arith.addf %67, %68 : vector<8x144xf32>
    %cst_41 = arith.constant 0.000000e+00 : f32
    %70 = vector.broadcast %cst_41 : f32 to vector<8x144xf32>
    %71 = arith.maximumf %69, %70 : vector<8x144xf32>
    %cst_42 = arith.constant dense<0.000000e+00> : vector<8x144xf32>
    %72 = tpu.matmul %4, %71, %cst_42 {dimension_numbers = #tpu.dot_dimension_numbers<[1], [0], [0], [1], [0, 0, 1, 1], [], []>} : vector<8x8xf32>, vector<8x144xf32>, vector<8x144xf32> -> vector<8x144xf32>
    %73 = vector.broadcast %5 : vector<8x1xf32> to vector<8x144xf32>
    %74 = arith.addf %72, %73 : vector<8x144xf32>
    %c1_43 = arith.constant 1 : index
    %c0_44 = arith.constant 0 : index
    %c0_45 = arith.constant 0 : index
    %75 = vector.load %arg9[%c1_43, %c0_44, %c0_45] : memref<2x8x144xf32, #tpu.memory_space<vmem>>, vector<1x8x144xf32>
    %76 = vector.shape_cast %75 : vector<1x8x144xf32> to vector<8x144xf32>
    %77 = vector.shape_cast %50 : vector<8x144xf32> to vector<1x8x144xf32>
    tpu.vector_store %arg9[%c1_43, %c0_44, %c0_45], %77 {strides = array<i32>} : memref<2x8x144xf32, #tpu.memory_space<vmem>>, vector<1x8x144xf32>,
    %78 = arith.addf %74, %47 : vector<8x144xf32>
    %c1_46 = arith.constant 1 : index
    %c0_47 = arith.constant 0 : index
    %c0_48 = arith.constant 0 : index
    %79 = vector.load %arg10[%c1_46, %c0_47, %c0_48] : memref<2x8x144xf32, #tpu.memory_space<vmem>>, vector<1x8x144xf32>
    %80 = vector.shape_cast %79 : vector<1x8x144xf32> to vector<8x144xf32>
    %81 = vector.shape_cast %78 : vector<8x144xf32> to vector<1x8x144xf32>
    tpu.vector_store %arg10[%c1_46, %c0_47, %c0_48], %81 {strides = array<i32>} : memref<2x8x144xf32, #tpu.memory_space<vmem>>, vector<1x8x144xf32>,
    return
  }
  func.func @transform_0(%arg0: i32) -> (i32, i32, i32) {
    %c0_i32 = arith.constant 0 : i32
    %c0_i32_0 = arith.constant 0 : i32
    %c0_i32_1 = arith.constant 0 : i32
    return %arg0, %c0_i32, %c0_i32_0 : i32, i32, i32
  }
  func.func @transform_1(%arg0: i32) -> (i32, i32, i32) {
    %c0_i32 = arith.constant 0 : i32
    %c0_i32_0 = arith.constant 0 : i32
    %c0_i32_1 = arith.constant 0 : i32
    return %arg0, %c0_i32, %c0_i32_0 : i32, i32, i32
  }
  func.func @transform_2(%arg0: i32) -> (i32, i32) {
    %c0_i32 = arith.constant 0 : i32
    %c0_i32_0 = arith.constant 0 : i32
    %c0_i32_1 = arith.constant 0 : i32
    return %c0_i32, %c0_i32_0 : i32, i32
  }
  func.func @transform_3(%arg0: i32) -> (i32, i32) {
    %c0_i32 = arith.constant 0 : i32
    %c0_i32_0 = arith.constant 0 : i32
    %c0_i32_1 = arith.constant 0 : i32
    return %c0_i32, %c0_i32_0 : i32, i32
  }
  func.func @transform_4(%arg0: i32) -> (i32, i32) {
    %c0_i32 = arith.constant 0 : i32
    %c0_i32_0 = arith.constant 0 : i32
    %c0_i32_1 = arith.constant 0 : i32
    return %c0_i32, %c0_i32_0 : i32, i32
  }
  func.func @transform_5(%arg0: i32) -> (i32, i32) {
    %c0_i32 = arith.constant 0 : i32
    %c0_i32_0 = arith.constant 0 : i32
    %c0_i32_1 = arith.constant 0 : i32
    return %c0_i32, %c0_i32_0 : i32, i32
  }
  func.func @transform_6(%arg0: i32) -> (i32, i32) {
    %c0_i32 = arith.constant 0 : i32
    %c0_i32_0 = arith.constant 0 : i32
    %c0_i32_1 = arith.constant 0 : i32
    return %c0_i32, %c0_i32_0 : i32, i32
  }
  func.func @transform_7(%arg0: i32) -> (i32, i32) {
    %c0_i32 = arith.constant 0 : i32
    %c0_i32_0 = arith.constant 0 : i32
    %c0_i32_1 = arith.constant 0 : i32
    return %c0_i32, %c0_i32_0 : i32, i32
  }
  func.func @transform_8(%arg0: i32) -> (i32, i32, i32) {
    %c0_i32 = arith.constant 0 : i32
    %c0_i32_0 = arith.constant 0 : i32
    %c0_i32_1 = arith.constant 0 : i32
    return %arg0, %c0_i32, %c0_i32_0 : i32, i32, i32
  }
  func.func @transform_9(%arg0: i32) -> (i32, i32, i32) {
    %c0_i32 = arith.constant 0 : i32
    %c0_i32_0 = arith.constant 0 : i32
    %c0_i32_1 = arith.constant 0 : i32
    return %arg0, %c0_i32, %c0_i32_0 : i32, i32, i32
  }
}

module attributes {stable_mosaic.version = 11 : i64} {
  func.func @_out_proj_kernel(%arg0: i32, %arg1: memref<256x32xf32, #tpu.memory_space<vmem>>, %arg2: memref<256x8xf32, #tpu.memory_space<vmem>>, %arg3: memref<32x128xf32, #tpu.memory_space<vmem>>, %arg4: memref<8x128xf32, #tpu.memory_space<vmem>>, %arg5: memref<1x128xf32, #tpu.memory_space<vmem>>, %arg6: memref<256x128xf32, #tpu.memory_space<vmem>>) attributes {dimension_semantics = [#tpu.dimension_semantics<parallel>], iteration_bounds = array<i64: 2>, scalar_prefetch = 0 : i64, scratch_operands = 0 : i64, tpu.core_type = #tpu.core_type<tc>, window_params = [{transform_indices = @transform_0, window_bounds = array<i64: 256, 32>}, {transform_indices = @transform_1, window_bounds = array<i64: 256, 8>}, {pipeline_mode = #tpu.pipeline_mode<synchronous>, transform_indices = @transform_2, window_bounds = array<i64: 32, 128>}, {pipeline_mode = #tpu.pipeline_mode<synchronous>, transform_indices = @transform_3, window_bounds = array<i64: 8, 128>}, {pipeline_mode = #tpu.pipeline_mode<synchronous>, transform_indices = @transform_4, window_bounds = array<i64: 1, 128>}, {transform_indices = @transform_5, window_bounds = array<i64: 256, 128>}]} {
    %c0 = arith.constant 0 : index
    %c0_0 = arith.constant 0 : index
    %0 = vector.load %arg1[%c0, %c0_0] : memref<256x32xf32, #tpu.memory_space<vmem>>, vector<256x32xf32>
    %c0_1 = arith.constant 0 : index
    %c0_2 = arith.constant 0 : index
    %1 = vector.load %arg3[%c0_1, %c0_2] : memref<32x128xf32, #tpu.memory_space<vmem>>, vector<32x128xf32>
    %cst = arith.constant dense<0.000000e+00> : vector<256x128xf32>
    %2 = tpu.matmul %0, %1, %cst {dimension_numbers = #tpu.dot_dimension_numbers<[1], [0], [0], [1], [0, 0, 1, 1], [], []>} : vector<256x32xf32>, vector<32x128xf32>, vector<256x128xf32> -> vector<256x128xf32>
    %c0_3 = arith.constant 0 : index
    %c0_4 = arith.constant 0 : index
    %3 = vector.load %arg2[%c0_3, %c0_4] : memref<256x8xf32, #tpu.memory_space<vmem>>, vector<256x8xf32>
    %c0_5 = arith.constant 0 : index
    %c0_6 = arith.constant 0 : index
    %4 = vector.load %arg4[%c0_5, %c0_6] : memref<8x128xf32, #tpu.memory_space<vmem>>, vector<8x128xf32>
    %cst_7 = arith.constant dense<0.000000e+00> : vector<256x128xf32>
    %5 = tpu.matmul %3, %4, %cst_7 {dimension_numbers = #tpu.dot_dimension_numbers<[1], [0], [0], [1], [0, 0, 1, 1], [], []>} : vector<256x8xf32>, vector<8x128xf32>, vector<256x128xf32> -> vector<256x128xf32>
    %6 = arith.addf %2, %5 : vector<256x128xf32>
    %c0_8 = arith.constant 0 : index
    %c0_9 = arith.constant 0 : index
    %7 = vector.load %arg5[%c0_8, %c0_9] : memref<1x128xf32, #tpu.memory_space<vmem>>, vector<1x128xf32>
    %8 = vector.broadcast %7 : vector<1x128xf32> to vector<256x128xf32>
    %9 = arith.addf %6, %8 : vector<256x128xf32>
    %c0_10 = arith.constant 0 : index
    %c0_11 = arith.constant 0 : index
    %10 = vector.load %arg6[%c0_10, %c0_11] : memref<256x128xf32, #tpu.memory_space<vmem>>, vector<256x128xf32>
    tpu.vector_store %arg6[%c0_10, %c0_11], %9 {strides = array<i32>} : memref<256x128xf32, #tpu.memory_space<vmem>>, vector<256x128xf32>,
    return
  }
  func.func @transform_0(%arg0: i32) -> (i32, i32) {
    %c0_i32 = arith.constant 0 : i32
    %c0_i32_0 = arith.constant 0 : i32
    return %arg0, %c0_i32 : i32, i32
  }
  func.func @transform_1(%arg0: i32) -> (i32, i32) {
    %c0_i32 = arith.constant 0 : i32
    %c0_i32_0 = arith.constant 0 : i32
    return %arg0, %c0_i32 : i32, i32
  }
  func.func @transform_2(%arg0: i32) -> (i32, i32) {
    %c0_i32 = arith.constant 0 : i32
    %c0_i32_0 = arith.constant 0 : i32
    %c0_i32_1 = arith.constant 0 : i32
    return %c0_i32, %c0_i32_0 : i32, i32
  }
  func.func @transform_3(%arg0: i32) -> (i32, i32) {
    %c0_i32 = arith.constant 0 : i32
    %c0_i32_0 = arith.constant 0 : i32
    %c0_i32_1 = arith.constant 0 : i32
    return %c0_i32, %c0_i32_0 : i32, i32
  }
  func.func @transform_4(%arg0: i32) -> (i32, i32) {
    %c0_i32 = arith.constant 0 : i32
    %c0_i32_0 = arith.constant 0 : i32
    %c0_i32_1 = arith.constant 0 : i32
    return %c0_i32, %c0_i32_0 : i32, i32
  }
  func.func @transform_5(%arg0: i32) -> (i32, i32) {
    %c0_i32 = arith.constant 0 : i32
    %c0_i32_0 = arith.constant 0 : i32
    return %arg0, %c0_i32 : i32, i32
  }
}

</mosaic_0001>

<llo_original>
// kernel: _lambda_.3
$region0: #{_lambda_.3}
  #allocation0 [shape = 'u32[]', space=smem, size = 0x4, offset = 0x4, fixed_abs, tag = 'smem constant byte address 0x4 - core index']
  #allocation1 [shape = 'u32[144,128]{1,0:T(1,128)}', space=vmem, size = 0x12000, scoped, tag = 'internal scratch']
  %s0 = inlined_call_operand.hbm [shape: f32[512,32], index: 0, kind: input, shape index: {}]
  %s1 = inlined_call_operand.vmem [shape: f32[32,8], index: 1, kind: input, shape index: {}]
  %s2 = inlined_call_operand.vmem [shape: f32[512,8], index: 2, kind: output, shape index: {}]
  %s3 = sld [smem:[#allocation0]]
  $region45: #{_lambda_.3} parent=0
    _
  %s5 = ssub.s32 1, %s3
  %s6 = scalar_select 0, %s5, %s3
  $region1: #{_lambda_.3} parent=0
    #allocation2 [shape = 'u8[262144]{0}', space=vmem, size = 0x40000, scoped, tag = 'input window, operand 0']
    #allocation3 [shape = 's32[2]{0}', space=sflag, size = 0x8, scoped, tag = 'scoped memory for _lambda_.3']
    %7 = vsyncpa [#allocation3], 0
    %s8 = scalar_lea.sflag [#allocation3], 1
    %9 = vsyncpa %s8, 0
    loop: start=0, step=1, limit=4
    $region2: #{_lambda_.3} parent=1 // loop_pre_header
      _
    $region3: #{_lambda_.3} parent=1 // loop_header
      %s11 = sphi 0, %s15
      %p12 = scmp.ge.s32.totalorder %s11, 4
      %s21 = sphi 0, %s23
      %s24 = sphi 0, %s21
      %s25 = sphi 0, %s24
      %s41 = sphi 0, %s25
      %s45 = sphi 0, %s45
      %s47 = sphi 0, %s45
      %s48 = sphi 0, %s47
      %s62 = sphi 0, %s48
      %s68 = sphi 0, %s70
      %s71 = sphi 0, %s68
      %s72 = sphi 0, %s71
      %s88 = sphi 0, %s72
    $region4: #{_lambda_.3} parent=1 // loop_header_branch
      %14 = sbr.rel (%p12) target = $region8
    $region5: #{_lambda_.3} parent=1 // loop_body
      %s16 = ssub.s32 %s11, 1
      %s17 = ssub.s32 %s11, 2
      %s18 = sadd.s32 %s11, 1
      %s19 = ssub.s32 %s11, %s18
      %p20 = scmp.eq.s32.totalorder %s19, 0
      %s22 = sadd.s32 %s21, 1
      %s23 = scalar_select %p20, %s21, %s22
      %p26 = pneg %p20
      %p27 = scmp.eq.s32.totalorder %s11, 1
      %p28 = por %p26, %p27
      %p29 = scmp.ne.s32.totalorder %s21, %s24
      %p30 = scmp.eq.s32.totalorder %s11, 0
      %p31 = por %p29, %p30
      %p32 = scmp.ne.s32.totalorder %s21, %s24
      %p33 = scmp.eq.s32.totalorder %s16, 1
      %p34 = por %p32, %p33
      %p35 = scmp.ne.s32.totalorder %s24, %s25
      %p36 = scmp.eq.s32.totalorder %s16, 0
      %p37 = por %p35, %p36
      %p38 = scmp.ne.s32.totalorder %s24, %s25
      %p39 = scmp.eq.s32.totalorder %s17, 1
      %p40 = por %p38, %p39
      %p42 = scmp.ne.s32.totalorder %s25, %s41
      %p43 = scmp.eq.s32.totalorder %s17, 0
      %p44 = por %p42, %p43
      %s46 = sadd.s32 %s45, 1
      %p49 = scmp.eq.s32.totalorder %s11, 1
      %p50 = scmp.ne.s32.totalorder %s45, %s47
      %p51 = scmp.eq.s32.totalorder %s11, 0
      %p52 = por %p50, %p51
      %p53 = scmp.ne.s32.totalorder %s45, %s47
      %p54 = scmp.eq.s32.totalorder %s16, 1
      %p55 = por %p53, %p54
      %p56 = scmp.ne.s32.totalorder %s47, %s48
      %p57 = scmp.eq.s32.totalorder %s16, 0
      %p58 = por %p56, %p57
      %p59 = scmp.ne.s32.totalorder %s47, %s48
      %p60 = scmp.eq.s32.totalorder %s17, 1
      %p61 = por %p59, %p60
      %p63 = scmp.ne.s32.totalorder %s48, %s62
      %p64 = scmp.eq.s32.totalorder %s17, 0
      %p65 = por %p63, %p64
      %s66 = ssub.s32 %s11, %s18
      %p67 = scmp.eq.s32.totalorder %s66, 0
      %s69 = sadd.s32 %s68, 1
      %s70 = scalar_select %p67, %s68, %s69
      %p73 = pneg %p67
      %p74 = scmp.eq.s32.totalorder %s11, 1
      %p75 = por %p73, %p74
      %p76 = scmp.ne.s32.totalorder %s68, %s71
      %p77 = scmp.eq.s32.totalorder %s11, 0
      %p78 = por %p76, %p77
      %p79 = scmp.ne.s32.totalorder %s68, %s71
      %p80 = scmp.eq.s32.totalorder %s16, 1
      %p81 = por %p79, %p80
      %p82 = scmp.ne.s32.totalorder %s71, %s72
      %p83 = scmp.eq.s32.totalorder %s16, 0
      %p84 = por %p82, %p83
      %p85 = scmp.ne.s32.totalorder %s71, %s72
      %p86 = scmp.eq.s32.totalorder %s17, 1
      %p87 = por %p85, %p86
      %p89 = scmp.ne.s32.totalorder %s72, %s88
      %p90 = scmp.eq.s32.totalorder %s17, 0
      %p91 = por %p89, %p90
      %p92 = scmp.le.s32.totalorder 1, %s11
      %p93 = scmp.lt.s32.totalorder %s11, 3
      %p94 = pnand %p92, %p93
      %p95 = pneg %p94
      // Predicated region
      $region9: #{_lambda_.3} parent=5 // pred_check
        _
      $region10: #{_lambda_.3} parent=5 // pred_check_branch
        %97 = sbr.rel (%p94) target = $region12
      $region11: #{_lambda_.3} parent=5 // pred_region
        %s98 = ssub.s32 %s11, 1
        // Predicated region
        $region13: #{_lambda_.3} parent=11 // pred_check
          %p99 = pneg %p58
        $region14: #{_lambda_.3} parent=11 // pred_check_branch
          %101 = sbr.rel (%p99) target = $region16
        $region15: #{_lambda_.3} parent=11 // pred_region
          _
        $region16: #{_lambda_.3} parent=11 // pred_fallthru
          _
      $region12: #{_lambda_.3} parent=5 // pred_fallthru
        _
      %p102 = scmp.lt.s32.totalorder %s11, 2
      // Predicated region
      $region17: #{_lambda_.3} parent=5 // pred_check
        %p103 = pneg %p102
      $region18: #{_lambda_.3} parent=5 // pred_check_branch
        %105 = sbr.rel (%p103) target = $region20
      $region19: #{_lambda_.3} parent=5 // pred_region
        // Predicated region
        $region21: #{_lambda_.3} parent=19 // pred_check
          %p106 = pneg %p31
        $region22: #{_lambda_.3} parent=19 // pred_check_branch
          %108 = sbr.rel (%p106) target = $region24
        $region23: #{_lambda_.3} parent=19 // pred_region
          %s109 = sand.u32 %s21, 1
          %s110 = scalar_lea.sflag [#allocation3], %s109
          %s111 = sand.u32 %s21, 1
          %s112 = smul.addr %s111, 256
          %s113 = scalar_lea.vmem [#allocation2], %s112
          %s114 = smul.u32 32, %s11
          %s116 = ssub.s32 4096, 4096
          %117 = vsyncadd %s110, %s116
          %s118 = smul.addr %s114, 128
          %s119 = scalar_lea.hbm %s0, %s118
          %s120 = sshll.u32 %s113, 4
          %s121 = int_to_ptr.vmem [resolvable:$true] %s120
          %126 = dma.hbm_to_vmem [thread:$0]  %s119, 4096, %s121, %s110, 128, 128, 8
        $region24: #{_lambda_.3} parent=19 // pred_fallthru
          _
      $region20: #{_lambda_.3} parent=5 // pred_fallthru
        _
      %p127 = scmp.le.s32.totalorder 1, %s11
      %p128 = scmp.lt.s32.totalorder %s11, 3
      %p129 = pnand %p127, %p128
      %p130 = pneg %p129
      // Predicated region
      $region25: #{_lambda_.3} parent=5 // pred_check
        _
      $region26: #{_lambda_.3} parent=5 // pred_check_branch
        %132 = sbr.rel (%p129) target = $region28
      $region27: #{_lambda_.3} parent=5 // pred_region
        %s133 = ssub.s32 %s11, 1
        %s134 = sand.u32 %s24, 1
        %s135 = scalar_lea.sflag [#allocation3], %s134
        %s136 = sand.u32 %s24, 1
        %s137 = smul.addr %s136, 256
        %s138 = scalar_lea.vmem [#allocation2], %s137
        // Predicated region
        $region29: #{_lambda_.3} parent=27 // pred_check
          %p139 = pneg %p37
        $region30: #{_lambda_.3} parent=27 // pred_check_branch
          %141 = sbr.rel (%p139) target = $region32
        $region31: #{_lambda_.3} parent=27 // pred_region
          %142 = dma.done %s135, 4096
        $region32: #{_lambda_.3} parent=27 // pred_fallthru
          _
        %s143 = sand.u32 %s24, 1
        %s144 = scalar_lea.sflag [#allocation3], %s143
        %s145 = sand.u32 %s24, 1
        %s146 = smul.addr %s145, 256
        %s147 = scalar_lea.vmem [#allocation2], %s146
        %p148 = pneg %p37
        %p149 = pneg %p34
        %p150 = pneg %p58
        %p151 = pneg %p55
        %p152 = pneg %p84
        %p153 = pneg %p81
        %s154 = smul.u32 32, %s16
        %p155 = scmp.lt.s32.totalorder %s154, 63
        %s156 = scalar_select %p155, %s154, 63
        %s157 = smul.addr %s156, 8
        %s158 = scalar_lea.vmem %s2, %s157
        %s159 = smul.u32 32, %s16
        %s160 = smul.u32 32, %s16
        %p161 = scmp.lt.s32.totalorder %s160, 63
        %s162 = scalar_select %p161, %s160, 63
        %s163 = smul.addr %s162, 8
        %s164 = scalar_lea.vmem %s2, %s163
        %s165 = smul.u32 32, %s16
        %v166 = vld [vmem:[%s138] sm:$0xff]
        %v167 = vld [vmem:[%s138 + $0x8] sm:$0xff]
        %v168 = vld [vmem:[%s138 + $0x10] sm:$0xff]
        %v169 = vld [vmem:[%s138 + $0x18] sm:$0xff]
        %v170 = vld [vmem:[%s138 + $0x20] sm:$0xff]
        %v171 = vld [vmem:[%s138 + $0x28] sm:$0xff]
        %v172 = vld [vmem:[%s138 + $0x30] sm:$0xff]
        %v173 = vld [vmem:[%s138 + $0x38] sm:$0xff]
        %v174 = vld [vmem:[%s138 + $0x40] sm:$0xff]
        %v175 = vld [vmem:[%s138 + $0x48] sm:$0xff]
        %v176 = vld [vmem:[%s138 + $0x50] sm:$0xff]
        %v177 = vld [vmem:[%s138 + $0x58] sm:$0xff]
        %v178 = vld [vmem:[%s138 + $0x60] sm:$0xff]
        %v179 = vld [vmem:[%s138 + $0x68] sm:$0xff]
        %v180 = vld [vmem:[%s138 + $0x70] sm:$0xff]
        %v181 = vld [vmem:[%s138 + $0x78] sm:$0xff]
        %v182 = vld [vmem:[%s138 + $0x80] sm:$0xff]
        %v183 = vld [vmem:[%s138 + $0x88] sm:$0xff]
        %v184 = vld [vmem:[%s138 + $0x90] sm:$0xff]
        %v185 = vld [vmem:[%s138 + $0x98] sm:$0xff]
        %v186 = vld [vmem:[%s138 + $0xa0] sm:$0xff]
        %v187 = vld [vmem:[%s138 + $0xa8] sm:$0xff]
        %v188 = vld [vmem:[%s138 + $0xb0] sm:$0xff]
        %v189 = vld [vmem:[%s138 + $0xb8] sm:$0xff]
        %v190 = vld [vmem:[%s138 + $0xc0] sm:$0xff]
        %v191 = vld [vmem:[%s138 + $0xc8] sm:$0xff]
        %v192 = vld [vmem:[%s138 + $0xd0] sm:$0xff]
        %v193 = vld [vmem:[%s138 + $0xd8] sm:$0xff]
        %v194 = vld [vmem:[%s138 + $0xe0] sm:$0xff]
        %v195 = vld [vmem:[%s138 + $0xe8] sm:$0xff]
        %v196 = vld [vmem:[%s138 + $0xf0] sm:$0xff]
        %v197 = vld [vmem:[%s138 + $0xf8] sm:$0xff]
        %v198 = vld [vmem:[%s1] sm:$0xff]
        %v199 = vld [vmem:[%s1 + $0x8] sm:$0xff]
        %v200 = vld [vmem:[%s1 + $0x10] sm:$0xff]
        %v201 = vld [vmem:[%s1 + $0x18] sm:$0xff]
        %vm202 = vcmask 261120
        %v204 = vsel %vm202, %v166, 0
        %v207 = vsel %vm202, %v167, 0
        %v210 = vsel %vm202, %v168, 0
        %v213 = vsel %vm202, %v169, 0
        %v216 = vsel %vm202, %v170, 0
        %v219 = vsel %vm202, %v171, 0
        %v222 = vsel %vm202, %v172, 0
        %v225 = vsel %vm202, %v173, 0
        %v228 = vsel %vm202, %v174, 0
        %v231 = vsel %vm202, %v175, 0
        %v234 = vsel %vm202, %v176, 0
        %v237 = vsel %vm202, %v177, 0
        %v240 = vsel %vm202, %v178, 0
        %v243 = vsel %vm202, %v179, 0
        %v246 = vsel %vm202, %v180, 0
        %v249 = vsel %vm202, %v181, 0
        %v252 = vsel %vm202, %v182, 0
        %v255 = vsel %vm202, %v183, 0
        %v258 = vsel %vm202, %v184, 0
        %v261 = vsel %vm202, %v185, 0
        %v264 = vsel %vm202, %v186, 0
        %v267 = vsel %vm202, %v187, 0
        %v270 = vsel %vm202, %v188, 0
        %v273 = vsel %vm202, %v189, 0
        %v276 = vsel %vm202, %v190, 0
        %v279 = vsel %vm202, %v191, 0
        %v282 = vsel %vm202, %v192, 0
        %v285 = vsel %vm202, %v193, 0
        %v288 = vsel %vm202, %v194, 0
        %v291 = vsel %vm202, %v195, 0
        %v294 = vsel %vm202, %v196, 0
        %v297 = vsel %vm202, %v197, 0
        %299 = vmatprep.subr.mxu0 0.0
        %300 = vmatpush1.msra.mxu0 %v198
        %301 = vmatprep.subr.mxu0 0.0
        %302 = vmatpush1.msra.mxu0 %v199
        %303 = vmatprep.subr.mxu0 0.0
        %304 = vmatpush1.msra.mxu0 %v200
        %305 = vmatprep.subr.mxu0 0.0
        %306 = vmatpush1.msra.mxu0 %v201
        %307 = vmatprep.subr.mxu0 0.0
        %308 = vmatpush1.msra.mxu0 0.0
        %309 = vmatprep.subr.mxu0 0.0
        %310 = vmatpush1.msra.mxu0 0.0
        %311 = vmatprep.subr.mxu0 0.0
        %312 = vmatpush1.msra.mxu0 0.0
        %313 = vmatprep.subr.mxu0 0.0
        %314 = vmatpush1.msra.mxu0 0.0
        %315 = vmatprep.subr.mxu0 0.0
        %316 = vmatpush1.msra.mxu0 0.0
        %317 = vmatprep.subr.mxu0 0.0
        %318 = vmatpush1.msra.mxu0 0.0
        %319 = vmatprep.subr.mxu0 0.0
        %320 = vmatpush1.msra.mxu0 0.0
        %321 = vmatprep.subr.mxu0 0.0
        %322 = vmatpush1.msra.mxu0 0.0
        %323 = vmatprep.subr.mxu0 0.0
        %324 = vmatpush1.msra.mxu0 0.0
        %325 = vmatprep.subr.mxu0 0.0
        %326 = vmatpush1.msra.mxu0 0.0
        %327 = vmatprep.subr.mxu0 0.0
        %328 = vmatpush1.msra.mxu0 0.0
        %329 = vmatprep.subr.mxu0 0.0
        %330 = vmatpush1.msra.mxu0 0.0
        %331 = vmatprep.subr.mxu0 0.0
        %332 = vmatpush1.msra.mxu0 0.0
        %333 = vmatprep.subr.mxu0 0.0
        %334 = vmatpush1.msra.mxu0 0.0
        %335 = vmatprep.subr.mxu0 0.0
        %336 = vmatpush1.msra.mxu0 0.0
        %337 = vmatprep.subr.mxu0 0.0
        %338 = vmatpush1.msra.mxu0 0.0
        %339 = vmatprep.subr.mxu0 0.0
        %340 = vmatpush1.msra.mxu0 0.0
        %341 = vmatprep.subr.mxu0 0.0
        %342 = vmatpush1.msra.mxu0 0.0
        %343 = vmatprep.subr.mxu0 0.0
        %344 = vmatpush1.msra.mxu0 0.0
        %345 = vmatprep.subr.mxu0 0.0
        %346 = vmatpush1.msra.mxu0 0.0
        %347 = vmatprep.subr.mxu0 0.0
        %348 = vmatpush1.msra.mxu0 0.0
        %349 = vmatprep.subr.mxu0 0.0
        %350 = vmatpush1.msra.mxu0 0.0
        %351 = vmatprep.subr.mxu0 0.0
        %352 = vmatpush1.msra.mxu0 0.0
        %353 = vmatprep.subr.mxu0 0.0
        %354 = vmatpush1.msra.mxu0 0.0
        %355 = vmatprep.subr.mxu0 0.0
        %356 = vmatpush1.msra.mxu0 0.0
        %357 = vmatprep.subr.mxu0 0.0
        %358 = vmatpush1.msra.mxu0 0.0
        %359 = vmatprep.subr.mxu0 0.0
        %360 = vmatpush1.msra.mxu0 0.0
        %361 = vmatprep.subr.mxu0 0.0
        %362 = vmatpush1.msra.mxu0 0.0
        %363 = vmatprep.mubr.f32.mxu0 0.0
        %364 = vmatmul.mubr.f32.gmra.mrb[0].mxu0 %v204
        %v365 = vpop.f32.mrb[0].mxu0
        %v366 = vadd.f32 0.0, %v365
        %v367 = vpop.f32.mrb[0].mxu0
        %368 = vmatprep.mubr.f32.mxu0 0.0
        %369 = vmatmul.mubr.f32.gmra.mrb[0].mxu0 %v207
        %v370 = vpop.f32.mrb[0].mxu0
        %v371 = vadd.f32 0.0, %v370
        %v372 = vpop.f32.mrb[0].mxu0
        %373 = vmatprep.mubr.f32.mxu0 0.0
        %374 = vmatmul.mubr.f32.gmra.mrb[0].mxu0 %v210
        %v375 = vpop.f32.mrb[0].mxu0
        %v376 = vadd.f32 0.0, %v375
        %v377 = vpop.f32.mrb[0].mxu0
        %378 = vmatprep.mubr.f32.mxu0 0.0
        %379 = vmatmul.mubr.f32.gmra.mrb[0].mxu0 %v213
        %v380 = vpop.f32.mrb[0].mxu0
        %v381 = vadd.f32 0.0, %v380
        %v382 = vpop.f32.mrb[0].mxu0
        %383 = vmatprep.mubr.f32.mxu0 0.0
        %384 = vmatmul.mubr.f32.gmra.mrb[0].mxu0 %v216
        %v385 = vpop.f32.mrb[0].mxu0
        %v386 = vadd.f32 0.0, %v385
        %v387 = vpop.f32.mrb[0].mxu0
        %388 = vmatprep.mubr.f32.mxu0 0.0
        %389 = vmatmul.mubr.f32.gmra.mrb[0].mxu0 %v219
        %v390 = vpop.f32.mrb[0].mxu0
        %v391 = vadd.f32 0.0, %v390
        %v392 = vpop.f32.mrb[0].mxu0
        %393 = vmatprep.mubr.f32.mxu0 0.0
        %394 = vmatmul.mubr.f32.gmra.mrb[0].mxu0 %v222
        %v395 = vpop.f32.mrb[0].mxu0
        %v396 = vadd.f32 0.0, %v395
        %v397 = vpop.f32.mrb[0].mxu0
        %398 = vmatprep.mubr.f32.mxu0 0.0
        %399 = vmatmul.mubr.f32.gmra.mrb[0].mxu0 %v225
        %v400 = vpop.f32.mrb[0].mxu0
        %v401 = vadd.f32 0.0, %v400
        %v402 = vpop.f32.mrb[0].mxu0
        %403 = vmatprep.mubr.f32.mxu0 0.0
        %404 = vmatmul.mubr.f32.gmra.mrb[0].mxu0 %v228
        %v405 = vpop.f32.mrb[0].mxu0
        %v406 = vadd.f32 0.0, %v405
        %v407 = vpop.f32.mrb[0].mxu0
        %408 = vmatprep.mubr.f32.mxu0 0.0
        %409 = vmatmul.mubr.f32.gmra.mrb[0].mxu0 %v231
        %v410 = vpop.f32.mrb[0].mxu0
        %v411 = vadd.f32 0.0, %v410
        %v412 = vpop.f32.mrb[0].mxu0
        %413 = vmatprep.mubr.f32.mxu0 0.0
        %414 = vmatmul.mubr.f32.gmra.mrb[0].mxu0 %v234
        %v415 = vpop.f32.mrb[0].mxu0
        %v416 = vadd.f32 0.0, %v415
        %v417 = vpop.f32.mrb[0].mxu0
        %418 = vmatprep.mubr.f32.mxu0 0.0
        %419 = vmatmul.mubr.f32.gmra.mrb[0].mxu0 %v237
        %v420 = vpop.f32.mrb[0].mxu0
        %v421 = vadd.f32 0.0, %v420
        %v422 = vpop.f32.mrb[0].mxu0
        %423 = vmatprep.mubr.f32.mxu0 0.0
        %424 = vmatmul.mubr.f32.gmra.mrb[0].mxu0 %v240
        %v425 = vpop.f32.mrb[0].mxu0
        %v426 = vadd.f32 0.0, %v425
        %v427 = vpop.f32.mrb[0].mxu0
        %428 = vmatprep.mubr.f32.mxu0 0.0
        %429 = vmatmul.mubr.f32.gmra.mrb[0].mxu0 %v243
        %v430 = vpop.f32.mrb[0].mxu0
        %v431 = vadd.f32 0.0, %v430
        %v432 = vpop.f32.mrb[0].mxu0
        %433 = vmatprep.mubr.f32.mxu0 0.0
        %434 = vmatmul.mubr.f32.gmra.mrb[0].mxu0 %v246
        %v435 = vpop.f32.mrb[0].mxu0
        %v436 = vadd.f32 0.0, %v435
        %v437 = vpop.f32.mrb[0].mxu0
        %438 = vmatprep.mubr.f32.mxu0 0.0
        %439 = vmatmul.mubr.f32.gmra.mrb[0].mxu0 %v249
        %v440 = vpop.f32.mrb[0].mxu0
        %v441 = vadd.f32 0.0, %v440
        %v442 = vpop.f32.mrb[0].mxu0
        %443 = vmatprep.mubr.f32.mxu0 0.0
        %444 = vmatmul.mubr.f32.gmra.mrb[0].mxu0 %v252
        %v445 = vpop.f32.mrb[0].mxu0
        %v446 = vadd.f32 0.0, %v445
        %v447 = vpop.f32.mrb[0].mxu0
        %448 = vmatprep.mubr.f32.mxu0 0.0
        %449 = vmatmul.mubr.f32.gmra.mrb[0].mxu0 %v255
        %v450 = vpop.f32.mrb[0].mxu0
        %v451 = vadd.f32 0.0, %v450
        %v452 = vpop.f32.mrb[0].mxu0
        %453 = vmatprep.mubr.f32.mxu0 0.0
        %454 = vmatmul.mubr.f32.gmra.mrb[0].mxu0 %v258
        %v455 = vpop.f32.mrb[0].mxu0
        %v456 = vadd.f32 0.0, %v455
        %v457 = vpop.f32.mrb[0].mxu0
        %458 = vmatprep.mubr.f32.mxu0 0.0
        %459 = vmatmul.mubr.f32.gmra.mrb[0].mxu0 %v261
        %v460 = vpop.f32.mrb[0].mxu0
        %v461 = vadd.f32 0.0, %v460
        %v462 = vpop.f32.mrb[0].mxu0
        %463 = vmatprep.mubr.f32.mxu0 0.0
        %464 = vmatmul.mubr.f32.gmra.mrb[0].mxu0 %v264
        %v465 = vpop.f32.mrb[0].mxu0
        %v466 = vadd.f32 0.0, %v465
        %v467 = vpop.f32.mrb[0].mxu0
        %468 = vmatprep.mubr.f32.mxu0 0.0
        %469 = vmatmul.mubr.f32.gmra.mrb[0].mxu0 %v267
        %v470 = vpop.f32.mrb[0].mxu0
        %v471 = vadd.f32 0.0, %v470
        %v472 = vpop.f32.mrb[0].mxu0
        %473 = vmatprep.mubr.f32.mxu0 0.0
        %474 = vmatmul.mubr.f32.gmra.mrb[0].mxu0 %v270
        %v475 = vpop.f32.mrb[0].mxu0
        %v476 = vadd.f32 0.0, %v475
        %v477 = vpop.f32.mrb[0].mxu0
        %478 = vmatprep.mubr.f32.mxu0 0.0
        %479 = vmatmul.mubr.f32.gmra.mrb[0].mxu0 %v273
        %v480 = vpop.f32.mrb[0].mxu0
        %v481 = vadd.f32 0.0, %v480
        %v482 = vpop.f32.mrb[0].mxu0
        %483 = vmatprep.mubr.f32.mxu0 0.0
        %484 = vmatmul.mubr.f32.gmra.mrb[0].mxu0 %v276
        %v485 = vpop.f32.mrb[0].mxu0
        %v486 = vadd.f32 0.0, %v485
        %v487 = vpop.f32.mrb[0].mxu0
        %488 = vmatprep.mubr.f32.mxu0 0.0
        %489 = vmatmul.mubr.f32.gmra.mrb[0].mxu0 %v279
        %v490 = vpop.f32.mrb[0].mxu0
        %v491 = vadd.f32 0.0, %v490
        %v492 = vpop.f32.mrb[0].mxu0
        %493 = vmatprep.mubr.f32.mxu0 0.0
        %494 = vmatmul.mubr.f32.gmra.mrb[0].mxu0 %v282
        %v495 = vpop.f32.mrb[0].mxu0
        %v496 = vadd.f32 0.0, %v495
        %v497 = vpop.f32.mrb[0].mxu0
        %498 = vmatprep.mubr.f32.mxu0 0.0
        %499 = vmatmul.mubr.f32.gmra.mrb[0].mxu0 %v285
        %v500 = vpop.f32.mrb[0].mxu0
        %v501 = vadd.f32 0.0, %v500
        %v502 = vpop.f32.mrb[0].mxu0
        %503 = vmatprep.mubr.f32.mxu0 0.0
        %504 = vmatmul.mubr.f32.gmra.mrb[0].mxu0 %v288
        %v505 = vpop.f32.mrb[0].mxu0
        %v506 = vadd.f32 0.0, %v505
        %v507 = vpop.f32.mrb[0].mxu0
        %508 = vmatprep.mubr.f32.mxu0 0.0
        %509 = vmatmul.mubr.f32.gmra.mrb[0].mxu0 %v291
        %v510 = vpop.f32.mrb[0].mxu0
        %v511 = vadd.f32 0.0, %v510
        %v512 = vpop.f32.mrb[0].mxu0
        %513 = vmatprep.mubr.f32.mxu0 0.0
        %514 = vmatmul.mubr.f32.gmra.mrb[0].mxu0 %v294
        %v515 = vpop.f32.mrb[0].mxu0
        %v516 = vadd.f32 0.0, %v515
        %v517 = vpop.f32.mrb[0].mxu0
        %518 = vmatprep.mubr.f32.mxu0 0.0
        %519 = vmatmul.mubr.f32.gmra.mrb[0].mxu0 %v297
        %v520 = vpop.f32.mrb[0].mxu0
        %v521 = vadd.f32 0.0, %v520
        %v522 = vpop.f32.mrb[0].mxu0
        %523 = vdwg.mxu0
        %vm524 = vcmask 64512
        %525 = vst.msk [vmem:[%s164] sm:$0xff] %vm524, %v366
        %526 = vst.msk [vmem:[%s164 + $0x8] sm:$0xff] %vm524, %v371
        %527 = vst.msk [vmem:[%s164 + $0x10] sm:$0xff] %vm524, %v376
        %528 = vst.msk [vmem:[%s164 + $0x18] sm:$0xff] %vm524, %v381
        %529 = vst.msk [vmem:[%s164 + $0x20] sm:$0xff] %vm524, %v386
        %530 = vst.msk [vmem:[%s164 + $0x28] sm:$0xff] %vm524, %v391
        %531 = vst.msk [vmem:[%s164 + $0x30] sm:$0xff] %vm524, %v396
        %532 = vst.msk [vmem:[%s164 + $0x38] sm:$0xff] %vm524, %v401
        %533 = vst.msk [vmem:[%s164 + $0x40] sm:$0xff] %vm524, %v406
        %534 = vst.msk [vmem:[%s164 + $0x48] sm:$0xff] %vm524, %v411
        %535 = vst.msk [vmem:[%s164 + $0x50] sm:$0xff] %vm524, %v416
        %536 = vst.msk [vmem:[%s164 + $0x58] sm:$0xff] %vm524, %v421
        %537 = vst.msk [vmem:[%s164 + $0x60] sm:$0xff] %vm524, %v426
        %538 = vst.msk [vmem:[%s164 + $0x68] sm:$0xff] %vm524, %v431
        %539 = vst.msk [vmem:[%s164 + $0x70] sm:$0xff] %vm524, %v436
        %540 = vst.msk [vmem:[%s164 + $0x78] sm:$0xff] %vm524, %v441
        %541 = vst.msk [vmem:[%s164 + $0x80] sm:$0xff] %vm524, %v446
        %542 = vst.msk [vmem:[%s164 + $0x88] sm:$0xff] %vm524, %v451
        %543 = vst.msk [vmem:[%s164 + $0x90] sm:$0xff] %vm524, %v456
        %544 = vst.msk [vmem:[%s164 + $0x98] sm:$0xff] %vm524, %v461
        %545 = vst.msk [vmem:[%s164 + $0xa0] sm:$0xff] %vm524, %v466
        %546 = vst.msk [vmem:[%s164 + $0xa8] sm:$0xff] %vm524, %v471
        %547 = vst.msk [vmem:[%s164 + $0xb0] sm:$0xff] %vm524, %v476
        %548 = vst.msk [vmem:[%s164 + $0xb8] sm:$0xff] %vm524, %v481
        %549 = vst.msk [vmem:[%s164 + $0xc0] sm:$0xff] %vm524, %v486
        %550 = vst.msk [vmem:[%s164 + $0xc8] sm:$0xff] %vm524, %v491
        %551 = vst.msk [vmem:[%s164 + $0xd0] sm:$0xff] %vm524, %v496
        %552 = vst.msk [vmem:[%s164 + $0xd8] sm:$0xff] %vm524, %v501
        %553 = vst.msk [vmem:[%s164 + $0xe0] sm:$0xff] %vm524, %v506
        %554 = vst.msk [vmem:[%s164 + $0xe8] sm:$0xff] %vm524, %v511
        %555 = vst.msk [vmem:[%s164 + $0xf0] sm:$0xff] %vm524, %v516
        %556 = vst.msk [vmem:[%s164 + $0xf8] sm:$0xff] %vm524, %v521
        %s557 = smul.u32 32, %s16
        %p558 = scmp.lt.s32.totalorder %s557, 63
        %s559 = scalar_select %p558, %s557, 63
        %s560 = smul.addr %s559, 8
        %s561 = scalar_lea.vmem %s2, %s560
        // Predicated region
        $region33: #{_lambda_.3} parent=27 // pred_check
          %p562 = pneg %p81
        $region34: #{_lambda_.3} parent=27 // pred_check_branch
          %564 = sbr.rel (%p562) target = $region36
        $region35: #{_lambda_.3} parent=27 // pred_region
          %s565 = smul.u32 32, %s16
        $region36: #{_lambda_.3} parent=27 // pred_fallthru
          _
      $region28: #{_lambda_.3} parent=5 // pred_fallthru
        _
      %p566 = scmp.le.s32.totalorder 2, %s11
      // Predicated region
      $region37: #{_lambda_.3} parent=5 // pred_check
        %p567 = pneg %p566
      $region38: #{_lambda_.3} parent=5 // pred_check_branch
        %569 = sbr.rel (%p567) target = $region40
      $region39: #{_lambda_.3} parent=5 // pred_region
        %s570 = ssub.s32 %s11, 2
        // Predicated region
        $region41: #{_lambda_.3} parent=39 // pred_check
          %p571 = pneg %p87
        $region42: #{_lambda_.3} parent=39 // pred_check_branch
          %573 = sbr.rel (%p571) target = $region44
        $region43: #{_lambda_.3} parent=39 // pred_region
          %s574 = smul.u32 32, %s17
          %p575 = scmp.lt.s32.totalorder %s574, 63
          %s576 = scalar_select %p575, %s574, 63
          %s577 = smul.addr %s576, 8
          %s578 = scalar_lea.vmem %s2, %s577
        $region44: #{_lambda_.3} parent=39 // pred_fallthru
          _
      $region40: #{_lambda_.3} parent=5 // pred_fallthru
        _
    $region6: #{_lambda_.3} parent=1 // loop_footer
      %s15 = sadd.s32 1, %s11
    $region7: #{_lambda_.3} parent=1 // loop_footer_branch
      %10 = sbr.rel target = $region3
    $region8: #{_lambda_.3} parent=1 // loop_exit
      _
    %579 = vsyncpa [#allocation3], 1
    %s580 = scalar_lea.sflag [#allocation3], 1
    %581 = vsyncpa %s580, 1

// kernel: _lambda_.4
$region0: #{_lambda_.4}
  #allocation0 [shape = 'u32[]', space=smem, size = 0x4, offset = 0x4, fixed_abs, tag = 'smem constant byte address 0x4 - core index']
  #allocation1 [shape = 'u32[144,128]{1,0:T(1,128)}', space=vmem, size = 0x12000, scoped, tag = 'internal scratch']
  %s0 = inlined_call_operand.vmem [shape: f32[2,8,144], index: 0, kind: input, shape index: {}]
  %s1 = inlined_call_operand.vmem [shape: f32[2,8,144], index: 1, kind: input, shape index: {}]
  %s2 = inlined_call_operand.vmem [shape: f32[8,8], index: 2, kind: input, shape index: {}]
  %s3 = inlined_call_operand.vmem [shape: f32[8,1], index: 3, kind: input, shape index: {}]
  %s4 = inlined_call_operand.vmem [shape: f32[8,8], index: 4, kind: input, shape index: {}]
  %s5 = inlined_call_operand.vmem [shape: f32[8,1], index: 5, kind: input, shape index: {}]
  %s6 = inlined_call_operand.vmem [shape: f32[8,8], index: 6, kind: input, shape index: {}]
  %s7 = inlined_call_operand.vmem [shape: f32[8,1], index: 7, kind: input, shape index: {}]
  %s8 = inlined_call_operand.vmem [shape: f32[2,8,144], index: 8, kind: output, shape index: {0}]
  %s9 = inlined_call_operand.vmem [shape: f32[2,8,144], index: 9, kind: output, shape index: {1}]
  %10 = xla_tuple %s8, %s9
  %s11 = sld [smem:[#allocation0]]
  $region50: #{_lambda_.4} parent=0
    _
  %s13 = ssub.s32 1, %s11
  %s14 = scalar_select 0, %s13, %s11
  // Predicated region
  $region2: #{_lambda_.4} parent=0 // pred_check
    _
  $region3: #{_lambda_.4} parent=0 // pred_check_branch
    %16 = sbr.rel (0) target = $region5
  $region4: #{_lambda_.4} parent=0 // pred_region
    _
  $region5: #{_lambda_.4} parent=0 // pred_fallthru
    _
  // Predicated region
  $region6: #{_lambda_.4} parent=0 // pred_check
    _
  $region7: #{_lambda_.4} parent=0 // pred_check_branch
    %18 = sbr.rel (0) target = $region9
  $region8: #{_lambda_.4} parent=0 // pred_region
    _
  $region9: #{_lambda_.4} parent=0 // pred_fallthru
    _
  // Predicated region
  $region10: #{_lambda_.4} parent=0 // pred_check
    _
  $region11: #{_lambda_.4} parent=0 // pred_check_branch
    %20 = sbr.rel (0) target = $region13
  $region12: #{_lambda_.4} parent=0 // pred_region
    _
  $region13: #{_lambda_.4} parent=0 // pred_fallthru
    _
  // Predicated region
  $region14: #{_lambda_.4} parent=0 // pred_check
    _
  $region15: #{_lambda_.4} parent=0 // pred_check_branch
    %22 = sbr.rel (0) target = $region17
  $region16: #{_lambda_.4} parent=0 // pred_region
    _
  $region17: #{_lambda_.4} parent=0 // pred_fallthru
    _
  // Predicated region
  $region18: #{_lambda_.4} parent=0 // pred_check
    _
  $region19: #{_lambda_.4} parent=0 // pred_check_branch
    %24 = sbr.rel (0) target = $region21
  $region20: #{_lambda_.4} parent=0 // pred_region
    _
  $region21: #{_lambda_.4} parent=0 // pred_fallthru
    _
  // Predicated region
  $region22: #{_lambda_.4} parent=0 // pred_check
    _
  $region23: #{_lambda_.4} parent=0 // pred_check_branch
    %26 = sbr.rel (0) target = $region25
  $region24: #{_lambda_.4} parent=0 // pred_region
    _
  $region25: #{_lambda_.4} parent=0 // pred_fallthru
    _
  // Predicated region
  $region26: #{_lambda_.4} parent=0 // pred_check
    _
  $region27: #{_lambda_.4} parent=0 // pred_check_branch
    %28 = sbr.rel (0) target = $region29
  $region28: #{_lambda_.4} parent=0 // pred_region
    _
  $region29: #{_lambda_.4} parent=0 // pred_fallthru
    _
  // Predicated region
  $region30: #{_lambda_.4} parent=0 // pred_check
    _
  $region31: #{_lambda_.4} parent=0 // pred_check_branch
    %30 = sbr.rel (0) target = $region33
  $region32: #{_lambda_.4} parent=0 // pred_region
    _
  $region33: #{_lambda_.4} parent=0 // pred_fallthru
    _
  %v31 = vld [vmem:[%s2] sm:$0xff]
  %v32 = vld [vmem:[%s3] sm:$0xff]
  %v33 = vld [vmem:[%s4] sm:$0xff]
  %v34 = vld [vmem:[%s5] sm:$0xff]
  %v35 = vld [vmem:[%s6] sm:$0xff]
  %v36 = vld [vmem:[%s7] sm:$0xff]
  %v37 = vld [vmem:[%s0] sm:$0xff]
  %v38 = vld [vmem:[%s0 + $0x8] sm:$0xff]
  %v39 = vld [vmem:[%s1] sm:$0xff]
  %v40 = vld [vmem:[%s1 + $0x8] sm:$0xff]
  %42 = vset.pattern.permute.xlu0 0
  %43 = vperm.xlu0 %42, %v32
  %v44 = vpop.permute.xlu0 %43
  %vm46 = vcmask 64512
  %v48 = vsel %vm46, %v31, 0
  %50 = vmatprep.subr.mxu0 %v38
  %51 = vmatpush1.msra.mxu0 %v37
  %52 = vmatprep.subr.mxu0 0.0
  %53 = vmatpush1.msra.mxu0 0.0
  %54 = vmatprep.subr.mxu0 0.0
  %55 = vmatpush1.msra.mxu0 0.0
  %56 = vmatprep.subr.mxu0 0.0
  %57 = vmatpush1.msra.mxu0 0.0
  %58 = vmatprep.subr.mxu0 0.0
  %59 = vmatpush1.msra.mxu0 0.0
  %60 = vmatprep.subr.mxu0 0.0
  %61 = vmatpush1.msra.mxu0 0.0
  %62 = vmatprep.subr.mxu0 0.0
  %63 = vmatpush1.msra.mxu0 0.0
  %64 = vmatprep.subr.mxu0 0.0
  %65 = vmatpush1.msra.mxu0 0.0
  %66 = vmatprep.subr.mxu0 0.0
  %67 = vmatpush1.msra.mxu0 0.0
  %68 = vmatprep.subr.mxu0 0.0
  %69 = vmatpush1.msra.mxu0 0.0
  %70 = vmatprep.subr.mxu0 0.0
  %71 = vmatpush1.msra.mxu0 0.0
  %72 = vmatprep.subr.mxu0 0.0
  %73 = vmatpush1.msra.mxu0 0.0
  %74 = vmatprep.subr.mxu0 0.0
  %75 = vmatpush1.msra.mxu0 0.0
  %76 = vmatprep.subr.mxu0 0.0
  %77 = vmatpush1.msra.mxu0 0.0
  %78 = vmatprep.subr.mxu0 0.0
  %79 = vmatpush1.msra.mxu0 0.0
  %80 = vmatprep.subr.mxu0 0.0
  %81 = vmatpush1.msra.mxu0 0.0
  %82 = vmatprep.subr.mxu0 0.0
  %83 = vmatpush1.msra.mxu0 0.0
  %84 = vmatprep.subr.mxu0 0.0
  %85 = vmatpush1.msra.mxu0 0.0
  %86 = vmatprep.subr.mxu0 0.0
  %87 = vmatpush1.msra.mxu0 0.0
  %88 = vmatprep.subr.mxu0 0.0
  %89 = vmatpush1.msra.mxu0 0.0
  %90 = vmatprep.subr.mxu0 0.0
  %91 = vmatpush1.msra.mxu0 0.0
  %92 = vmatprep.subr.mxu0 0.0
  %93 = vmatpush1.msra.mxu0 0.0
  %94 = vmatprep.subr.mxu0 0.0
  %95 = vmatpush1.msra.mxu0 0.0
  %96 = vmatprep.subr.mxu0 0.0
  %97 = vmatpush1.msra.mxu0 0.0
  %98 = vmatprep.subr.mxu0 0.0
  %99 = vmatpush1.msra.mxu0 0.0
  %100 = vmatprep.subr.mxu0 0.0
  %101 = vmatpush1.msra.mxu0 0.0
  %102 = vmatprep.subr.mxu0 0.0
  %103 = vmatpush1.msra.mxu0 0.0
  %104 = vmatprep.subr.mxu0 0.0
  %105 = vmatpush1.msra.mxu0 0.0
  %106 = vmatprep.subr.mxu0 0.0
  %107 = vmatpush1.msra.mxu0 0.0
  %108 = vmatprep.subr.mxu0 0.0
  %109 = vmatpush1.msra.mxu0 0.0
  %110 = vmatprep.subr.mxu0 0.0
  %111 = vmatpush1.msra.mxu0 0.0
  %112 = vmatprep.subr.mxu0 0.0
  %113 = vmatpush1.msra.mxu0 0.0
  %114 = vmatprep.mubr.f32.mxu0 0.0
  %115 = vmatmul.mubr.f32.gmra.mrb[0].mxu0 %v48
  %v116 = vpop.f32.mrb[0].mxu0
  %v117 = vadd.f32 %v44, %v116
  %v118 = vpop.f32.mrb[0].mxu0
  %v119 = vadd.f32 %v44, %v118
  %120 = vdwg.mxu0
  %v121 = vsub.f32 %v117, %v37
  %v122 = vsub.f32 %v119, %v38
  %vm123 = vcmask 130048
  %v124 = vsel %vm123, %v122, 0.0
  %v125 = vadd.f32 %v121, %v124
  %126 = vadd.xlane.f32.xlu0 %v125
  %v127 = vpop.xlane.xlu0 %126
  %v128 = vrcp.pop 144.0
  %v129 = vmul.f32 %v127, %v128
  %v130 = vrot.slane %v129, 4
  %v131 = vmax.f32 %v129, %v130
  %v132 = vrot.slane %v131, 2
  %v133 = vmax.f32 %v131, %v132
  %v134 = vrot.slane %v133, 1
  %v135 = vmax.f32 %v133, %v134
  %v136 = vsub.f32 %v129, %v135
  %v137 = vmul.f32 %v136, 1.442695
  %v138 = vpow.pop %v137
  %v139 = vrot.slane %v138, 4
  %v140 = vadd.f32 %v138, %v139
  %v141 = vrot.slane %v140, 2
  %v142 = vadd.f32 %v140, %v141
  %v143 = vrot.slane %v142, 1
  %v144 = vadd.f32 %v142, %v143
  %v145 = vrcp.pop %v144
  %v146 = vmul.f32 %v138, %v145
  %v147 = vmul.f32 %v39, %v146
  %v148 = vmul.f32 %v40, %v146
  %150 = vset.pattern.permute.xlu0 0
  %151 = vperm.xlu0 %150, %v34
  %v152 = vpop.permute.xlu0 %151
  %v155 = vsel %vm46, %v33, 0
  %157 = vmatprep.subr.mxu0 %v148
  %158 = vmatpush1.msra.mxu0 %v147
  %159 = vmatprep.subr.mxu0 0.0
  %160 = vmatpush1.msra.mxu0 0.0
  %161 = vmatprep.subr.mxu0 0.0
  %162 = vmatpush1.msra.mxu0 0.0
  %163 = vmatprep.subr.mxu0 0.0
  %164 = vmatpush1.msra.mxu0 0.0
  %165 = vmatprep.subr.mxu0 0.0
  %166 = vmatpush1.msra.mxu0 0.0
  %167 = vmatprep.subr.mxu0 0.0
  %168 = vmatpush1.msra.mxu0 0.0
  %169 = vmatprep.subr.mxu0 0.0
  %170 = vmatpush1.msra.mxu0 0.0
  %171 = vmatprep.subr.mxu0 0.0
  %172 = vmatpush1.msra.mxu0 0.0
  %173 = vmatprep.subr.mxu0 0.0
  %174 = vmatpush1.msra.mxu0 0.0
  %175 = vmatprep.subr.mxu0 0.0
  %176 = vmatpush1.msra.mxu0 0.0
  %177 = vmatprep.subr.mxu0 0.0
  %178 = vmatpush1.msra.mxu0 0.0
  %179 = vmatprep.subr.mxu0 0.0
  %180 = vmatpush1.msra.mxu0 0.0
  %181 = vmatprep.subr.mxu0 0.0
  %182 = vmatpush1.msra.mxu0 0.0
  %183 = vmatprep.subr.mxu0 0.0
  %184 = vmatpush1.msra.mxu0 0.0
  %185 = vmatprep.subr.mxu0 0.0
  %186 = vmatpush1.msra.mxu0 0.0
  %187 = vmatprep.subr.mxu0 0.0
  %188 = vmatpush1.msra.mxu0 0.0
  %189 = vmatprep.subr.mxu0 0.0
  %190 = vmatpush1.msra.mxu0 0.0
  %191 = vmatprep.subr.mxu0 0.0
  %192 = vmatpush1.msra.mxu0 0.0
  %193 = vmatprep.subr.mxu0 0.0
  %194 = vmatpush1.msra.mxu0 0.0
  %195 = vmatprep.subr.mxu0 0.0
  %196 = vmatpush1.msra.mxu0 0.0
  %197 = vmatprep.subr.mxu0 0.0
  %198 = vmatpush1.msra.mxu0 0.0
  %199 = vmatprep.subr.mxu0 0.0
  %200 = vmatpush1.msra.mxu0 0.0
  %201 = vmatprep.subr.mxu0 0.0
  %202 = vmatpush1.msra.mxu0 0.0
  %203 = vmatprep.subr.mxu0 0.0
  %204 = vmatpush1.msra.mxu0 0.0
  %205 = vmatprep.subr.mxu0 0.0
  %206 = vmatpush1.msra.mxu0 0.0
  %207 = vmatprep.subr.mxu0 0.0
  %208 = vmatpush1.msra.mxu0 0.0
  %209 = vmatprep.subr.mxu0 0.0
  %210 = vmatpush1.msra.mxu0 0.0
  %211 = vmatprep.subr.mxu0 0.0
  %212 = vmatpush1.msra.mxu0 0.0
  %213 = vmatprep.subr.mxu0 0.0
  %214 = vmatpush1.msra.mxu0 0.0
  %215 = vmatprep.subr.mxu0 0.0
  %216 = vmatpush1.msra.mxu0 0.0
  %217 = vmatprep.subr.mxu0 0.0
  %218 = vmatpush1.msra.mxu0 0.0
  %219 = vmatprep.subr.mxu0 0.0
  %220 = vmatpush1.msra.mxu0 0.0
  %221 = vmatprep.mubr.f32.mxu0 0.0
  %222 = vmatmul.mubr.f32.gmra.mrb[0].mxu0 %v155
  %v223 = vpop.f32.mrb[0].mxu0
  %v224 = vadd.f32 %v152, %v223
  %v225 = vpop.f32.mrb[0].mxu0
  %v226 = vadd.f32 %v152, %v225
  %227 = vdwg.mxu0
  %v228 = vmax.f32 %v224, 0.0
  %v229 = vmax.f32 %v226, 0.0
  %231 = vset.pattern.permute.xlu0 0
  %232 = vperm.xlu0 %231, %v36
  %v233 = vpop.permute.xlu0 %232
  %v236 = vsel %vm46, %v35, 0
  %238 = vmatprep.subr.mxu0 %v229
  %239 = vmatpush1.msra.mxu0 %v228
  %240 = vmatprep.subr.mxu0 0.0
  %241 = vmatpush1.msra.mxu0 0.0
  %242 = vmatprep.subr.mxu0 0.0
  %243 = vmatpush1.msra.mxu0 0.0
  %244 = vmatprep.subr.mxu0 0.0
  %245 = vmatpush1.msra.mxu0 0.0
  %246 = vmatprep.subr.mxu0 0.0
  %247 = vmatpush1.msra.mxu0 0.0
  %248 = vmatprep.subr.mxu0 0.0
  %249 = vmatpush1.msra.mxu0 0.0
  %250 = vmatprep.subr.mxu0 0.0
  %251 = vmatpush1.msra.mxu0 0.0
  %252 = vmatprep.subr.mxu0 0.0
  %253 = vmatpush1.msra.mxu0 0.0
  %254 = vmatprep.subr.mxu0 0.0
  %255 = vmatpush1.msra.mxu0 0.0
  %256 = vmatprep.subr.mxu0 0.0
  %257 = vmatpush1.msra.mxu0 0.0
  %258 = vmatprep.subr.mxu0 0.0
  %259 = vmatpush1.msra.mxu0 0.0
  %260 = vmatprep.subr.mxu0 0.0
  %261 = vmatpush1.msra.mxu0 0.0
  %262 = vmatprep.subr.mxu0 0.0
  %263 = vmatpush1.msra.mxu0 0.0
  %264 = vmatprep.subr.mxu0 0.0
  %265 = vmatpush1.msra.mxu0 0.0
  %266 = vmatprep.subr.mxu0 0.0
  %267 = vmatpush1.msra.mxu0 0.0
  %268 = vmatprep.subr.mxu0 0.0
  %269 = vmatpush1.msra.mxu0 0.0
  %270 = vmatprep.subr.mxu0 0.0
  %271 = vmatpush1.msra.mxu0 0.0
  %272 = vmatprep.subr.mxu0 0.0
  %273 = vmatpush1.msra.mxu0 0.0
  %274 = vmatprep.subr.mxu0 0.0
  %275 = vmatpush1.msra.mxu0 0.0
  %276 = vmatprep.subr.mxu0 0.0
  %277 = vmatpush1.msra.mxu0 0.0
  %278 = vmatprep.subr.mxu0 0.0
  %279 = vmatpush1.msra.mxu0 0.0
  %280 = vmatprep.subr.mxu0 0.0
  %281 = vmatpush1.msra.mxu0 0.0
  %282 = vmatprep.subr.mxu0 0.0
  %283 = vmatpush1.msra.mxu0 0.0
  %284 = vmatprep.subr.mxu0 0.0
  %285 = vmatpush1.msra.mxu0 0.0
  %286 = vmatprep.subr.mxu0 0.0
  %287 = vmatpush1.msra.mxu0 0.0
  %288 = vmatprep.subr.mxu0 0.0
  %289 = vmatpush1.msra.mxu0 0.0
  %290 = vmatprep.subr.mxu0 0.0
  %291 = vmatpush1.msra.mxu0 0.0
  %292 = vmatprep.subr.mxu0 0.0
  %293 = vmatpush1.msra.mxu0 0.0
  %294 = vmatprep.subr.mxu0 0.0
  %295 = vmatpush1.msra.mxu0 0.0
  %296 = vmatprep.subr.mxu0 0.0
  %297 = vmatpush1.msra.mxu0 0.0
  %298 = vmatprep.subr.mxu0 0.0
  %299 = vmatpush1.msra.mxu0 0.0
  %300 = vmatprep.subr.mxu0 0.0
  %301 = vmatpush1.msra.mxu0 0.0
  %302 = vmatprep.mubr.f32.mxu0 0.0
  %303 = vmatmul.mubr.f32.gmra.mrb[0].mxu0 %v236
  %v304 = vpop.f32.mrb[0].mxu0
  %v305 = vadd.f32 %v233, %v304
  %v306 = vpop.f32.mrb[0].mxu0
  %v307 = vadd.f32 %v233, %v306
  %308 = vdwg.mxu0
  %309 = vst [vmem:[%s8] sm:$0xff] %v117
  %310 = vst.msk [vmem:[%s8 + $0x8] sm:$0xff] %vm123, %v119
  %v311 = vadd.f32 %v305, %v39
  %v312 = vadd.f32 %v307, %v40
  %313 = vst [vmem:[%s9] sm:$0xff] %v311
  %314 = vst.msk [vmem:[%s9 + $0x8] sm:$0xff] %vm123, %v312
  %s315 = scalar_lea.vmem %s0, 16
  %v316 = vld [vmem:[%s315] sm:$0xff]
  %v317 = vld [vmem:[%s315 + $0x8] sm:$0xff]
  %s318 = scalar_lea.vmem %s1, 16
  %v319 = vld [vmem:[%s318] sm:$0xff]
  %v320 = vld [vmem:[%s318 + $0x8] sm:$0xff]
  %321 = vmatprep.subr.mxu0 %v317
  %322 = vmatpush1.msra.mxu0 %v316
  %323 = vmatprep.subr.mxu0 0.0
  %324 = vmatpush1.msra.mxu0 0.0
  %325 = vmatprep.subr.mxu0 0.0
  %326 = vmatpush1.msra.mxu0 0.0
  %327 = vmatprep.subr.mxu0 0.0
  %328 = vmatpush1.msra.mxu0 0.0
  %329 = vmatprep.subr.mxu0 0.0
  %330 = vmatpush1.msra.mxu0 0.0
  %331 = vmatprep.subr.mxu0 0.0
  %332 = vmatpush1.msra.mxu0 0.0
  %333 = vmatprep.subr.mxu0 0.0
  %334 = vmatpush1.msra.mxu0 0.0
  %335 = vmatprep.subr.mxu0 0.0
  %336 = vmatpush1.msra.mxu0 0.0
  %337 = vmatprep.subr.mxu0 0.0
  %338 = vmatpush1.msra.mxu0 0.0
  %339 = vmatprep.subr.mxu0 0.0
  %340 = vmatpush1.msra.mxu0 0.0
  %341 = vmatprep.subr.mxu0 0.0
  %342 = vmatpush1.msra.mxu0 0.0
  %343 = vmatprep.subr.mxu0 0.0
  %344 = vmatpush1.msra.mxu0 0.0
  %345 = vmatprep.subr.mxu0 0.0
  %346 = vmatpush1.msra.mxu0 0.0
  %347 = vmatprep.subr.mxu0 0.0
  %348 = vmatpush1.msra.mxu0 0.0
  %349 = vmatprep.subr.mxu0 0.0
  %350 = vmatpush1.msra.mxu0 0.0
  %351 = vmatprep.subr.mxu0 0.0
  %352 = vmatpush1.msra.mxu0 0.0
  %353 = vmatprep.subr.mxu0 0.0
  %354 = vmatpush1.msra.mxu0 0.0
  %355 = vmatprep.subr.mxu0 0.0
  %356 = vmatpush1.msra.mxu0 0.0
  %357 = vmatprep.subr.mxu0 0.0
  %358 = vmatpush1.msra.mxu0 0.0
  %359 = vmatprep.subr.mxu0 0.0
  %360 = vmatpush1.msra.mxu0 0.0
  %361 = vmatprep.subr.mxu0 0.0
  %362 = vmatpush1.msra.mxu0 0.0
  %363 = vmatprep.subr.mxu0 0.0
  %364 = vmatpush1.msra.mxu0 0.0
  %365 = vmatprep.subr.mxu0 0.0
  %366 = vmatpush1.msra.mxu0 0.0
  %367 = vmatprep.subr.mxu0 0.0
  %368 = vmatpush1.msra.mxu0 0.0
  %369 = vmatprep.subr.mxu0 0.0
  %370 = vmatpush1.msra.mxu0 0.0
  %371 = vmatprep.subr.mxu0 0.0
  %372 = vmatpush1.msra.mxu0 0.0
  %373 = vmatprep.subr.mxu0 0.0
  %374 = vmatpush1.msra.mxu0 0.0
  %375 = vmatprep.subr.mxu0 0.0
  %376 = vmatpush1.msra.mxu0 0.0
  %377 = vmatprep.subr.mxu0 0.0
  %378 = vmatpush1.msra.mxu0 0.0
  %379 = vmatprep.subr.mxu0 0.0
  %380 = vmatpush1.msra.mxu0 0.0
  %381 = vmatprep.subr.mxu0 0.0
  %382 = vmatpush1.msra.mxu0 0.0
  %383 = vmatprep.subr.mxu0 0.0
  %384 = vmatpush1.msra.mxu0 0.0
  %385 = vmatprep.mubr.f32.mxu0 0.0
  %386 = vmatmul.mubr.f32.gmra.mrb[0].mxu0 %v48
  %v387 = vpop.f32.mrb[0].mxu0
  %v388 = vadd.f32 %v44, %v387
  %v389 = vpop.f32.mrb[0].mxu0
  %v390 = vadd.f32 %v44, %v389
  %391 = vdwg.mxu0
  %v392 = vsub.f32 %v388, %v316
  %v393 = vsub.f32 %v390, %v317
  %v394 = vsel %vm123, %v393, 0.0
  %v395 = vadd.f32 %v392, %v394
  %396 = vadd.xlane.f32.xlu0 %v395
  %v397 = vpop.xlane.xlu0 %396
  %v398 = vmul.f32 %v397, %v128
  %v399 = vrot.slane %v398, 4
  %v400 = vmax.f32 %v398, %v399
  %v401 = vrot.slane %v400, 2
  %v402 = vmax.f32 %v400, %v401
  %v403 = vrot.slane %v402, 1
  %v404 = vmax.f32 %v402, %v403
  %v405 = vsub.f32 %v398, %v404
  %v406 = vmul.f32 %v405, 1.442695
  %v407 = vpow.pop %v406
  %v408 = vrot.slane %v407, 4
  %v409 = vadd.f32 %v407, %v408
  %v410 = vrot.slane %v409, 2
  %v411 = vadd.f32 %v409, %v410
  %v412 = vrot.slane %v411, 1
  %v413 = vadd.f32 %v411, %v412
  %v414 = vrcp.pop %v413
  %v415 = vmul.f32 %v407, %v414
  %v416 = vmul.f32 %v319, %v415
  %v417 = vmul.f32 %v320, %v415
  %418 = vmatprep.subr.mxu0 %v417
  %419 = vmatpush1.msra.mxu0 %v416
  %420 = vmatprep.subr.mxu0 0.0
  %421 = vmatpush1.msra.mxu0 0.0
  %422 = vmatprep.subr.mxu0 0.0
  %423 = vmatpush1.msra.mxu0 0.0
  %424 = vmatprep.subr.mxu0 0.0
  %425 = vmatpush1.msra.mxu0 0.0
  %426 = vmatprep.subr.mxu0 0.0
  %427 = vmatpush1.msra.mxu0 0.0
  %428 = vmatprep.subr.mxu0 0.0
  %429 = vmatpush1.msra.mxu0 0.0
  %430 = vmatprep.subr.mxu0 0.0
  %431 = vmatpush1.msra.mxu0 0.0
  %432 = vmatprep.subr.mxu0 0.0
  %433 = vmatpush1.msra.mxu0 0.0
  %434 = vmatprep.subr.mxu0 0.0
  %435 = vmatpush1.msra.mxu0 0.0
  %436 = vmatprep.subr.mxu0 0.0
  %437 = vmatpush1.msra.mxu0 0.0
  %438 = vmatprep.subr.mxu0 0.0
  %439 = vmatpush1.msra.mxu0 0.0
  %440 = vmatprep.subr.mxu0 0.0
  %441 = vmatpush1.msra.mxu0 0.0
  %442 = vmatprep.subr.mxu0 0.0
  %443 = vmatpush1.msra.mxu0 0.0
  %444 = vmatprep.subr.mxu0 0.0
  %445 = vmatpush1.msra.mxu0 0.0
  %446 = vmatprep.subr.mxu0 0.0
  %447 = vmatpush1.msra.mxu0 0.0
  %448 = vmatprep.subr.mxu0 0.0
  %449 = vmatpush1.msra.mxu0 0.0
  %450 = vmatprep.subr.mxu0 0.0
  %451 = vmatpush1.msra.mxu0 0.0
  %452 = vmatprep.subr.mxu0 0.0
  %453 = vmatpush1.msra.mxu0 0.0
  %454 = vmatprep.subr.mxu0 0.0
  %455 = vmatpush1.msra.mxu0 0.0
  %456 = vmatprep.subr.mxu0 0.0
  %457 = vmatpush1.msra.mxu0 0.0
  %458 = vmatprep.subr.mxu0 0.0
  %459 = vmatpush1.msra.mxu0 0.0
  %460 = vmatprep.subr.mxu0 0.0
  %461 = vmatpush1.msra.mxu0 0.0
  %462 = vmatprep.subr.mxu0 0.0
  %463 = vmatpush1.msra.mxu0 0.0
  %464 = vmatprep.subr.mxu0 0.0
  %465 = vmatpush1.msra.mxu0 0.0
  %466 = vmatprep.subr.mxu0 0.0
  %467 = vmatpush1.msra.mxu0 0.0
  %468 = vmatprep.subr.mxu0 0.0
  %469 = vmatpush1.msra.mxu0 0.0
  %470 = vmatprep.subr.mxu0 0.0
  %471 = vmatpush1.msra.mxu0 0.0
  %472 = vmatprep.subr.mxu0 0.0
  %473 = vmatpush1.msra.mxu0 0.0
  %474 = vmatprep.subr.mxu0 0.0
  %475 = vmatpush1.msra.mxu0 0.0
  %476 = vmatprep.subr.mxu0 0.0
  %477 = vmatpush1.msra.mxu0 0.0
  %478 = vmatprep.subr.mxu0 0.0
  %479 = vmatpush1.msra.mxu0 0.0
  %480 = vmatprep.subr.mxu0 0.0
  %481 = vmatpush1.msra.mxu0 0.0
  %482 = vmatprep.mubr.f32.mxu0 0.0
  %483 = vmatmul.mubr.f32.gmra.mrb[0].mxu0 %v155
  %v484 = vpop.f32.mrb[0].mxu0
  %v485 = vadd.f32 %v152, %v484
  %v486 = vpop.f32.mrb[0].mxu0
  %v487 = vadd.f32 %v152, %v486
  %488 = vdwg.mxu0
  %v489 = vmax.f32 %v485, 0.0
  %v490 = vmax.f32 %v487, 0.0
  %491 = vmatprep.subr.mxu0 %v490
  %492 = vmatpush1.msra.mxu0 %v489
  %493 = vmatprep.subr.mxu0 0.0
  %494 = vmatpush1.msra.mxu0 0.0
  %495 = vmatprep.subr.mxu0 0.0
  %496 = vmatpush1.msra.mxu0 0.0
  %497 = vmatprep.subr.mxu0 0.0
  %498 = vmatpush1.msra.mxu0 0.0
  %499 = vmatprep.subr.mxu0 0.0
  %500 = vmatpush1.msra.mxu0 0.0
  %501 = vmatprep.subr.mxu0 0.0
  %502 = vmatpush1.msra.mxu0 0.0
  %503 = vmatprep.subr.mxu0 0.0
  %504 = vmatpush1.msra.mxu0 0.0
  %505 = vmatprep.subr.mxu0 0.0
  %506 = vmatpush1.msra.mxu0 0.0
  %507 = vmatprep.subr.mxu0 0.0
  %508 = vmatpush1.msra.mxu0 0.0
  %509 = vmatprep.subr.mxu0 0.0
  %510 = vmatpush1.msra.mxu0 0.0
  %511 = vmatprep.subr.mxu0 0.0
  %512 = vmatpush1.msra.mxu0 0.0
  %513 = vmatprep.subr.mxu0 0.0
  %514 = vmatpush1.msra.mxu0 0.0
  %515 = vmatprep.subr.mxu0 0.0
  %516 = vmatpush1.msra.mxu0 0.0
  %517 = vmatprep.subr.mxu0 0.0
  %518 = vmatpush1.msra.mxu0 0.0
  %519 = vmatprep.subr.mxu0 0.0
  %520 = vmatpush1.msra.mxu0 0.0
  %521 = vmatprep.subr.mxu0 0.0
  %522 = vmatpush1.msra.mxu0 0.0
  %523 = vmatprep.subr.mxu0 0.0
  %524 = vmatpush1.msra.mxu0 0.0
  %525 = vmatprep.subr.mxu0 0.0
  %526 = vmatpush1.msra.mxu0 0.0
  %527 = vmatprep.subr.mxu0 0.0
  %528 = vmatpush1.msra.mxu0 0.0
  %529 = vmatprep.subr.mxu0 0.0
  %530 = vmatpush1.msra.mxu0 0.0
  %531 = vmatprep.subr.mxu0 0.0
  %532 = vmatpush1.msra.mxu0 0.0
  %533 = vmatprep.subr.mxu0 0.0
  %534 = vmatpush1.msra.mxu0 0.0
  %535 = vmatprep.subr.mxu0 0.0
  %536 = vmatpush1.msra.mxu0 0.0
  %537 = vmatprep.subr.mxu0 0.0
  %538 = vmatpush1.msra.mxu0 0.0
  %539 = vmatprep.subr.mxu0 0.0
  %540 = vmatpush1.msra.mxu0 0.0
  %541 = vmatprep.subr.mxu0 0.0
  %542 = vmatpush1.msra.mxu0 0.0
  %543 = vmatprep.subr.mxu0 0.0
  %544 = vmatpush1.msra.mxu0 0.0
  %545 = vmatprep.subr.mxu0 0.0
  %546 = vmatpush1.msra.mxu0 0.0
  %547 = vmatprep.subr.mxu0 0.0
  %548 = vmatpush1.msra.mxu0 0.0
  %549 = vmatprep.subr.mxu0 0.0
  %550 = vmatpush1.msra.mxu0 0.0
  %551 = vmatprep.subr.mxu0 0.0
  %552 = vmatpush1.msra.mxu0 0.0
  %553 = vmatprep.subr.mxu0 0.0
  %554 = vmatpush1.msra.mxu0 0.0
  %555 = vmatprep.mubr.f32.mxu0 0.0
  %556 = vmatmul.mubr.f32.gmra.mrb[0].mxu0 %v236
  %v557 = vpop.f32.mrb[0].mxu0
  %v558 = vadd.f32 %v233, %v557
  %v559 = vpop.f32.mrb[0].mxu0
  %v560 = vadd.f32 %v233, %v559
  %561 = vdwg.mxu0
  %s562 = scalar_lea.vmem %s8, 16
  %563 = vst [vmem:[%s562] sm:$0xff] %v388
  %564 = vst.msk [vmem:[%s562 + $0x8] sm:$0xff] %vm123, %v390
  %v565 = vadd.f32 %v558, %v319
  %v566 = vadd.f32 %v560, %v320
  %s567 = scalar_lea.vmem %s9, 16
  %568 = vst [vmem:[%s567] sm:$0xff] %v565
  %569 = vst.msk [vmem:[%s567 + $0x8] sm:$0xff] %vm123, %v566
  // Predicated region
  $region34: #{_lambda_.4} parent=0 // pred_check
    _
  $region35: #{_lambda_.4} parent=0 // pred_check_branch
    %571 = sbr.rel (0) target = $region37
  $region36: #{_lambda_.4} parent=0 // pred_region
    _
  $region37: #{_lambda_.4} parent=0 // pred_fallthru
    _
  // Predicated region
  $region38: #{_lambda_.4} parent=0 // pred_check
    _
  $region39: #{_lambda_.4} parent=0 // pred_check_branch
    %573 = sbr.rel (0) target = $region41
  $region40: #{_lambda_.4} parent=0 // pred_region
    _
  $region41: #{_lambda_.4} parent=0 // pred_fallthru
    _
  // Predicated region
  $region42: #{_lambda_.4} parent=0 // pred_check
    _
  $region43: #{_lambda_.4} parent=0 // pred_check_branch
    %575 = sbr.rel (0) target = $region45
  $region44: #{_lambda_.4} parent=0 // pred_region
    _
  $region45: #{_lambda_.4} parent=0 // pred_fallthru
    _
  // Predicated region
  $region46: #{_lambda_.4} parent=0 // pred_check
    _
  $region47: #{_lambda_.4} parent=0 // pred_check_branch
    %577 = sbr.rel (0) target = $region49
  $region48: #{_lambda_.4} parent=0 // pred_region
    _
  $region49: #{_lambda_.4} parent=0 // pred_fallthru
    _

// kernel: reverse.0
$region0: #{reverse.0}
  %s0 = inlined_call_operand.vmem [shape: f32[2,8,16,7], index: 0, kind: input, shape index: {}]
  %s1 = inlined_call_operand.vmem [shape: f32[2,8,16,7], index: 1, kind: output, shape index: {}]
  $region1: #{reverse.0} parent=0
    #allocation0 [shape = 'u8[131072]{0}', space=vmem, size = 0x20000, scoped, tag = 'operand span for operand 0']
    #allocation1 [shape = 'u8[65536]{0}', space=vmem, size = 0x10000, scoped, tag = 'operand span for operand 1']
    %s2 = scalar_lea.vmem [#allocation0], 8
    // Predicated region
    $region2: #{reverse.0} parent=1 // pred_check
      _
    $region3: #{reverse.0} parent=1 // pred_check_branch
      %4 = sbr.rel (0) target = $region5
    $region4: #{reverse.0} parent=1 // pred_region
      // Predicated region
      $region6: #{reverse.0} parent=4 // pred_check
        _
      $region7: #{reverse.0} parent=4 // pred_check_branch
        %6 = sbr.rel (0) target = $region9
      $region8: #{reverse.0} parent=4 // pred_region
        // Predicated region
        $region21: #{reverse.0} parent=8 // pred_check
          _
        $region22: #{reverse.0} parent=8 // pred_check_branch
          %51 = sbr.rel (0) target = $region24
        $region23: #{reverse.0} parent=8 // pred_region
          loop: start=0, step=1, limit=1
          $region25: #{reverse.0} parent=23 // loop_pre_header
            _
          $region26: #{reverse.0} parent=23 // loop_header
            %s53 = sphi 0, %s57
            %p54 = scmp.ge.s32.totalorder %s53, 1
            %s58 = sphi %s0, %s0
            %s59 = sphi %s2, %s2
          $region27: #{reverse.0} parent=23 // loop_header_branch
            %56 = sbr.rel (%p54) target = $region31
          $region28: #{reverse.0} parent=23 // loop_body
            %v60 = vld [vmem:[%s58] sm:$0xff]
            %61 = vst [vmem:[%s59] sm:$0xff] %v60
            %v62 = vld [vmem:[%s58 + $0x8] sm:$0xff]
            %63 = vst [vmem:[%s59 + $0x10] sm:$0xff] %v62
            %v64 = vld [vmem:[%s58 + $0x10] sm:$0xff]
            %65 = vst [vmem:[%s59 + $0x20] sm:$0xff] %v64
            %v66 = vld [vmem:[%s58 + $0x18] sm:$0xff]
            %67 = vst [vmem:[%s59 + $0x30] sm:$0xff] %v66
            %v68 = vld [vmem:[%s58 + $0x20] sm:$0xff]
            %69 = vst [vmem:[%s59 + $0x40] sm:$0xff] %v68
            %v70 = vld [vmem:[%s58 + $0x28] sm:$0xff]
            %71 = vst [vmem:[%s59 + $0x50] sm:$0xff] %v70
            %v72 = vld [vmem:[%s58 + $0x30] sm:$0xff]
            %73 = vst [vmem:[%s59 + $0x60] sm:$0xff] %v72
            %v74 = vld [vmem:[%s58 + $0x38] sm:$0xff]
            %75 = vst [vmem:[%s59 + $0x70] sm:$0xff] %v74
            %v76 = vld [vmem:[%s58 + $0x40] sm:$0xff]
            %77 = vst [vmem:[%s59 + $0x80] sm:$0xff] %v76
            %v78 = vld [vmem:[%s58 + $0x48] sm:$0xff]
            %79 = vst [vmem:[%s59 + $0x90] sm:$0xff] %v78
            %v80 = vld [vmem:[%s58 + $0x50] sm:$0xff]
            %81 = vst [vmem:[%s59 + $0xa0] sm:$0xff] %v80
            %v82 = vld [vmem:[%s58 + $0x58] sm:$0xff]
            %83 = vst [vmem:[%s59 + $0xb0] sm:$0xff] %v82
            %v84 = vld [vmem:[%s58 + $0x60] sm:$0xff]
            %85 = vst [vmem:[%s59 + $0xc0] sm:$0xff] %v84
            %v86 = vld [vmem:[%s58 + $0x68] sm:$0xff]
            %87 = vst [vmem:[%s59 + $0xd0] sm:$0xff] %v86
            %v88 = vld [vmem:[%s58 + $0x70] sm:$0xff]
            %89 = vst [vmem:[%s59 + $0xe0] sm:$0xff] %v88
            %v90 = vld [vmem:[%s58 + $0x78] sm:$0xff]
            %91 = vst [vmem:[%s59 + $0xf0] sm:$0xff] %v90
          $region29: #{reverse.0} parent=23 // loop_footer
            %s57 = sadd.s32 1, %s53
          $region30: #{reverse.0} parent=23 // loop_footer_branch
            %52 = sbr.rel target = $region26
          $region31: #{reverse.0} parent=23 // loop_exit
            _
        $region24: #{reverse.0} parent=8 // pred_fallthru
          _
        // Predicated region
        $region32: #{reverse.0} parent=8 // pred_check
          _
        $region33: #{reverse.0} parent=8 // pred_check_branch
          %93 = sbr.rel target = $region35
        $region34: #{reverse.0} parent=8 // pred_region
          _
        $region35: #{reverse.0} parent=8 // pred_fallthru
          _
      $region9: #{reverse.0} parent=4 // pred_fallthru
        _
      // Predicated region
      $region10: #{reverse.0} parent=4 // pred_check
        _
      $region11: #{reverse.0} parent=4 // pred_check_branch
        %8 = sbr.rel target = $region13
      $region12: #{reverse.0} parent=4 // pred_region
        loop: start=0, step=1, limit=1
        $region14: #{reverse.0} parent=12 // loop_pre_header
          _
        $region15: #{reverse.0} parent=12 // loop_header
          %s11 = sphi 0, %s15
          %p12 = scmp.ge.s32.totalorder %s11, 1
          %s16 = sphi %s0, %s0
          %s17 = sphi %s2, %s2
        $region16: #{reverse.0} parent=12 // loop_header_branch
          %14 = sbr.rel (%p12) target = $region20
        $region17: #{reverse.0} parent=12 // loop_body
          %v18 = vld [vmem:[%s16] sm:$0xff]
          %19 = vst [vmem:[%s17] sm:$0xff] %v18
          %v20 = vld [vmem:[%s16 + $0x8] sm:$0xff]
          %21 = vst [vmem:[%s17 + $0x10] sm:$0xff] %v20
          %v22 = vld [vmem:[%s16 + $0x10] sm:$0xff]
          %23 = vst [vmem:[%s17 + $0x20] sm:$0xff] %v22
          %v24 = vld [vmem:[%s16 + $0x18] sm:$0xff]
          %25 = vst [vmem:[%s17 + $0x30] sm:$0xff] %v24
          %v26 = vld [vmem:[%s16 + $0x20] sm:$0xff]
          %27 = vst [vmem:[%s17 + $0x40] sm:$0xff] %v26
          %v28 = vld [vmem:[%s16 + $0x28] sm:$0xff]
          %29 = vst [vmem:[%s17 + $0x50] sm:$0xff] %v28
          %v30 = vld [vmem:[%s16 + $0x30] sm:$0xff]
          %31 = vst [vmem:[%s17 + $0x60] sm:$0xff] %v30
          %v32 = vld [vmem:[%s16 + $0x38] sm:$0xff]
          %33 = vst [vmem:[%s17 + $0x70] sm:$0xff] %v32
          %v34 = vld [vmem:[%s16 + $0x40] sm:$0xff]
          %35 = vst [vmem:[%s17 + $0x80] sm:$0xff] %v34
          %v36 = vld [vmem:[%s16 + $0x48] sm:$0xff]
          %37 = vst [vmem:[%s17 + $0x90] sm:$0xff] %v36
          %v38 = vld [vmem:[%s16 + $0x50] sm:$0xff]
          %39 = vst [vmem:[%s17 + $0xa0] sm:$0xff] %v38
          %v40 = vld [vmem:[%s16 + $0x58] sm:$0xff]
          %41 = vst [vmem:[%s17 + $0xb0] sm:$0xff] %v40
          %v42 = vld [vmem:[%s16 + $0x60] sm:$0xff]
          %43 = vst [vmem:[%s17 + $0xc0] sm:$0xff] %v42
          %v44 = vld [vmem:[%s16 + $0x68] sm:$0xff]
          %45 = vst [vmem:[%s17 + $0xd0] sm:$0xff] %v44
          %v46 = vld [vmem:[%s16 + $0x70] sm:$0xff]
          %47 = vst [vmem:[%s17 + $0xe0] sm:$0xff] %v46
          %v48 = vld [vmem:[%s16 + $0x78] sm:$0xff]
          %49 = vst [vmem:[%s17 + $0xf0] sm:$0xff] %v48
        $region18: #{reverse.0} parent=12 // loop_footer
          %s15 = sadd.s32 1, %s11
        $region19: #{reverse.0} parent=12 // loop_footer_branch
          %10 = sbr.rel target = $region15
        $region20: #{reverse.0} parent=12 // loop_exit
          _
      $region13: #{reverse.0} parent=4 // pred_fallthru
        _
    $region5: #{reverse.0} parent=1 // pred_fallthru
      _
    %94 = vnop
    %s95 = scalar_lea.vmem [#allocation0], 7
    %v96 = vld [vmem:[%s95] ss:$-1 sm:$0xff]
    %v97 = vrot.slane %v96, 1
    %98 = vst [vmem:[#allocation1] sm:$0xff] %v97
    %s99 = scalar_lea.vmem [#allocation0], 8
    %s100 = scalar_lea.vmem %s99, 7 [#allocation0]
    %v101 = vld [vmem:[%s100] ss:$-1 sm:$0xff]
    %v102 = vrot.slane %v101, 1
    %v103 = vlaneseq
    %v104 = vshrl.u32 %v103, 7
    %vm105 = vcmp.lt.s32.totalorder %v104, 7
    %106 = vst.msk [vmem:[#allocation1] sm:$0xff] %vm105, %v102
    %s107 = scalar_lea.vmem [#allocation1], 8
    %s108 = scalar_lea.vmem [#allocation0], 16
    %s109 = scalar_lea.vmem %s108, 7 [#allocation0]
    %v110 = vld [vmem:[%s109] ss:$-1 sm:$0xff]
    %v111 = vrot.slane %v110, 1
    %112 = vst [vmem:[%s107] sm:$0xff] %v111
    %s113 = scalar_lea.vmem %s108, 8 [#allocation0]
    %s114 = scalar_lea.vmem %s113, 7 [#allocation0]
    %v115 = vld [vmem:[%s114] ss:$-1 sm:$0xff]
    %v116 = vrot.slane %v115, 1
    %v117 = vlaneseq
    %v118 = vshrl.u32 %v117, 7
    %vm119 = vcmp.lt.s32.totalorder %v118, 7
    %120 = vst.msk [vmem:[%s107] sm:$0xff] %vm119, %v116
    %s121 = scalar_lea.vmem [#allocation1], 16
    %s122 = scalar_lea.vmem [#allocation0], 32
    %s123 = scalar_lea.vmem %s122, 7 [#allocation0]
    %v124 = vld [vmem:[%s123] ss:$-1 sm:$0xff]
    %v125 = vrot.slane %v124, 1
    %126 = vst [vmem:[%s121] sm:$0xff] %v125
    %s127 = scalar_lea.vmem %s122, 8 [#allocation0]
    %s128 = scalar_lea.vmem %s127, 7 [#allocation0]
    %v129 = vld [vmem:[%s128] ss:$-1 sm:$0xff]
    %v130 = vrot.slane %v129, 1
    %v131 = vlaneseq
    %v132 = vshrl.u32 %v131, 7
    %vm133 = vcmp.lt.s32.totalorder %v132, 7
    %134 = vst.msk [vmem:[%s121] sm:$0xff] %vm133, %v130
    %s135 = scalar_lea.vmem [#allocation1], 24
    %s136 = scalar_lea.vmem [#allocation0], 48
    %s137 = scalar_lea.vmem %s136, 7 [#allocation0]
    %v138 = vld [vmem:[%s137] ss:$-1 sm:$0xff]
    %v139 = vrot.slane %v138, 1
    %140 = vst [vmem:[%s135] sm:$0xff] %v139
    %s141 = scalar_lea.vmem %s136, 8 [#allocation0]
    %s142 = scalar_lea.vmem %s141, 7 [#allocation0]
    %v143 = vld [vmem:[%s142] ss:$-1 sm:$0xff]
    %v144 = vrot.slane %v143, 1
    %v145 = vlaneseq
    %v146 = vshrl.u32 %v145, 7
    %vm147 = vcmp.lt.s32.totalorder %v146, 7
    %148 = vst.msk [vmem:[%s135] sm:$0xff] %vm147, %v144
    %s149 = scalar_lea.vmem [#allocation1], 32
    %s150 = scalar_lea.vmem [#allocation0], 64
    %s151 = scalar_lea.vmem %s150, 7 [#allocation0]
    %v152 = vld [vmem:[%s151] ss:$-1 sm:$0xff]
    %v153 = vrot.slane %v152, 1
    %154 = vst [vmem:[%s149] sm:$0xff] %v153
    %s155 = scalar_lea.vmem %s150, 8 [#allocation0]
    %s156 = scalar_lea.vmem %s155, 7 [#allocation0]
    %v157 = vld [vmem:[%s156] ss:$-1 sm:$0xff]
    %v158 = vrot.slane %v157, 1
    %v159 = vlaneseq
    %v160 = vshrl.u32 %v159, 7
    %vm161 = vcmp.lt.s32.totalorder %v160, 7
    %162 = vst.msk [vmem:[%s149] sm:$0xff] %vm161, %v158
    %s163 = scalar_lea.vmem [#allocation1], 40
    %s164 = scalar_lea.vmem [#allocation0], 80
    %s165 = scalar_lea.vmem %s164, 7 [#allocation0]
    %v166 = vld [vmem:[%s165] ss:$-1 sm:$0xff]
    %v167 = vrot.slane %v166, 1
    %168 = vst [vmem:[%s163] sm:$0xff] %v167
    %s169 = scalar_lea.vmem %s164, 8 [#allocation0]
    %s170 = scalar_lea.vmem %s169, 7 [#allocation0]
    %v171 = vld [vmem:[%s170] ss:$-1 sm:$0xff]
    %v172 = vrot.slane %v171, 1
    %v173 = vlaneseq
    %v174 = vshrl.u32 %v173, 7
    %vm175 = vcmp.lt.s32.totalorder %v174, 7
    %176 = vst.msk [vmem:[%s163] sm:$0xff] %vm175, %v172
    %s177 = scalar_lea.vmem [#allocation1], 48
    %s178 = scalar_lea.vmem [#allocation0], 96
    %s179 = scalar_lea.vmem %s178, 7 [#allocation0]
    %v180 = vld [vmem:[%s179] ss:$-1 sm:$0xff]
    %v181 = vrot.slane %v180, 1
    %182 = vst [vmem:[%s177] sm:$0xff] %v181
    %s183 = scalar_lea.vmem %s178, 8 [#allocation0]
    %s184 = scalar_lea.vmem %s183, 7 [#allocation0]
    %v185 = vld [vmem:[%s184] ss:$-1 sm:$0xff]
    %v186 = vrot.slane %v185, 1
    %v187 = vlaneseq
    %v188 = vshrl.u32 %v187, 7
    %vm189 = vcmp.lt.s32.totalorder %v188, 7
    %190 = vst.msk [vmem:[%s177] sm:$0xff] %vm189, %v186
    %s191 = scalar_lea.vmem [#allocation1], 56
    %s192 = scalar_lea.vmem [#allocation0], 112
    %s193 = scalar_lea.vmem %s192, 7 [#allocation0]
    %v194 = vld [vmem:[%s193] ss:$-1 sm:$0xff]
    %v195 = vrot.slane %v194, 1
    %196 = vst [vmem:[%s191] sm:$0xff] %v195
    %s197 = scalar_lea.vmem %s192, 8 [#allocation0]
    %s198 = scalar_lea.vmem %s197, 7 [#allocation0]
    %v199 = vld [vmem:[%s198] ss:$-1 sm:$0xff]
    %v200 = vrot.slane %v199, 1
    %v201 = vlaneseq
    %v202 = vshrl.u32 %v201, 7
    %vm203 = vcmp.lt.s32.totalorder %v202, 7
    %204 = vst.msk [vmem:[%s191] sm:$0xff] %vm203, %v200
    %s205 = scalar_lea.vmem [#allocation1], 64
    %s206 = scalar_lea.vmem [#allocation0], 128
    %s207 = scalar_lea.vmem %s206, 7 [#allocation0]
    %v208 = vld [vmem:[%s207] ss:$-1 sm:$0xff]
    %v209 = vrot.slane %v208, 1
    %210 = vst [vmem:[%s205] sm:$0xff] %v209
    %s211 = scalar_lea.vmem %s206, 8 [#allocation0]
    %s212 = scalar_lea.vmem %s211, 7 [#allocation0]
    %v213 = vld [vmem:[%s212] ss:$-1 sm:$0xff]
    %v214 = vrot.slane %v213, 1
    %v215 = vlaneseq
    %v216 = vshrl.u32 %v215, 7
    %vm217 = vcmp.lt.s32.totalorder %v216, 7
    %218 = vst.msk [vmem:[%s205] sm:$0xff] %vm217, %v214
    %s219 = scalar_lea.vmem [#allocation1], 72
    %s220 = scalar_lea.vmem [#allocation0], 144
    %s221 = scalar_lea.vmem %s220, 7 [#allocation0]
    %v222 = vld [vmem:[%s221] ss:$-1 sm:$0xff]
    %v223 = vrot.slane %v222, 1
    %224 = vst [vmem:[%s219] sm:$0xff] %v223
    %s225 = scalar_lea.vmem %s220, 8 [#allocation0]
    %s226 = scalar_lea.vmem %s225, 7 [#allocation0]
    %v227 = vld [vmem:[%s226] ss:$-1 sm:$0xff]
    %v228 = vrot.slane %v227, 1
    %v229 = vlaneseq
    %v230 = vshrl.u32 %v229, 7
    %vm231 = vcmp.lt.s32.totalorder %v230, 7
    %232 = vst.msk [vmem:[%s219] sm:$0xff] %vm231, %v228
    %s233 = scalar_lea.vmem [#allocation1], 80
    %s234 = scalar_lea.vmem [#allocation0], 160
    %s235 = scalar_lea.vmem %s234, 7 [#allocation0]
    %v236 = vld [vmem:[%s235] ss:$-1 sm:$0xff]
    %v237 = vrot.slane %v236, 1
    %238 = vst [vmem:[%s233] sm:$0xff] %v237
    %s239 = scalar_lea.vmem %s234, 8 [#allocation0]
    %s240 = scalar_lea.vmem %s239, 7 [#allocation0]
    %v241 = vld [vmem:[%s240] ss:$-1 sm:$0xff]
    %v242 = vrot.slane %v241, 1
    %v243 = vlaneseq
    %v244 = vshrl.u32 %v243, 7
    %vm245 = vcmp.lt.s32.totalorder %v244, 7
    %246 = vst.msk [vmem:[%s233] sm:$0xff] %vm245, %v242
    %s247 = scalar_lea.vmem [#allocation1], 88
    %s248 = scalar_lea.vmem [#allocation0], 176
    %s249 = scalar_lea.vmem %s248, 7 [#allocation0]
    %v250 = vld [vmem:[%s249] ss:$-1 sm:$0xff]
    %v251 = vrot.slane %v250, 1
    %252 = vst [vmem:[%s247] sm:$0xff] %v251
    %s253 = scalar_lea.vmem %s248, 8 [#allocation0]
    %s254 = scalar_lea.vmem %s253, 7 [#allocation0]
    %v255 = vld [vmem:[%s254] ss:$-1 sm:$0xff]
    %v256 = vrot.slane %v255, 1
    %v257 = vlaneseq
    %v258 = vshrl.u32 %v257, 7
    %vm259 = vcmp.lt.s32.totalorder %v258, 7
    %260 = vst.msk [vmem:[%s247] sm:$0xff] %vm259, %v256
    %s261 = scalar_lea.vmem [#allocation1], 96
    %s262 = scalar_lea.vmem [#allocation0], 192
    %s263 = scalar_lea.vmem %s262, 7 [#allocation0]
    %v264 = vld [vmem:[%s263] ss:$-1 sm:$0xff]
    %v265 = vrot.slane %v264, 1
    %266 = vst [vmem:[%s261] sm:$0xff] %v265
    %s267 = scalar_lea.vmem %s262, 8 [#allocation0]
    %s268 = scalar_lea.vmem %s267, 7 [#allocation0]
    %v269 = vld [vmem:[%s268] ss:$-1 sm:$0xff]
    %v270 = vrot.slane %v269, 1
    %v271 = vlaneseq
    %v272 = vshrl.u32 %v271, 7
    %vm273 = vcmp.lt.s32.totalorder %v272, 7
    %274 = vst.msk [vmem:[%s261] sm:$0xff] %vm273, %v270
    %s275 = scalar_lea.vmem [#allocation1], 104
    %s276 = scalar_lea.vmem [#allocation0], 208
    %s277 = scalar_lea.vmem %s276, 7 [#allocation0]
    %v278 = vld [vmem:[%s277] ss:$-1 sm:$0xff]
    %v279 = vrot.slane %v278, 1
    %280 = vst [vmem:[%s275] sm:$0xff] %v279
    %s281 = scalar_lea.vmem %s276, 8 [#allocation0]
    %s282 = scalar_lea.vmem %s281, 7 [#allocation0]
    %v283 = vld [vmem:[%s282] ss:$-1 sm:$0xff]
    %v284 = vrot.slane %v283, 1
    %v285 = vlaneseq
    %v286 = vshrl.u32 %v285, 7
    %vm287 = vcmp.lt.s32.totalorder %v286, 7
    %288 = vst.msk [vmem:[%s275] sm:$0xff] %vm287, %v284
    %s289 = scalar_lea.vmem [#allocation1], 112
    %s290 = scalar_lea.vmem [#allocation0], 224
    %s291 = scalar_lea.vmem %s290, 7 [#allocation0]
    %v292 = vld [vmem:[%s291] ss:$-1 sm:$0xff]
    %v293 = vrot.slane %v292, 1
    %294 = vst [vmem:[%s289] sm:$0xff] %v293
    %s295 = scalar_lea.vmem %s290, 8 [#allocation0]
    %s296 = scalar_lea.vmem %s295, 7 [#allocation0]
    %v297 = vld [vmem:[%s296] ss:$-1 sm:$0xff]
    %v298 = vrot.slane %v297, 1
    %v299 = vlaneseq
    %v300 = vshrl.u32 %v299, 7
    %vm301 = vcmp.lt.s32.totalorder %v300, 7
    %302 = vst.msk [vmem:[%s289] sm:$0xff] %vm301, %v298
    %s303 = scalar_lea.vmem [#allocation1], 120
    %s304 = scalar_lea.vmem [#allocation0], 240
    %s305 = scalar_lea.vmem %s304, 7 [#allocation0]
    %v306 = vld [vmem:[%s305] ss:$-1 sm:$0xff]
    %v307 = vrot.slane %v306, 1
    %308 = vst [vmem:[%s303] sm:$0xff] %v307
    %s309 = scalar_lea.vmem %s304, 8 [#allocation0]
    %s310 = scalar_lea.vmem %s309, 7 [#allocation0]
    %v311 = vld [vmem:[%s310] ss:$-1 sm:$0xff]
    %v312 = vrot.slane %v311, 1
    %v313 = vlaneseq
    %v314 = vshrl.u32 %v313, 7
    %vm315 = vcmp.lt.s32.totalorder %v314, 7
    %316 = vst.msk [vmem:[%s303] sm:$0xff] %vm315, %v312
    // Predicated region
    $region36: #{reverse.0} parent=1 // pred_check
      _
    $region37: #{reverse.0} parent=1 // pred_check_branch
      %318 = sbr.rel (0) target = $region39
    $region38: #{reverse.0} parent=1 // pred_region
      // Predicated region
      $region40: #{reverse.0} parent=38 // pred_check
        _
      $region41: #{reverse.0} parent=38 // pred_check_branch
        %320 = sbr.rel (0) target = $region43
      $region42: #{reverse.0} parent=38 // pred_region
        // Predicated region
        $region55: #{reverse.0} parent=42 // pred_check
          _
        $region56: #{reverse.0} parent=42 // pred_check_branch
          %365 = sbr.rel (0) target = $region58
        $region57: #{reverse.0} parent=42 // pred_region
          loop: start=0, step=1, limit=1
          $region59: #{reverse.0} parent=57 // loop_pre_header
            _
          $region60: #{reverse.0} parent=57 // loop_header
            %s367 = sphi 0, %s371
            %p368 = scmp.ge.s32.totalorder %s367, 1
            %s372 = sphi [#allocation1], [#allocation1]
            %s373 = sphi %s1, %s1
          $region61: #{reverse.0} parent=57 // loop_header_branch
            %370 = sbr.rel (%p368) target = $region65
          $region62: #{reverse.0} parent=57 // loop_body
            %v374 = vld [vmem:[%s372] sm:$0xff]
            %375 = vst [vmem:[%s373] sm:$0xff] %v374
            %v376 = vld [vmem:[%s372 + $0x8] sm:$0xff]
            %377 = vst [vmem:[%s373 + $0x8] sm:$0xff] %v376
            %v378 = vld [vmem:[%s372 + $0x10] sm:$0xff]
            %379 = vst [vmem:[%s373 + $0x10] sm:$0xff] %v378
            %v380 = vld [vmem:[%s372 + $0x18] sm:$0xff]
            %381 = vst [vmem:[%s373 + $0x18] sm:$0xff] %v380
            %v382 = vld [vmem:[%s372 + $0x20] sm:$0xff]
            %383 = vst [vmem:[%s373 + $0x20] sm:$0xff] %v382
            %v384 = vld [vmem:[%s372 + $0x28] sm:$0xff]
            %385 = vst [vmem:[%s373 + $0x28] sm:$0xff] %v384
            %v386 = vld [vmem:[%s372 + $0x30] sm:$0xff]
            %387 = vst [vmem:[%s373 + $0x30] sm:$0xff] %v386
            %v388 = vld [vmem:[%s372 + $0x38] sm:$0xff]
            %389 = vst [vmem:[%s373 + $0x38] sm:$0xff] %v388
            %v390 = vld [vmem:[%s372 + $0x40] sm:$0xff]
            %391 = vst [vmem:[%s373 + $0x40] sm:$0xff] %v390
            %v392 = vld [vmem:[%s372 + $0x48] sm:$0xff]
            %393 = vst [vmem:[%s373 + $0x48] sm:$0xff] %v392
            %v394 = vld [vmem:[%s372 + $0x50] sm:$0xff]
            %395 = vst [vmem:[%s373 + $0x50] sm:$0xff] %v394
            %v396 = vld [vmem:[%s372 + $0x58] sm:$0xff]
            %397 = vst [vmem:[%s373 + $0x58] sm:$0xff] %v396
            %v398 = vld [vmem:[%s372 + $0x60] sm:$0xff]
            %399 = vst [vmem:[%s373 + $0x60] sm:$0xff] %v398
            %v400 = vld [vmem:[%s372 + $0x68] sm:$0xff]
            %401 = vst [vmem:[%s373 + $0x68] sm:$0xff] %v400
            %v402 = vld [vmem:[%s372 + $0x70] sm:$0xff]
            %403 = vst [vmem:[%s373 + $0x70] sm:$0xff] %v402
            %v404 = vld [vmem:[%s372 + $0x78] sm:$0xff]
            %405 = vst [vmem:[%s373 + $0x78] sm:$0xff] %v404
          $region63: #{reverse.0} parent=57 // loop_footer
            %s371 = sadd.s32 1, %s367
          $region64: #{reverse.0} parent=57 // loop_footer_branch
            %366 = sbr.rel target = $region60
          $region65: #{reverse.0} parent=57 // loop_exit
            _
        $region58: #{reverse.0} parent=42 // pred_fallthru
          _
        // Predicated region
        $region66: #{reverse.0} parent=42 // pred_check
          _
        $region67: #{reverse.0} parent=42 // pred_check_branch
          %407 = sbr.rel target = $region69
        $region68: #{reverse.0} parent=42 // pred_region
          _
        $region69: #{reverse.0} parent=42 // pred_fallthru
          _
      $region43: #{reverse.0} parent=38 // pred_fallthru
        _
      // Predicated region
      $region44: #{reverse.0} parent=38 // pred_check
        _
      $region45: #{reverse.0} parent=38 // pred_check_branch
        %322 = sbr.rel target = $region47
      $region46: #{reverse.0} parent=38 // pred_region
        loop: start=0, step=1, limit=1
        $region48: #{reverse.0} parent=46 // loop_pre_header
          _
        $region49: #{reverse.0} parent=46 // loop_header
          %s325 = sphi 0, %s329
          %p326 = scmp.ge.s32.totalorder %s325, 1
          %s330 = sphi [#allocation1], [#allocation1]
          %s331 = sphi %s1, %s1
        $region50: #{reverse.0} parent=46 // loop_header_branch
          %328 = sbr.rel (%p326) target = $region54
        $region51: #{reverse.0} parent=46 // loop_body
          %v332 = vld [vmem:[%s330] sm:$0xff]
          %333 = vst [vmem:[%s331] sm:$0xff] %v332
          %v334 = vld [vmem:[%s330 + $0x8] sm:$0xff]
          %335 = vst [vmem:[%s331 + $0x8] sm:$0xff] %v334
          %v336 = vld [vmem:[%s330 + $0x10] sm:$0xff]
          %337 = vst [vmem:[%s331 + $0x10] sm:$0xff] %v336
          %v338 = vld [vmem:[%s330 + $0x18] sm:$0xff]
          %339 = vst [vmem:[%s331 + $0x18] sm:$0xff] %v338
          %v340 = vld [vmem:[%s330 + $0x20] sm:$0xff]
          %341 = vst [vmem:[%s331 + $0x20] sm:$0xff] %v340
          %v342 = vld [vmem:[%s330 + $0x28] sm:$0xff]
          %343 = vst [vmem:[%s331 + $0x28] sm:$0xff] %v342
          %v344 = vld [vmem:[%s330 + $0x30] sm:$0xff]
          %345 = vst [vmem:[%s331 + $0x30] sm:$0xff] %v344
          %v346 = vld [vmem:[%s330 + $0x38] sm:$0xff]
          %347 = vst [vmem:[%s331 + $0x38] sm:$0xff] %v346
          %v348 = vld [vmem:[%s330 + $0x40] sm:$0xff]
          %349 = vst [vmem:[%s331 + $0x40] sm:$0xff] %v348
          %v350 = vld [vmem:[%s330 + $0x48] sm:$0xff]
          %351 = vst [vmem:[%s331 + $0x48] sm:$0xff] %v350
          %v352 = vld [vmem:[%s330 + $0x50] sm:$0xff]
          %353 = vst [vmem:[%s331 + $0x50] sm:$0xff] %v352
          %v354 = vld [vmem:[%s330 + $0x58] sm:$0xff]
          %355 = vst [vmem:[%s331 + $0x58] sm:$0xff] %v354
          %v356 = vld [vmem:[%s330 + $0x60] sm:$0xff]
          %357 = vst [vmem:[%s331 + $0x60] sm:$0xff] %v356
          %v358 = vld [vmem:[%s330 + $0x68] sm:$0xff]
          %359 = vst [vmem:[%s331 + $0x68] sm:$0xff] %v358
          %v360 = vld [vmem:[%s330 + $0x70] sm:$0xff]
          %361 = vst [vmem:[%s331 + $0x70] sm:$0xff] %v360
          %v362 = vld [vmem:[%s330 + $0x78] sm:$0xff]
          %363 = vst [vmem:[%s331 + $0x78] sm:$0xff] %v362
        $region52: #{reverse.0} parent=46 // loop_footer
          %s329 = sadd.s32 1, %s325
        $region53: #{reverse.0} parent=46 // loop_footer_branch
          %324 = sbr.rel target = $region49
        $region54: #{reverse.0} parent=46 // loop_exit
          _
      $region47: #{reverse.0} parent=38 // pred_fallthru
        _
    $region39: #{reverse.0} parent=1 // pred_fallthru
      _
    %408 = vnop

// kernel: _lambda_.5
$region0: #{_lambda_.5}
  #allocation0 [shape = 'u32[]', space=smem, size = 0x4, offset = 0x4, fixed_abs, tag = 'smem constant byte address 0x4 - core index']
  #allocation1 [shape = 'u32[144,128]{1,0:T(1,128)}', space=vmem, size = 0x12000, scoped, tag = 'internal scratch']
  %s0 = inlined_call_operand.vmem [shape: f32[512,32], index: 0, kind: input, shape index: {}]
  %s1 = inlined_call_operand.vmem [shape: f32[512,8], index: 1, kind: input, shape index: {}]
  %s2 = inlined_call_operand.vmem [shape: f32[32,128], index: 2, kind: input, shape index: {}]
  %s3 = inlined_call_operand.vmem [shape: f32[8,128], index: 3, kind: input, shape index: {}]
  %s4 = inlined_call_operand.vmem [shape: f32[1,128], index: 4, kind: input, shape index: {}]
  %s5 = inlined_call_operand.hbm [shape: f32[512,128], index: 5, kind: output, shape index: {}]
  %s6 = sld [smem:[#allocation0]]
  $region53: #{_lambda_.5} parent=0
    _
  %s8 = ssub.s32 1, %s6
  %s9 = scalar_select 0, %s8, %s6
  $region1: #{_lambda_.5} parent=0
    #allocation2 [shape = 'u8[262144]{0}', space=vmem, size = 0x40000, scoped, tag = 'output window, operand 0']
    #allocation3 [shape = 's32[2]{0}', space=sflag, size = 0x8, scoped, tag = 'scoped memory for _lambda_.5']
    %10 = vsyncpa [#allocation3], 0
    %s11 = scalar_lea.sflag [#allocation3], 1
    %12 = vsyncpa %s11, 0
    loop: start=0, step=1, limit=4
    $region2: #{_lambda_.5} parent=1 // loop_pre_header
      _
    $region3: #{_lambda_.5} parent=1 // loop_header
      %s14 = sphi 0, %s18
      %p15 = scmp.ge.s32.totalorder %s14, 4
      %s24 = sphi 0, %s26
      %s27 = sphi 0, %s24
      %s28 = sphi 0, %s27
      %s44 = sphi 0, %s28
      %s50 = sphi 0, %s52
      %s53 = sphi 0, %s50
      %s54 = sphi 0, %s53
      %s70 = sphi 0, %s54
      %s74 = sphi 0, %s74
      %s76 = sphi 0, %s74
      %s77 = sphi 0, %s76
      %s91 = sphi 0, %s77
      %s95 = sphi 0, %s95
      %s97 = sphi 0, %s95
      %s98 = sphi 0, %s97
      %s112 = sphi 0, %s98
      %s116 = sphi 0, %s116
      %s118 = sphi 0, %s116
      %s119 = sphi 0, %s118
      %s133 = sphi 0, %s119
      %s139 = sphi 0, %s141
      %s142 = sphi 0, %s139
      %s143 = sphi 0, %s142
      %s159 = sphi 0, %s143
    $region4: #{_lambda_.5} parent=1 // loop_header_branch
      %17 = sbr.rel (%p15) target = $region8
    $region5: #{_lambda_.5} parent=1 // loop_body
      %s19 = ssub.s32 %s14, 1
      %s20 = ssub.s32 %s14, 2
      %s21 = sadd.s32 %s14, 1
      %s22 = ssub.s32 %s14, %s21
      %p23 = scmp.eq.s32.totalorder %s22, 0
      %s25 = sadd.s32 %s24, 1
      %s26 = scalar_select %p23, %s24, %s25
      %p29 = pneg %p23
      %p30 = scmp.eq.s32.totalorder %s14, 1
      %p31 = por %p29, %p30
      %p32 = scmp.ne.s32.totalorder %s24, %s27
      %p33 = scmp.eq.s32.totalorder %s14, 0
      %p34 = por %p32, %p33
      %p35 = scmp.ne.s32.totalorder %s24, %s27
      %p36 = scmp.eq.s32.totalorder %s19, 1
      %p37 = por %p35, %p36
      %p38 = scmp.ne.s32.totalorder %s27, %s28
      %p39 = scmp.eq.s32.totalorder %s19, 0
      %p40 = por %p38, %p39
      %p41 = scmp.ne.s32.totalorder %s27, %s28
      %p42 = scmp.eq.s32.totalorder %s20, 1
      %p43 = por %p41, %p42
      %p45 = scmp.ne.s32.totalorder %s28, %s44
      %p46 = scmp.eq.s32.totalorder %s20, 0
      %p47 = por %p45, %p46
      %s48 = ssub.s32 %s14, %s21
      %p49 = scmp.eq.s32.totalorder %s48, 0
      %s51 = sadd.s32 %s50, 1
      %s52 = scalar_select %p49, %s50, %s51
      %p55 = pneg %p49
      %p56 = scmp.eq.s32.totalorder %s14, 1
      %p57 = por %p55, %p56
      %p58 = scmp.ne.s32.totalorder %s50, %s53
      %p59 = scmp.eq.s32.totalorder %s14, 0
      %p60 = por %p58, %p59
      %p61 = scmp.ne.s32.totalorder %s50, %s53
      %p62 = scmp.eq.s32.totalorder %s19, 1
      %p63 = por %p61, %p62
      %p64 = scmp.ne.s32.totalorder %s53, %s54
      %p65 = scmp.eq.s32.totalorder %s19, 0
      %p66 = por %p64, %p65
      %p67 = scmp.ne.s32.totalorder %s53, %s54
      %p68 = scmp.eq.s32.totalorder %s20, 1
      %p69 = por %p67, %p68
      %p71 = scmp.ne.s32.totalorder %s54, %s70
      %p72 = scmp.eq.s32.totalorder %s20, 0
      %p73 = por %p71, %p72
      %s75 = sadd.s32 %s74, 1
      %p78 = scmp.eq.s32.totalorder %s14, 1
      %p79 = scmp.ne.s32.totalorder %s74, %s76
      %p80 = scmp.eq.s32.totalorder %s14, 0
      %p81 = por %p79, %p80
      %p82 = scmp.ne.s32.totalorder %s74, %s76
      %p83 = scmp.eq.s32.totalorder %s19, 1
      %p84 = por %p82, %p83
      %p85 = scmp.ne.s32.totalorder %s76, %s77
      %p86 = scmp.eq.s32.totalorder %s19, 0
      %p87 = por %p85, %p86
      %p88 = scmp.ne.s32.totalorder %s76, %s77
      %p89 = scmp.eq.s32.totalorder %s20, 1
      %p90 = por %p88, %p89
      %p92 = scmp.ne.s32.totalorder %s77, %s91
      %p93 = scmp.eq.s32.totalorder %s20, 0
      %p94 = por %p92, %p93
      %s96 = sadd.s32 %s95, 1
      %p99 = scmp.eq.s32.totalorder %s14, 1
      %p100 = scmp.ne.s32.totalorder %s95, %s97
      %p101 = scmp.eq.s32.totalorder %s14, 0
      %p102 = por %p100, %p101
      %p103 = scmp.ne.s32.totalorder %s95, %s97
      %p104 = scmp.eq.s32.totalorder %s19, 1
      %p105 = por %p103, %p104
      %p106 = scmp.ne.s32.totalorder %s97, %s98
      %p107 = scmp.eq.s32.totalorder %s19, 0
      %p108 = por %p106, %p107
      %p109 = scmp.ne.s32.totalorder %s97, %s98
      %p110 = scmp.eq.s32.totalorder %s20, 1
      %p111 = por %p109, %p110
      %p113 = scmp.ne.s32.totalorder %s98, %s112
      %p114 = scmp.eq.s32.totalorder %s20, 0
      %p115 = por %p113, %p114
      %s117 = sadd.s32 %s116, 1
      %p120 = scmp.eq.s32.totalorder %s14, 1
      %p121 = scmp.ne.s32.totalorder %s116, %s118
      %p122 = scmp.eq.s32.totalorder %s14, 0
      %p123 = por %p121, %p122
      %p124 = scmp.ne.s32.totalorder %s116, %s118
      %p125 = scmp.eq.s32.totalorder %s19, 1
      %p126 = por %p124, %p125
      %p127 = scmp.ne.s32.totalorder %s118, %s119
      %p128 = scmp.eq.s32.totalorder %s19, 0
      %p129 = por %p127, %p128
      %p130 = scmp.ne.s32.totalorder %s118, %s119
      %p131 = scmp.eq.s32.totalorder %s20, 1
      %p132 = por %p130, %p131
      %p134 = scmp.ne.s32.totalorder %s119, %s133
      %p135 = scmp.eq.s32.totalorder %s20, 0
      %p136 = por %p134, %p135
      %s137 = ssub.s32 %s14, %s21
      %p138 = scmp.eq.s32.totalorder %s137, 0
      %s140 = sadd.s32 %s139, 1
      %s141 = scalar_select %p138, %s139, %s140
      %p144 = pneg %p138
      %p145 = scmp.eq.s32.totalorder %s14, 1
      %p146 = por %p144, %p145
      %p147 = scmp.ne.s32.totalorder %s139, %s142
      %p148 = scmp.eq.s32.totalorder %s14, 0
      %p149 = por %p147, %p148
      %p150 = scmp.ne.s32.totalorder %s139, %s142
      %p151 = scmp.eq.s32.totalorder %s19, 1
      %p152 = por %p150, %p151
      %p153 = scmp.ne.s32.totalorder %s142, %s143
      %p154 = scmp.eq.s32.totalorder %s19, 0
      %p155 = por %p153, %p154
      %p156 = scmp.ne.s32.totalorder %s142, %s143
      %p157 = scmp.eq.s32.totalorder %s20, 1
      %p158 = por %p156, %p157
      %p160 = scmp.ne.s32.totalorder %s143, %s159
      %p161 = scmp.eq.s32.totalorder %s20, 0
      %p162 = por %p160, %p161
      %p163 = scmp.le.s32.totalorder 1, %s14
      %p164 = scmp.lt.s32.totalorder %s14, 3
      %p165 = pnand %p163, %p164
      %p166 = pneg %p165
      // Predicated region
      $region9: #{_lambda_.5} parent=5 // pred_check
        _
      $region10: #{_lambda_.5} parent=5 // pred_check_branch
        %168 = sbr.rel (%p165) target = $region12
      $region11: #{_lambda_.5} parent=5 // pred_region
        %s169 = ssub.s32 %s14, 1
        // Predicated region
        $region13: #{_lambda_.5} parent=11 // pred_check
          %p170 = pneg %p87
        $region14: #{_lambda_.5} parent=11 // pred_check_branch
          %172 = sbr.rel (%p170) target = $region16
        $region15: #{_lambda_.5} parent=11 // pred_region
          _
        $region16: #{_lambda_.5} parent=11 // pred_fallthru
          _
        // Predicated region
        $region17: #{_lambda_.5} parent=11 // pred_check
          %p173 = pneg %p108
        $region18: #{_lambda_.5} parent=11 // pred_check_branch
          %175 = sbr.rel (%p173) target = $region20
        $region19: #{_lambda_.5} parent=11 // pred_region
          _
        $region20: #{_lambda_.5} parent=11 // pred_fallthru
          _
        // Predicated region
        $region21: #{_lambda_.5} parent=11 // pred_check
          %p176 = pneg %p129
        $region22: #{_lambda_.5} parent=11 // pred_check_branch
          %178 = sbr.rel (%p176) target = $region24
        $region23: #{_lambda_.5} parent=11 // pred_region
          _
        $region24: #{_lambda_.5} parent=11 // pred_fallthru
          _
      $region12: #{_lambda_.5} parent=5 // pred_fallthru
        _
      %p179 = scmp.lt.s32.totalorder %s14, 2
      // Predicated region
      $region25: #{_lambda_.5} parent=5 // pred_check
        %p180 = pneg %p179
      $region26: #{_lambda_.5} parent=5 // pred_check_branch
        %182 = sbr.rel (%p180) target = $region28
      $region27: #{_lambda_.5} parent=5 // pred_region
        // Predicated region
        $region29: #{_lambda_.5} parent=27 // pred_check
          %p183 = pneg %p34
        $region30: #{_lambda_.5} parent=27 // pred_check_branch
          %185 = sbr.rel (%p183) target = $region32
        $region31: #{_lambda_.5} parent=27 // pred_region
          %s186 = smul.u32 32, %s14
          %p187 = scmp.lt.s32.totalorder %s186, 63
          %s188 = scalar_select %p187, %s186, 63
          %s189 = smul.addr %s188, 8
          %s190 = scalar_lea.vmem %s0, %s189
          %s191 = smul.u32 32, %s14
        $region32: #{_lambda_.5} parent=27 // pred_fallthru
          _
        // Predicated region
        $region33: #{_lambda_.5} parent=27 // pred_check
          %p192 = pneg %p60
        $region34: #{_lambda_.5} parent=27 // pred_check_branch
          %194 = sbr.rel (%p192) target = $region36
        $region35: #{_lambda_.5} parent=27 // pred_region
          %s195 = smul.u32 32, %s14
          %p196 = scmp.lt.s32.totalorder %s195, 63
          %s197 = scalar_select %p196, %s195, 63
          %s198 = smul.addr %s197, 8
          %s199 = scalar_lea.vmem %s1, %s198
          %s200 = smul.u32 32, %s14
        $region36: #{_lambda_.5} parent=27 // pred_fallthru
          _
      $region28: #{_lambda_.5} parent=5 // pred_fallthru
        _
      %p201 = scmp.le.s32.totalorder 1, %s14
      %p202 = scmp.lt.s32.totalorder %s14, 3
      %p203 = pnand %p201, %p202
      %p204 = pneg %p203
      // Predicated region
      $region37: #{_lambda_.5} parent=5 // pred_check
        _
      $region38: #{_lambda_.5} parent=5 // pred_check_branch
        %206 = sbr.rel (%p203) target = $region40
      $region39: #{_lambda_.5} parent=5 // pred_region
        %s207 = ssub.s32 %s14, 1
        %s208 = smul.u32 32, %s19
        %p209 = scmp.lt.s32.totalorder %s208, 63
        %s210 = scalar_select %p209, %s208, 63
        %s211 = smul.addr %s210, 8
        %s212 = scalar_lea.vmem %s0, %s211
        %p213 = pneg %p40
        %p214 = pneg %p37
        %s215 = smul.u32 32, %s19
        %p216 = scmp.lt.s32.totalorder %s215, 63
        %s217 = scalar_select %p216, %s215, 63
        %s218 = smul.addr %s217, 8
        %s219 = scalar_lea.vmem %s1, %s218
        %p220 = pneg %p66
        %p221 = pneg %p63
        %p222 = pneg %p87
        %p223 = pneg %p84
        %p224 = pneg %p108
        %p225 = pneg %p105
        %p226 = pneg %p129
        %p227 = pneg %p126
        %p228 = pneg %p155
        %p229 = pneg %p152
        %s230 = sand.u32 %s142, 1
        %s231 = scalar_lea.sflag [#allocation3], %s230
        %s232 = sand.u32 %s142, 1
        %s233 = smul.addr %s232, 256
        %s234 = scalar_lea.vmem [#allocation2], %s233
        %s235 = smul.u32 32, %s19
        %p236 = scmp.lt.s32.totalorder %s235, 63
        %s237 = scalar_select %p236, %s235, 63
        %s238 = smul.addr %s237, 8
        %s239 = scalar_lea.vmem %s0, %s238
        %s240 = smul.u32 32, %s19
        %s241 = smul.u32 32, %s19
        %p242 = scmp.lt.s32.totalorder %s241, 63
        %s243 = scalar_select %p242, %s241, 63
        %s244 = smul.addr %s243, 8
        %s245 = scalar_lea.vmem %s1, %s244
        %s246 = smul.u32 32, %s19
        %s247 = smul.u32 32, %s19
        %v248 = vld [vmem:[%s239] sm:$0xff]
        %v249 = vld [vmem:[%s239 + $0x8] sm:$0xff]
        %v250 = vld [vmem:[%s239 + $0x10] sm:$0xff]
        %v251 = vld [vmem:[%s239 + $0x18] sm:$0xff]
        %v252 = vld [vmem:[%s239 + $0x20] sm:$0xff]
        %v253 = vld [vmem:[%s239 + $0x28] sm:$0xff]
        %v254 = vld [vmem:[%s239 + $0x30] sm:$0xff]
        %v255 = vld [vmem:[%s239 + $0x38] sm:$0xff]
        %v256 = vld [vmem:[%s239 + $0x40] sm:$0xff]
        %v257 = vld [vmem:[%s239 + $0x48] sm:$0xff]
        %v258 = vld [vmem:[%s239 + $0x50] sm:$0xff]
        %v259 = vld [vmem:[%s239 + $0x58] sm:$0xff]
        %v260 = vld [vmem:[%s239 + $0x60] sm:$0xff]
        %v261 = vld [vmem:[%s239 + $0x68] sm:$0xff]
        %v262 = vld [vmem:[%s239 + $0x70] sm:$0xff]
        %v263 = vld [vmem:[%s239 + $0x78] sm:$0xff]
        %v264 = vld [vmem:[%s239 + $0x80] sm:$0xff]
        %v265 = vld [vmem:[%s239 + $0x88] sm:$0xff]
        %v266 = vld [vmem:[%s239 + $0x90] sm:$0xff]
        %v267 = vld [vmem:[%s239 + $0x98] sm:$0xff]
        %v268 = vld [vmem:[%s239 + $0xa0] sm:$0xff]
        %v269 = vld [vmem:[%s239 + $0xa8] sm:$0xff]
        %v270 = vld [vmem:[%s239 + $0xb0] sm:$0xff]
        %v271 = vld [vmem:[%s239 + $0xb8] sm:$0xff]
        %v272 = vld [vmem:[%s239 + $0xc0] sm:$0xff]
        %v273 = vld [vmem:[%s239 + $0xc8] sm:$0xff]
        %v274 = vld [vmem:[%s239 + $0xd0] sm:$0xff]
        %v275 = vld [vmem:[%s239 + $0xd8] sm:$0xff]
        %v276 = vld [vmem:[%s239 + $0xe0] sm:$0xff]
        %v277 = vld [vmem:[%s239 + $0xe8] sm:$0xff]
        %v278 = vld [vmem:[%s239 + $0xf0] sm:$0xff]
        %v279 = vld [vmem:[%s239 + $0xf8] sm:$0xff]
        %v280 = vld [vmem:[%s2] sm:$0xff]
        %v281 = vld [vmem:[%s2 + $0x8] sm:$0xff]
        %v282 = vld [vmem:[%s2 + $0x10] sm:$0xff]
        %v283 = vld [vmem:[%s2 + $0x18] sm:$0xff]
        %v284 = vld [vmem:[%s245] sm:$0xff]
        %v285 = vld [vmem:[%s245 + $0x8] sm:$0xff]
        %v286 = vld [vmem:[%s245 + $0x10] sm:$0xff]
        %v287 = vld [vmem:[%s245 + $0x18] sm:$0xff]
        %v288 = vld [vmem:[%s245 + $0x20] sm:$0xff]
        %v289 = vld [vmem:[%s245 + $0x28] sm:$0xff]
        %v290 = vld [vmem:[%s245 + $0x30] sm:$0xff]
        %v291 = vld [vmem:[%s245 + $0x38] sm:$0xff]
        %v292 = vld [vmem:[%s245 + $0x40] sm:$0xff]
        %v293 = vld [vmem:[%s245 + $0x48] sm:$0xff]
        %v294 = vld [vmem:[%s245 + $0x50] sm:$0xff]
        %v295 = vld [vmem:[%s245 + $0x58] sm:$0xff]
        %v296 = vld [vmem:[%s245 + $0x60] sm:$0xff]
        %v297 = vld [vmem:[%s245 + $0x68] sm:$0xff]
        %v298 = vld [vmem:[%s245 + $0x70] sm:$0xff]
        %v299 = vld [vmem:[%s245 + $0x78] sm:$0xff]
        %v300 = vld [vmem:[%s245 + $0x80] sm:$0xff]
        %v301 = vld [vmem:[%s245 + $0x88] sm:$0xff]
        %v302 = vld [vmem:[%s245 + $0x90] sm:$0xff]
        %v303 = vld [vmem:[%s245 + $0x98] sm:$0xff]
        %v304 = vld [vmem:[%s245 + $0xa0] sm:$0xff]
        %v305 = vld [vmem:[%s245 + $0xa8] sm:$0xff]
        %v306 = vld [vmem:[%s245 + $0xb0] sm:$0xff]
        %v307 = vld [vmem:[%s245 + $0xb8] sm:$0xff]
        %v308 = vld [vmem:[%s245 + $0xc0] sm:$0xff]
        %v309 = vld [vmem:[%s245 + $0xc8] sm:$0xff]
        %v310 = vld [vmem:[%s245 + $0xd0] sm:$0xff]
        %v311 = vld [vmem:[%s245 + $0xd8] sm:$0xff]
        %v312 = vld [vmem:[%s245 + $0xe0] sm:$0xff]
        %v313 = vld [vmem:[%s245 + $0xe8] sm:$0xff]
        %v314 = vld [vmem:[%s245 + $0xf0] sm:$0xff]
        %v315 = vld [vmem:[%s245 + $0xf8] sm:$0xff]
        %v316 = vld [vmem:[%s3] sm:$0xff]
        %vm317 = vcmask 64512
        %v319 = vsel %vm317, %v284, 0
        %v322 = vsel %vm317, %v285, 0
        %v325 = vsel %vm317, %v286, 0
        %v328 = vsel %vm317, %v287, 0
        %v331 = vsel %vm317, %v288, 0
        %v334 = vsel %vm317, %v289, 0
        %v337 = vsel %vm317, %v290, 0
        %v340 = vsel %vm317, %v291, 0
        %v343 = vsel %vm317, %v292, 0
        %v346 = vsel %vm317, %v293, 0
        %v349 = vsel %vm317, %v294, 0
        %v352 = vsel %vm317, %v295, 0
        %v355 = vsel %vm317, %v296, 0
        %v358 = vsel %vm317, %v297, 0
        %v361 = vsel %vm317, %v298, 0
        %v364 = vsel %vm317, %v299, 0
        %v367 = vsel %vm317, %v300, 0
        %v370 = vsel %vm317, %v301, 0
        %v373 = vsel %vm317, %v302, 0
        %v376 = vsel %vm317, %v303, 0
        %v379 = vsel %vm317, %v304, 0
        %v382 = vsel %vm317, %v305, 0
        %v385 = vsel %vm317, %v306, 0
        %v388 = vsel %vm317, %v307, 0
        %v391 = vsel %vm317, %v308, 0
        %v394 = vsel %vm317, %v309, 0
        %v397 = vsel %vm317, %v310, 0
        %v400 = vsel %vm317, %v311, 0
        %v403 = vsel %vm317, %v312, 0
        %v406 = vsel %vm317, %v313, 0
        %v409 = vsel %vm317, %v314, 0
        %v412 = vsel %vm317, %v315, 0
        %414 = vmatprep.subr.mxu0 0.0
        %415 = vmatpush1.msra.mxu0 %v316
        %416 = vmatprep.subr.mxu0 0.0
        %417 = vmatpush1.msra.mxu0 0.0
        %418 = vmatprep.subr.mxu0 0.0
        %419 = vmatpush1.msra.mxu0 0.0
        %420 = vmatprep.subr.mxu0 0.0
        %421 = vmatpush1.msra.mxu0 0.0
        %422 = vmatprep.subr.mxu0 0.0
        %423 = vmatpush1.msra.mxu0 0.0
        %424 = vmatprep.subr.mxu0 0.0
        %425 = vmatpush1.msra.mxu0 0.0
        %426 = vmatprep.subr.mxu0 0.0
        %427 = vmatpush1.msra.mxu0 0.0
        %428 = vmatprep.subr.mxu0 0.0
        %429 = vmatpush1.msra.mxu0 0.0
        %430 = vmatprep.subr.mxu0 0.0
        %431 = vmatpush1.msra.mxu0 0.0
        %432 = vmatprep.subr.mxu0 0.0
        %433 = vmatpush1.msra.mxu0 0.0
        %434 = vmatprep.subr.mxu0 0.0
        %435 = vmatpush1.msra.mxu0 0.0
        %436 = vmatprep.subr.mxu0 0.0
        %437 = vmatpush1.msra.mxu0 0.0
        %438 = vmatprep.subr.mxu0 0.0
        %439 = vmatpush1.msra.mxu0 0.0
        %440 = vmatprep.subr.mxu0 0.0
        %441 = vmatpush1.msra.mxu0 0.0
        %442 = vmatprep.subr.mxu0 0.0
        %443 = vmatpush1.msra.mxu0 0.0
        %444 = vmatprep.subr.mxu0 0.0
        %445 = vmatpush1.msra.mxu0 0.0
        %446 = vmatprep.subr.mxu0 0.0
        %447 = vmatpush1.msra.mxu0 0.0
        %448 = vmatprep.subr.mxu0 0.0
        %449 = vmatpush1.msra.mxu0 0.0
        %450 = vmatprep.subr.mxu0 0.0
        %451 = vmatpush1.msra.mxu0 0.0
        %452 = vmatprep.subr.mxu0 0.0
        %453 = vmatpush1.msra.mxu0 0.0
        %454 = vmatprep.subr.mxu0 0.0
        %455 = vmatpush1.msra.mxu0 0.0
        %456 = vmatprep.subr.mxu0 0.0
        %457 = vmatpush1.msra.mxu0 0.0
        %458 = vmatprep.subr.mxu0 0.0
        %459 = vmatpush1.msra.mxu0 0.0
        %460 = vmatprep.subr.mxu0 0.0
        %461 = vmatpush1.msra.mxu0 0.0
        %462 = vmatprep.subr.mxu0 0.0
        %463 = vmatpush1.msra.mxu0 0.0
        %464 = vmatprep.subr.mxu0 0.0
        %465 = vmatpush1.msra.mxu0 0.0
        %466 = vmatprep.subr.mxu0 0.0
        %467 = vmatpush1.msra.mxu0 0.0
        %468 = vmatprep.subr.mxu0 0.0
        %469 = vmatpush1.msra.mxu0 0.0
        %470 = vmatprep.subr.mxu0 0.0
        %471 = vmatpush1.msra.mxu0 0.0
        %472 = vmatprep.subr.mxu0 0.0
        %473 = vmatpush1.msra.mxu0 0.0
        %474 = vmatprep.subr.mxu0 0.0
        %475 = vmatpush1.msra.mxu0 0.0
        %476 = vmatprep.subr.mxu0 0.0
        %477 = vmatpush1.msra.mxu0 0.0
        %478 = vmatprep.mubr.f32.mxu0 0.0
        %479 = vmatmul.mubr.f32.gmra.mrb[0].mxu0 %v319
        %v480 = vpop.f32.mrb[0].mxu0
        %v481 = vadd.f32 0.0, %v480
        %v482 = vpop.f32.mrb[0].mxu0
        %483 = vmatprep.mubr.f32.mxu0 0.0
        %484 = vmatmul.mubr.f32.gmra.mrb[0].mxu0 %v322
        %v485 = vpop.f32.mrb[0].mxu0
        %v486 = vadd.f32 0.0, %v485
        %v487 = vpop.f32.mrb[0].mxu0
        %488 = vmatprep.mubr.f32.mxu0 0.0
        %489 = vmatmul.mubr.f32.gmra.mrb[0].mxu0 %v325
        %v490 = vpop.f32.mrb[0].mxu0
        %v491 = vadd.f32 0.0, %v490
        %v492 = vpop.f32.mrb[0].mxu0
        %493 = vmatprep.mubr.f32.mxu0 0.0
        %494 = vmatmul.mubr.f32.gmra.mrb[0].mxu0 %v328
        %v495 = vpop.f32.mrb[0].mxu0
        %v496 = vadd.f32 0.0, %v495
        %v497 = vpop.f32.mrb[0].mxu0
        %498 = vmatprep.mubr.f32.mxu0 0.0
        %499 = vmatmul.mubr.f32.gmra.mrb[0].mxu0 %v331
        %v500 = vpop.f32.mrb[0].mxu0
        %v501 = vadd.f32 0.0, %v500
        %v502 = vpop.f32.mrb[0].mxu0
        %503 = vmatprep.mubr.f32.mxu0 0.0
        %504 = vmatmul.mubr.f32.gmra.mrb[0].mxu0 %v334
        %v505 = vpop.f32.mrb[0].mxu0
        %v506 = vadd.f32 0.0, %v505
        %v507 = vpop.f32.mrb[0].mxu0
        %508 = vmatprep.mubr.f32.mxu0 0.0
        %509 = vmatmul.mubr.f32.gmra.mrb[0].mxu0 %v337
        %v510 = vpop.f32.mrb[0].mxu0
        %v511 = vadd.f32 0.0, %v510
        %v512 = vpop.f32.mrb[0].mxu0
        %513 = vmatprep.mubr.f32.mxu0 0.0
        %514 = vmatmul.mubr.f32.gmra.mrb[0].mxu0 %v340
        %v515 = vpop.f32.mrb[0].mxu0
        %v516 = vadd.f32 0.0, %v515
        %v517 = vpop.f32.mrb[0].mxu0
        %518 = vmatprep.mubr.f32.mxu0 0.0
        %519 = vmatmul.mubr.f32.gmra.mrb[0].mxu0 %v343
        %v520 = vpop.f32.mrb[0].mxu0
        %v521 = vadd.f32 0.0, %v520
        %v522 = vpop.f32.mrb[0].mxu0
        %523 = vmatprep.mubr.f32.mxu0 0.0
        %524 = vmatmul.mubr.f32.gmra.mrb[0].mxu0 %v346
        %v525 = vpop.f32.mrb[0].mxu0
        %v526 = vadd.f32 0.0, %v525
        %v527 = vpop.f32.mrb[0].mxu0
        %528 = vmatprep.mubr.f32.mxu0 0.0
        %529 = vmatmul.mubr.f32.gmra.mrb[0].mxu0 %v349
        %v530 = vpop.f32.mrb[0].mxu0
        %v531 = vadd.f32 0.0, %v530
        %v532 = vpop.f32.mrb[0].mxu0
        %533 = vmatprep.mubr.f32.mxu0 0.0
        %534 = vmatmul.mubr.f32.gmra.mrb[0].mxu0 %v352
        %v535 = vpop.f32.mrb[0].mxu0
        %v536 = vadd.f32 0.0, %v535
        %v537 = vpop.f32.mrb[0].mxu0
        %538 = vmatprep.mubr.f32.mxu0 0.0
        %539 = vmatmul.mubr.f32.gmra.mrb[0].mxu0 %v355
        %v540 = vpop.f32.mrb[0].mxu0
        %v541 = vadd.f32 0.0, %v540
        %v542 = vpop.f32.mrb[0].mxu0
        %543 = vmatprep.mubr.f32.mxu0 0.0
        %544 = vmatmul.mubr.f32.gmra.mrb[0].mxu0 %v358
        %v545 = vpop.f32.mrb[0].mxu0
        %v546 = vadd.f32 0.0, %v545
        %v547 = vpop.f32.mrb[0].mxu0
        %548 = vmatprep.mubr.f32.mxu0 0.0
        %549 = vmatmul.mubr.f32.gmra.mrb[0].mxu0 %v361
        %v550 = vpop.f32.mrb[0].mxu0
        %v551 = vadd.f32 0.0, %v550
        %v552 = vpop.f32.mrb[0].mxu0
        %553 = vmatprep.mubr.f32.mxu0 0.0
        %554 = vmatmul.mubr.f32.gmra.mrb[0].mxu0 %v364
        %v555 = vpop.f32.mrb[0].mxu0
        %v556 = vadd.f32 0.0, %v555
        %v557 = vpop.f32.mrb[0].mxu0
        %558 = vmatprep.mubr.f32.mxu0 0.0
        %559 = vmatmul.mubr.f32.gmra.mrb[0].mxu0 %v367
        %v560 = vpop.f32.mrb[0].mxu0
        %v561 = vadd.f32 0.0, %v560
        %v562 = vpop.f32.mrb[0].mxu0
        %563 = vmatprep.mubr.f32.mxu0 0.0
        %564 = vmatmul.mubr.f32.gmra.mrb[0].mxu0 %v370
        %v565 = vpop.f32.mrb[0].mxu0
        %v566 = vadd.f32 0.0, %v565
        %v567 = vpop.f32.mrb[0].mxu0
        %568 = vmatprep.mubr.f32.mxu0 0.0
        %569 = vmatmul.mubr.f32.gmra.mrb[0].mxu0 %v373
        %v570 = vpop.f32.mrb[0].mxu0
        %v571 = vadd.f32 0.0, %v570
        %v572 = vpop.f32.mrb[0].mxu0
        %573 = vmatprep.mubr.f32.mxu0 0.0
        %574 = vmatmul.mubr.f32.gmra.mrb[0].mxu0 %v376
        %v575 = vpop.f32.mrb[0].mxu0
        %v576 = vadd.f32 0.0, %v575
        %v577 = vpop.f32.mrb[0].mxu0
        %578 = vmatprep.mubr.f32.mxu0 0.0
        %579 = vmatmul.mubr.f32.gmra.mrb[0].mxu0 %v379
        %v580 = vpop.f32.mrb[0].mxu0
        %v581 = vadd.f32 0.0, %v580
        %v582 = vpop.f32.mrb[0].mxu0
        %583 = vmatprep.mubr.f32.mxu0 0.0
        %584 = vmatmul.mubr.f32.gmra.mrb[0].mxu0 %v382
        %v585 = vpop.f32.mrb[0].mxu0
        %v586 = vadd.f32 0.0, %v585
        %v587 = vpop.f32.mrb[0].mxu0
        %588 = vmatprep.mubr.f32.mxu0 0.0
        %589 = vmatmul.mubr.f32.gmra.mrb[0].mxu0 %v385
        %v590 = vpop.f32.mrb[0].mxu0
        %v591 = vadd.f32 0.0, %v590
        %v592 = vpop.f32.mrb[0].mxu0
        %593 = vmatprep.mubr.f32.mxu0 0.0
        %594 = vmatmul.mubr.f32.gmra.mrb[0].mxu0 %v388
        %v595 = vpop.f32.mrb[0].mxu0
        %v596 = vadd.f32 0.0, %v595
        %v597 = vpop.f32.mrb[0].mxu0
        %598 = vmatprep.mubr.f32.mxu0 0.0
        %599 = vmatmul.mubr.f32.gmra.mrb[0].mxu0 %v391
        %v600 = vpop.f32.mrb[0].mxu0
        %v601 = vadd.f32 0.0, %v600
        %v602 = vpop.f32.mrb[0].mxu0
        %603 = vmatprep.mubr.f32.mxu0 0.0
        %604 = vmatmul.mubr.f32.gmra.mrb[0].mxu0 %v394
        %v605 = vpop.f32.mrb[0].mxu0
        %v606 = vadd.f32 0.0, %v605
        %v607 = vpop.f32.mrb[0].mxu0
        %608 = vmatprep.mubr.f32.mxu0 0.0
        %609 = vmatmul.mubr.f32.gmra.mrb[0].mxu0 %v397
        %v610 = vpop.f32.mrb[0].mxu0
        %v611 = vadd.f32 0.0, %v610
        %v612 = vpop.f32.mrb[0].mxu0
        %613 = vmatprep.mubr.f32.mxu0 0.0
        %614 = vmatmul.mubr.f32.gmra.mrb[0].mxu0 %v400
        %v615 = vpop.f32.mrb[0].mxu0
        %v616 = vadd.f32 0.0, %v615
        %v617 = vpop.f32.mrb[0].mxu0
        %618 = vmatprep.mubr.f32.mxu0 0.0
        %619 = vmatmul.mubr.f32.gmra.mrb[0].mxu0 %v403
        %v620 = vpop.f32.mrb[0].mxu0
        %v621 = vadd.f32 0.0, %v620
        %v622 = vpop.f32.mrb[0].mxu0
        %623 = vmatprep.mubr.f32.mxu0 0.0
        %624 = vmatmul.mubr.f32.gmra.mrb[0].mxu0 %v406
        %v625 = vpop.f32.mrb[0].mxu0
        %v626 = vadd.f32 0.0, %v625
        %v627 = vpop.f32.mrb[0].mxu0
        %628 = vmatprep.mubr.f32.mxu0 0.0
        %629 = vmatmul.mubr.f32.gmra.mrb[0].mxu0 %v409
        %v630 = vpop.f32.mrb[0].mxu0
        %v631 = vadd.f32 0.0, %v630
        %v632 = vpop.f32.mrb[0].mxu0
        %633 = vmatprep.mubr.f32.mxu0 0.0
        %634 = vmatmul.mubr.f32.gmra.mrb[0].mxu0 %v412
        %v635 = vpop.f32.mrb[0].mxu0
        %v636 = vadd.f32 0.0, %v635
        %v637 = vpop.f32.mrb[0].mxu0
        %638 = vdwg.mxu0
        %vm639 = vcmask 261120
        %v641 = vsel %vm639, %v248, 0
        %v644 = vsel %vm639, %v249, 0
        %v647 = vsel %vm639, %v250, 0
        %v650 = vsel %vm639, %v251, 0
        %v653 = vsel %vm639, %v252, 0
        %v656 = vsel %vm639, %v253, 0
        %v659 = vsel %vm639, %v254, 0
        %v662 = vsel %vm639, %v255, 0
        %v665 = vsel %vm639, %v256, 0
        %v668 = vsel %vm639, %v257, 0
        %v671 = vsel %vm639, %v258, 0
        %v674 = vsel %vm639, %v259, 0
        %v677 = vsel %vm639, %v260, 0
        %v680 = vsel %vm639, %v261, 0
        %v683 = vsel %vm639, %v262, 0
        %v686 = vsel %vm639, %v263, 0
        %v689 = vsel %vm639, %v264, 0
        %v692 = vsel %vm639, %v265, 0
        %v695 = vsel %vm639, %v266, 0
        %v698 = vsel %vm639, %v267, 0
        %v701 = vsel %vm639, %v268, 0
        %v704 = vsel %vm639, %v269, 0
        %v707 = vsel %vm639, %v270, 0
        %v710 = vsel %vm639, %v271, 0
        %v713 = vsel %vm639, %v272, 0
        %v716 = vsel %vm639, %v273, 0
        %v719 = vsel %vm639, %v274, 0
        %v722 = vsel %vm639, %v275, 0
        %v725 = vsel %vm639, %v276, 0
        %v728 = vsel %vm639, %v277, 0
        %v731 = vsel %vm639, %v278, 0
        %v734 = vsel %vm639, %v279, 0
        %736 = vmatprep.subr.mxu0 0.0
        %737 = vmatpush1.msra.mxu0 %v280
        %738 = vmatprep.subr.mxu0 0.0
        %739 = vmatpush1.msra.mxu0 %v281
        %740 = vmatprep.subr.mxu0 0.0
        %741 = vmatpush1.msra.mxu0 %v282
        %742 = vmatprep.subr.mxu0 0.0
        %743 = vmatpush1.msra.mxu0 %v283
        %744 = vmatprep.subr.mxu0 0.0
        %745 = vmatpush1.msra.mxu0 0.0
        %746 = vmatprep.subr.mxu0 0.0
        %747 = vmatpush1.msra.mxu0 0.0
        %748 = vmatprep.subr.mxu0 0.0
        %749 = vmatpush1.msra.mxu0 0.0
        %750 = vmatprep.subr.mxu0 0.0
        %751 = vmatpush1.msra.mxu0 0.0
        %752 = vmatprep.subr.mxu0 0.0
        %753 = vmatpush1.msra.mxu0 0.0
        %754 = vmatprep.subr.mxu0 0.0
        %755 = vmatpush1.msra.mxu0 0.0
        %756 = vmatprep.subr.mxu0 0.0
        %757 = vmatpush1.msra.mxu0 0.0
        %758 = vmatprep.subr.mxu0 0.0
        %759 = vmatpush1.msra.mxu0 0.0
        %760 = vmatprep.subr.mxu0 0.0
        %761 = vmatpush1.msra.mxu0 0.0
        %762 = vmatprep.subr.mxu0 0.0
        %763 = vmatpush1.msra.mxu0 0.0
        %764 = vmatprep.subr.mxu0 0.0
        %765 = vmatpush1.msra.mxu0 0.0
        %766 = vmatprep.subr.mxu0 0.0
        %767 = vmatpush1.msra.mxu0 0.0
        %768 = vmatprep.subr.mxu0 0.0
        %769 = vmatpush1.msra.mxu0 0.0
        %770 = vmatprep.subr.mxu0 0.0
        %771 = vmatpush1.msra.mxu0 0.0
        %772 = vmatprep.subr.mxu0 0.0
        %773 = vmatpush1.msra.mxu0 0.0
        %774 = vmatprep.subr.mxu0 0.0
        %775 = vmatpush1.msra.mxu0 0.0
        %776 = vmatprep.subr.mxu0 0.0
        %777 = vmatpush1.msra.mxu0 0.0
        %778 = vmatprep.subr.mxu0 0.0
        %779 = vmatpush1.msra.mxu0 0.0
        %780 = vmatprep.subr.mxu0 0.0
        %781 = vmatpush1.msra.mxu0 0.0
        %782 = vmatprep.subr.mxu0 0.0
        %783 = vmatpush1.msra.mxu0 0.0
        %784 = vmatprep.subr.mxu0 0.0
        %785 = vmatpush1.msra.mxu0 0.0
        %786 = vmatprep.subr.mxu0 0.0
        %787 = vmatpush1.msra.mxu0 0.0
        %788 = vmatprep.subr.mxu0 0.0
        %789 = vmatpush1.msra.mxu0 0.0
        %790 = vmatprep.subr.mxu0 0.0
        %791 = vmatpush1.msra.mxu0 0.0
        %792 = vmatprep.subr.mxu0 0.0
        %793 = vmatpush1.msra.mxu0 0.0
        %794 = vmatprep.subr.mxu0 0.0
        %795 = vmatpush1.msra.mxu0 0.0
        %796 = vmatprep.subr.mxu0 0.0
        %797 = vmatpush1.msra.mxu0 0.0
        %798 = vmatprep.subr.mxu0 0.0
        %799 = vmatpush1.msra.mxu0 0.0
        %800 = vmatprep.mubr.f32.mxu0 0.0
        %801 = vmatmul.mubr.f32.gmra.mrb[0].mxu0 %v641
        %v802 = vpop.f32.mrb[0].mxu0
        %v803 = vadd.f32 %v481, %v802
        %v804 = vpop.f32.mrb[0].mxu0
        %805 = vmatprep.mubr.f32.mxu0 0.0
        %806 = vmatmul.mubr.f32.gmra.mrb[0].mxu0 %v644
        %v807 = vpop.f32.mrb[0].mxu0
        %v808 = vadd.f32 %v486, %v807
        %v809 = vpop.f32.mrb[0].mxu0
        %810 = vmatprep.mubr.f32.mxu0 0.0
        %811 = vmatmul.mubr.f32.gmra.mrb[0].mxu0 %v647
        %v812 = vpop.f32.mrb[0].mxu0
        %v813 = vadd.f32 %v491, %v812
        %v814 = vpop.f32.mrb[0].mxu0
        %815 = vmatprep.mubr.f32.mxu0 0.0
        %816 = vmatmul.mubr.f32.gmra.mrb[0].mxu0 %v650
        %v817 = vpop.f32.mrb[0].mxu0
        %v818 = vadd.f32 %v496, %v817
        %v819 = vpop.f32.mrb[0].mxu0
        %820 = vmatprep.mubr.f32.mxu0 0.0
        %821 = vmatmul.mubr.f32.gmra.mrb[0].mxu0 %v653
        %v822 = vpop.f32.mrb[0].mxu0
        %v823 = vadd.f32 %v501, %v822
        %v824 = vpop.f32.mrb[0].mxu0
        %825 = vmatprep.mubr.f32.mxu0 0.0
        %826 = vmatmul.mubr.f32.gmra.mrb[0].mxu0 %v656
        %v827 = vpop.f32.mrb[0].mxu0
        %v828 = vadd.f32 %v506, %v827
        %v829 = vpop.f32.mrb[0].mxu0
        %830 = vmatprep.mubr.f32.mxu0 0.0
        %831 = vmatmul.mubr.f32.gmra.mrb[0].mxu0 %v659
        %v832 = vpop.f32.mrb[0].mxu0
        %v833 = vadd.f32 %v511, %v832
        %v834 = vpop.f32.mrb[0].mxu0
        %835 = vmatprep.mubr.f32.mxu0 0.0
        %836 = vmatmul.mubr.f32.gmra.mrb[0].mxu0 %v662
        %v837 = vpop.f32.mrb[0].mxu0
        %v838 = vadd.f32 %v516, %v837
        %v839 = vpop.f32.mrb[0].mxu0
        %840 = vmatprep.mubr.f32.mxu0 0.0
        %841 = vmatmul.mubr.f32.gmra.mrb[0].mxu0 %v665
        %v842 = vpop.f32.mrb[0].mxu0
        %v843 = vadd.f32 %v521, %v842
        %v844 = vpop.f32.mrb[0].mxu0
        %845 = vmatprep.mubr.f32.mxu0 0.0
        %846 = vmatmul.mubr.f32.gmra.mrb[0].mxu0 %v668
        %v847 = vpop.f32.mrb[0].mxu0
        %v848 = vadd.f32 %v526, %v847
        %v849 = vpop.f32.mrb[0].mxu0
        %850 = vmatprep.mubr.f32.mxu0 0.0
        %851 = vmatmul.mubr.f32.gmra.mrb[0].mxu0 %v671
        %v852 = vpop.f32.mrb[0].mxu0
        %v853 = vadd.f32 %v531, %v852
        %v854 = vpop.f32.mrb[0].mxu0
        %855 = vmatprep.mubr.f32.mxu0 0.0
        %856 = vmatmul.mubr.f32.gmra.mrb[0].mxu0 %v674
        %v857 = vpop.f32.mrb[0].mxu0
        %v858 = vadd.f32 %v536, %v857
        %v859 = vpop.f32.mrb[0].mxu0
        %860 = vmatprep.mubr.f32.mxu0 0.0
        %861 = vmatmul.mubr.f32.gmra.mrb[0].mxu0 %v677
        %v862 = vpop.f32.mrb[0].mxu0
        %v863 = vadd.f32 %v541, %v862
        %v864 = vpop.f32.mrb[0].mxu0
        %865 = vmatprep.mubr.f32.mxu0 0.0
        %866 = vmatmul.mubr.f32.gmra.mrb[0].mxu0 %v680
        %v867 = vpop.f32.mrb[0].mxu0
        %v868 = vadd.f32 %v546, %v867
        %v869 = vpop.f32.mrb[0].mxu0
        %870 = vmatprep.mubr.f32.mxu0 0.0
        %871 = vmatmul.mubr.f32.gmra.mrb[0].mxu0 %v683
        %v872 = vpop.f32.mrb[0].mxu0
        %v873 = vadd.f32 %v551, %v872
        %v874 = vpop.f32.mrb[0].mxu0
        %875 = vmatprep.mubr.f32.mxu0 0.0
        %876 = vmatmul.mubr.f32.gmra.mrb[0].mxu0 %v686
        %v877 = vpop.f32.mrb[0].mxu0
        %v878 = vadd.f32 %v556, %v877
        %v879 = vpop.f32.mrb[0].mxu0
        %880 = vmatprep.mubr.f32.mxu0 0.0
        %881 = vmatmul.mubr.f32.gmra.mrb[0].mxu0 %v689
        %v882 = vpop.f32.mrb[0].mxu0
        %v883 = vadd.f32 %v561, %v882
        %v884 = vpop.f32.mrb[0].mxu0
        %885 = vmatprep.mubr.f32.mxu0 0.0
        %886 = vmatmul.mubr.f32.gmra.mrb[0].mxu0 %v692
        %v887 = vpop.f32.mrb[0].mxu0
        %v888 = vadd.f32 %v566, %v887
        %v889 = vpop.f32.mrb[0].mxu0
        %890 = vmatprep.mubr.f32.mxu0 0.0
        %891 = vmatmul.mubr.f32.gmra.mrb[0].mxu0 %v695
        %v892 = vpop.f32.mrb[0].mxu0
        %v893 = vadd.f32 %v571, %v892
        %v894 = vpop.f32.mrb[0].mxu0
        %895 = vmatprep.mubr.f32.mxu0 0.0
        %896 = vmatmul.mubr.f32.gmra.mrb[0].mxu0 %v698
        %v897 = vpop.f32.mrb[0].mxu0
        %v898 = vadd.f32 %v576, %v897
        %v899 = vpop.f32.mrb[0].mxu0
        %900 = vmatprep.mubr.f32.mxu0 0.0
        %901 = vmatmul.mubr.f32.gmra.mrb[0].mxu0 %v701
        %v902 = vpop.f32.mrb[0].mxu0
        %v903 = vadd.f32 %v581, %v902
        %v904 = vpop.f32.mrb[0].mxu0
        %905 = vmatprep.mubr.f32.mxu0 0.0
        %906 = vmatmul.mubr.f32.gmra.mrb[0].mxu0 %v704
        %v907 = vpop.f32.mrb[0].mxu0
        %v908 = vadd.f32 %v586, %v907
        %v909 = vpop.f32.mrb[0].mxu0
        %910 = vmatprep.mubr.f32.mxu0 0.0
        %911 = vmatmul.mubr.f32.gmra.mrb[0].mxu0 %v707
        %v912 = vpop.f32.mrb[0].mxu0
        %v913 = vadd.f32 %v591, %v912
        %v914 = vpop.f32.mrb[0].mxu0
        %915 = vmatprep.mubr.f32.mxu0 0.0
        %916 = vmatmul.mubr.f32.gmra.mrb[0].mxu0 %v710
        %v917 = vpop.f32.mrb[0].mxu0
        %v918 = vadd.f32 %v596, %v917
        %v919 = vpop.f32.mrb[0].mxu0
        %920 = vmatprep.mubr.f32.mxu0 0.0
        %921 = vmatmul.mubr.f32.gmra.mrb[0].mxu0 %v713
        %v922 = vpop.f32.mrb[0].mxu0
        %v923 = vadd.f32 %v601, %v922
        %v924 = vpop.f32.mrb[0].mxu0
        %925 = vmatprep.mubr.f32.mxu0 0.0
        %926 = vmatmul.mubr.f32.gmra.mrb[0].mxu0 %v716
        %v927 = vpop.f32.mrb[0].mxu0
        %v928 = vadd.f32 %v606, %v927
        %v929 = vpop.f32.mrb[0].mxu0
        %930 = vmatprep.mubr.f32.mxu0 0.0
        %931 = vmatmul.mubr.f32.gmra.mrb[0].mxu0 %v719
        %v932 = vpop.f32.mrb[0].mxu0
        %v933 = vadd.f32 %v611, %v932
        %v934 = vpop.f32.mrb[0].mxu0
        %935 = vmatprep.mubr.f32.mxu0 0.0
        %936 = vmatmul.mubr.f32.gmra.mrb[0].mxu0 %v722
        %v937 = vpop.f32.mrb[0].mxu0
        %v938 = vadd.f32 %v616, %v937
        %v939 = vpop.f32.mrb[0].mxu0
        %940 = vmatprep.mubr.f32.mxu0 0.0
        %941 = vmatmul.mubr.f32.gmra.mrb[0].mxu0 %v725
        %v942 = vpop.f32.mrb[0].mxu0
        %v943 = vadd.f32 %v621, %v942
        %v944 = vpop.f32.mrb[0].mxu0
        %945 = vmatprep.mubr.f32.mxu0 0.0
        %946 = vmatmul.mubr.f32.gmra.mrb[0].mxu0 %v728
        %v947 = vpop.f32.mrb[0].mxu0
        %v948 = vadd.f32 %v626, %v947
        %v949 = vpop.f32.mrb[0].mxu0
        %950 = vmatprep.mubr.f32.mxu0 0.0
        %951 = vmatmul.mubr.f32.gmra.mrb[0].mxu0 %v731
        %v952 = vpop.f32.mrb[0].mxu0
        %v953 = vadd.f32 %v631, %v952
        %v954 = vpop.f32.mrb[0].mxu0
        %955 = vmatprep.mubr.f32.mxu0 0.0
        %956 = vmatmul.mubr.f32.gmra.mrb[0].mxu0 %v734
        %v957 = vpop.f32.mrb[0].mxu0
        %v958 = vadd.f32 %v636, %v957
        %v959 = vpop.f32.mrb[0].mxu0
        %960 = vdwg.mxu0
        %v961 = vld [vmem:[%s4] sm:$0x1]
        %v963 = vlaneseq
        %v964 = vshrl.u32 %v963, 7
        %v965 = vsub.s32 0, %v964
        %v966 = vrot.slane %v961, %v965
        %v968 = vadd.f32 %v803, %v966
        %v969 = vadd.f32 %v808, %v966
        %v970 = vadd.f32 %v813, %v966
        %v971 = vadd.f32 %v818, %v966
        %v972 = vadd.f32 %v823, %v966
        %v973 = vadd.f32 %v828, %v966
        %v974 = vadd.f32 %v833, %v966
        %v975 = vadd.f32 %v838, %v966
        %v976 = vadd.f32 %v843, %v966
        %v977 = vadd.f32 %v848, %v966
        %v978 = vadd.f32 %v853, %v966
        %v979 = vadd.f32 %v858, %v966
        %v980 = vadd.f32 %v863, %v966
        %v981 = vadd.f32 %v868, %v966
        %v982 = vadd.f32 %v873, %v966
        %v983 = vadd.f32 %v878, %v966
        %v984 = vadd.f32 %v883, %v966
        %v985 = vadd.f32 %v888, %v966
        %v986 = vadd.f32 %v893, %v966
        %v987 = vadd.f32 %v898, %v966
        %v988 = vadd.f32 %v903, %v966
        %v989 = vadd.f32 %v908, %v966
        %v990 = vadd.f32 %v913, %v966
        %v991 = vadd.f32 %v918, %v966
        %v992 = vadd.f32 %v923, %v966
        %v993 = vadd.f32 %v928, %v966
        %v994 = vadd.f32 %v933, %v966
        %v995 = vadd.f32 %v938, %v966
        %v996 = vadd.f32 %v943, %v966
        %v997 = vadd.f32 %v948, %v966
        %v998 = vadd.f32 %v953, %v966
        %v999 = vadd.f32 %v958, %v966
        %1000 = vst [vmem:[%s234] sm:$0xff] %v968
        %1001 = vst [vmem:[%s234 + $0x8] sm:$0xff] %v969
        %1002 = vst [vmem:[%s234 + $0x10] sm:$0xff] %v970
        %1003 = vst [vmem:[%s234 + $0x18] sm:$0xff] %v971
        %1004 = vst [vmem:[%s234 + $0x20] sm:$0xff] %v972
        %1005 = vst [vmem:[%s234 + $0x28] sm:$0xff] %v973
        %1006 = vst [vmem:[%s234 + $0x30] sm:$0xff] %v974
        %1007 = vst [vmem:[%s234 + $0x38] sm:$0xff] %v975
        %1008 = vst [vmem:[%s234 + $0x40] sm:$0xff] %v976
        %1009 = vst [vmem:[%s234 + $0x48] sm:$0xff] %v977
        %1010 = vst [vmem:[%s234 + $0x50] sm:$0xff] %v978
        %1011 = vst [vmem:[%s234 + $0x58] sm:$0xff] %v979
        %1012 = vst [vmem:[%s234 + $0x60] sm:$0xff] %v980
        %1013 = vst [vmem:[%s234 + $0x68] sm:$0xff] %v981
        %1014 = vst [vmem:[%s234 + $0x70] sm:$0xff] %v982
        %1015 = vst [vmem:[%s234 + $0x78] sm:$0xff] %v983
        %1016 = vst [vmem:[%s234 + $0x80] sm:$0xff] %v984
        %1017 = vst [vmem:[%s234 + $0x88] sm:$0xff] %v985
        %1018 = vst [vmem:[%s234 + $0x90] sm:$0xff] %v986
        %1019 = vst [vmem:[%s234 + $0x98] sm:$0xff] %v987
        %1020 = vst [vmem:[%s234 + $0xa0] sm:$0xff] %v988
        %1021 = vst [vmem:[%s234 + $0xa8] sm:$0xff] %v989
        %1022 = vst [vmem:[%s234 + $0xb0] sm:$0xff] %v990
        %1023 = vst [vmem:[%s234 + $0xb8] sm:$0xff] %v991
        %1024 = vst [vmem:[%s234 + $0xc0] sm:$0xff] %v992
        %1025 = vst [vmem:[%s234 + $0xc8] sm:$0xff] %v993
        %1026 = vst [vmem:[%s234 + $0xd0] sm:$0xff] %v994
        %1027 = vst [vmem:[%s234 + $0xd8] sm:$0xff] %v995
        %1028 = vst [vmem:[%s234 + $0xe0] sm:$0xff] %v996
        %1029 = vst [vmem:[%s234 + $0xe8] sm:$0xff] %v997
        %1030 = vst [vmem:[%s234 + $0xf0] sm:$0xff] %v998
        %1031 = vst [vmem:[%s234 + $0xf8] sm:$0xff] %v999
        %s1032 = sand.u32 %s142, 1
        %s1033 = scalar_lea.sflag [#allocation3], %s1032
        %s1034 = sand.u32 %s142, 1
        %s1035 = smul.addr %s1034, 256
        %s1036 = scalar_lea.vmem [#allocation2], %s1035
        // Predicated region
        $region41: #{_lambda_.5} parent=39 // pred_check
          %p1037 = pneg %p152
        $region42: #{_lambda_.5} parent=39 // pred_check_branch
          %1039 = sbr.rel (%p1037) target = $region44
        $region43: #{_lambda_.5} parent=39 // pred_region
          %s1040 = smul.u32 32, %s19
          %s1042 = ssub.s32 4096, 4096
          %1043 = vsyncadd %s1033, %s1042
          %s1044 = smul.addr %s1040, 128
          %s1045 = scalar_lea.hbm %s5, %s1044
          %s1046 = sshll.u32 %s1036, 4
          %s1047 = int_to_ptr.vmem [resolvable:$true] %s1046
          %1052 = dma.vmem_to_hbm [thread:$0]  %s1047, 4096, %s1045, %s1033, 128, 128, 8
        $region44: #{_lambda_.5} parent=39 // pred_fallthru
          _
      $region40: #{_lambda_.5} parent=5 // pred_fallthru
        _
      %p1053 = scmp.le.s32.totalorder 2, %s14
      // Predicated region
      $region45: #{_lambda_.5} parent=5 // pred_check
        %p1054 = pneg %p1053
      $region46: #{_lambda_.5} parent=5 // pred_check_branch
        %1056 = sbr.rel (%p1054) target = $region48
      $region47: #{_lambda_.5} parent=5 // pred_region
        %s1057 = ssub.s32 %s14, 2
        // Predicated region
        $region49: #{_lambda_.5} parent=47 // pred_check
          %p1058 = pneg %p158
        $region50: #{_lambda_.5} parent=47 // pred_check_branch
          %1060 = sbr.rel (%p1058) target = $region52
        $region51: #{_lambda_.5} parent=47 // pred_region
          %s1061 = sand.u32 %s143, 1
          %s1062 = scalar_lea.sflag [#allocation3], %s1061
          %s1063 = sand.u32 %s143, 1
          %s1064 = smul.addr %s1063, 256
          %s1065 = scalar_lea.vmem [#allocation2], %s1064
          %1066 = dma.done %s1062, 4096
        $region52: #{_lambda_.5} parent=47 // pred_fallthru
          _
      $region48: #{_lambda_.5} parent=5 // pred_fallthru
        _
    $region6: #{_lambda_.5} parent=1 // loop_footer
      %s18 = sadd.s32 1, %s14
    $region7: #{_lambda_.5} parent=1 // loop_footer_branch
      %13 = sbr.rel target = $region3
    $region8: #{_lambda_.5} parent=1 // loop_exit
      _
    %1067 = vsyncpa [#allocation3], 1
    %s1068 = scalar_lea.sflag [#allocation3], 1
    %1069 = vsyncpa %s1068, 1

</llo_original>
